<compile_context>
chip_gen: v7x
topology: tpu7x:2x2x1
jax: 0.10.0
libtpu: 0.0.40
codegen_flags: <defaults>
</compile_context>

<pallas_src>
import functools

import numpy as np
import jax
import jax.numpy as jnp
from jax.experimental import pallas as pl
from jax.experimental.pallas import tpu as pltpu


def _fetch_block_kernel(x_ref, early_ref, masks_ref, w1_ref, b1_ref, w2_ref,
                        b2_ref, o_ref, *, C, H, W, K):
    """Fused conv1+ReLU+conv2+ReLU+residual, NCHW with H*W flattened on lanes.

    x_ref, early_ref, o_ref : (B, C, H*W)   f32, VMEM
    masks_ref               : (K*K, 1, H*W) f32, VMEM ('same'-padding halo masks)
    w*_ref                  : (K*K*C, C, 1) f32, VMEM; row t*C+i = weight[:, i, kh, kw]
    b*_ref                  : (1, C, 1)     f32, VMEM
    """
    p = K // 2

    def conv_relu(x, w_ref, b_ref):
        # x: (B, C, HW).  Direct conv: per tap, lane-roll the whole block once,
        # mask the halo, then accumulate weight-column (outer) x spatial-slab
        # products on the VPU.  Accumulator stays in registers.
        acc = jnp.zeros(x.shape, jnp.float32)
        for kh in range(K):
            dh = kh - p
            for kw in range(K):
                dw = kw - p
                t = kh * K + kw
                d = dh * W + dw                       # flattened spatial shift
                xs = x if d == 0 else jnp.roll(x, -d, axis=-1)
                if dh != 0 or dw != 0:
                    xs = xs * masks_ref[t]            # (1,HW): bcast over B, C
                for i in range(C):
                    w_col = w_ref[t * C + i]          # (C,1) out-channel column
                    acc = acc + w_col * xs[:, i:i + 1, :]   # VPU broadcast FMA
        return jnp.maximum(acc + b_ref[...], 0.0)

    x = x_ref[...]                                    # (B, C, HW) one dense load
    h = conv_relu(x, w1_ref, b1_ref)                  # intermediate stays on-chip
    y = conv_relu(h, w2_ref, b2_ref) + early_ref[...]
    o_ref[...] = y                                    # single lane-dense store


def _build_tap_masks(H, W, K):
    """(K*K, 1, H*W) f32: 1.0 where the tap's source pixel is inside the image."""
    p = K // 2
    hh, ww = np.meshgrid(np.arange(H), np.arange(W), indexing="ij")
    masks = np.zeros((K * K, 1, H * W), np.float32)
    for kh in range(K):
        for kw in range(K):
            dh, dw = kh - p, kw - p
            ok = ((hh + dh >= 0) & (hh + dh < H) &
                  (ww + dw >= 0) & (ww + dw < W))
            masks[kh * K + kw, 0, :] = ok.reshape(-1)
    return masks


def fetch_block_forward(x_nchw, early_nchw, params, kernel_size):
    """x, early_embed: [B, C, H, W] (PyTorch layout). Returns [B, C, H, W]."""
    B, C, H, W = x_nchw.shape
    K = kernel_size
    HW = H * W

    # Free, copy-less reshapes: keep NCHW, just flatten H*W onto the lane axis.
    x = x_nchw.astype(jnp.float32).reshape(B, C, HW)
    early = early_nchw.astype(jnp.float32).reshape(B, C, HW)

    # Weights: OIHW -> (K*K*C_in, C_out, 1); row t*C+i is the per-tap,
    # per-input-channel column of output-channel weights (sublane-resident).
    def prep_w(w):
        return jnp.transpose(w.astype(jnp.float32), (2, 3, 1, 0)).reshape(K * K * C, C, 1)

    w1 = prep_w(params["w1"])
    w2 = prep_w(params["w2"])
    b1 = params["b1"].astype(jnp.float32).reshape(1, C, 1)
    b2 = params["b2"].astype(jnp.float32).reshape(1, C, 1)
    masks = jnp.asarray(_build_tap_masks(H, W, K))

    kernel = functools.partial(_fetch_block_kernel, C=C, H=H, W=W, K=K)
    vmem = lambda: pl.BlockSpec(memory_space=pltpu.MemorySpace.VMEM)

    # Tiny problem: whole batch in one invocation (everything fits in VMEM).
    # TODO(synk): for production sizes, add a 'parallel' batch/row grid axis
    # (v7x 2-TC split) and re-tile for the 64 MiB v7x VMEM budget.
    out = pl.pallas_call(
        kernel,
        out_shape=jax.ShapeDtypeStruct((B, C, HW), jnp.float32),
        in_specs=[vmem() for _ in range(7)],
        out_specs=vmem(),
    )(x, early, masks, w1, b1, w2, b2)
    return out.reshape(B, C, H, W)


def init_fetch_block_params(key, kernel_size, hidden_size):
    """Deterministic synthetic params matching torch Conv2d shapes (OIHW + bias)."""
    k1, k2, k3, k4 = jax.random.split(key, 4)
    scale = 1.0 / (hidden_size * kernel_size * kernel_size) ** 0.5
    w1 = jax.random.uniform(k1, (hidden_size, hidden_size, kernel_size, kernel_size),
                            jnp.float32, -scale, scale)
    b1 = jax.random.uniform(k2, (hidden_size,), jnp.float32, -scale, scale)
    w2 = jax.random.uniform(k3, (hidden_size, hidden_size, kernel_size, kernel_size),
                            jnp.float32, -scale, scale)
    b2 = jax.random.uniform(k4, (hidden_size,), jnp.float32, -scale, scale)
    return {"w1": w1, "b1": b1, "w2": w2, "b2": b2}


def _reference_forward(x_nchw, early_nchw, params, kernel_size):
    """Pure-JAX reference using lax.conv for a correctness check."""
    p = kernel_size // 2

    def conv(x, w, b):
        y = jax.lax.conv_general_dilated(
            x, w, window_strides=(1, 1), padding=((p, p), (p, p)),
            dimension_numbers=("NCHW", "OIHW", "NCHW"))
        return jnp.maximum(y + b[None, :, None, None], 0.0)

    h = conv(x_nchw, params["w1"], params["b1"])
    return conv(h, params["w2"], params["b2"]) + early_nchw


if __name__ == "__main__":
    kernel_size = 3
    hidden_size = 4      # = C
    img_length = 16      # = H = W
    B = 2

    key = jax.random.PRNGKey(0)
    kx, ke, kp = jax.random.split(key, 3)
    x = jax.random.normal(kx, (B, hidden_size, img_length, img_length), jnp.float32)
    early = jax.random.normal(ke, (B, hidden_size, img_length, img_length), jnp.float32)
    params = init_fetch_block_params(kp, kernel_size, hidden_size)

    fwd = jax.jit(functools.partial(fetch_block_forward, kernel_size=kernel_size))
    out = jax.block_until_ready(fwd(x, early, params))

    ref = _reference_forward(x, early, params, kernel_size)
    assert out.shape == (B, hidden_size, img_length, img_length)
    assert jnp.allclose(out, ref, atol=1e-4, rtol=1e-4), \
        float(jnp.max(jnp.abs(out - ref)))

    print("KERNEL_OK")
</pallas_src>

<mosaic_0001>
module attributes {stable_mosaic.version = 11 : i64} {
  func.func @_fetch_block_kernel(%arg0: memref<2x4x256xf32, #tpu.memory_space<vmem>>, %arg1: memref<2x4x256xf32, #tpu.memory_space<vmem>>, %arg2: memref<9x1x256xf32, #tpu.memory_space<vmem>>, %arg3: memref<36x4x1xf32, #tpu.memory_space<vmem>>, %arg4: memref<1x4x1xf32, #tpu.memory_space<vmem>>, %arg5: memref<36x4x1xf32, #tpu.memory_space<vmem>>, %arg6: memref<1x4x1xf32, #tpu.memory_space<vmem>>, %arg7: memref<2x4x256xf32, #tpu.memory_space<vmem>>) attributes {dimension_semantics = [], scalar_prefetch = 0 : i64, scratch_operands = 0 : i64, tpu.core_type = #tpu.core_type<tc>} {
    %c0 = arith.constant 0 : index
    %c0_0 = arith.constant 0 : index
    %c0_1 = arith.constant 0 : index
    %0 = vector.load %arg0[%c0, %c0_0, %c0_1] : memref<2x4x256xf32, #tpu.memory_space<vmem>>, vector<2x4x256xf32>
    %cst = arith.constant 0.000000e+00 : f32
    %1 = vector.broadcast %cst : f32 to vector<2x4x256xf32>
    %2 = vector.extract_strided_slice %0 {offsets = [0, 0, 239], sizes = [2, 4, 17], strides = [1, 1, 1]} : vector<2x4x256xf32> to vector<2x4x17xf32>
    %3 = vector.extract_strided_slice %0 {offsets = [0, 0, 0], sizes = [2, 4, 239], strides = [1, 1, 1]} : vector<2x4x256xf32> to vector<2x4x239xf32>
    %4 = tpu.concatenate %2, %3 in 2 : vector<2x4x17xf32>, vector<2x4x239xf32> -> vector<2x4x256xf32>
    %c0_2 = arith.constant 0 : index
    %c0_3 = arith.constant 0 : index
    %c0_4 = arith.constant 0 : index
    %5 = vector.load %arg2[%c0_2, %c0_3, %c0_4] : memref<9x1x256xf32, #tpu.memory_space<vmem>>, vector<1x1x256xf32>
    %6 = vector.shape_cast %5 : vector<1x1x256xf32> to vector<1x256xf32>
    %7 = vector.shape_cast %6 : vector<1x256xf32> to vector<1x1x256xf32>
    %8 = vector.broadcast %7 : vector<1x1x256xf32> to vector<2x4x256xf32>
    %9 = arith.mulf %4, %8 : vector<2x4x256xf32>
    %c0_5 = arith.constant 0 : index
    %c0_6 = arith.constant 0 : index
    %c0_7 = arith.constant 0 : index
    %10 = vector.load %arg3[%c0_5, %c0_6, %c0_7] : memref<36x4x1xf32, #tpu.memory_space<vmem>>, vector<1x4x1xf32>
    %11 = vector.shape_cast %10 : vector<1x4x1xf32> to vector<4x1xf32>
    %12 = vector.extract_strided_slice %9 {offsets = [0, 0, 0], sizes = [2, 1, 256], strides = [1, 1, 1]} : vector<2x4x256xf32> to vector<2x1x256xf32>
    %13 = vector.shape_cast %11 : vector<4x1xf32> to vector<1x4x1xf32>
    %14 = vector.broadcast %13 : vector<1x4x1xf32> to vector<2x4x256xf32>
    %15 = vector.broadcast %12 : vector<2x1x256xf32> to vector<2x4x256xf32>
    %16 = arith.mulf %14, %15 : vector<2x4x256xf32>
    %17 = arith.addf %1, %16 : vector<2x4x256xf32>
    %c1 = arith.constant 1 : index
    %c0_8 = arith.constant 0 : index
    %c0_9 = arith.constant 0 : index
    %18 = vector.load %arg3[%c1, %c0_8, %c0_9] : memref<36x4x1xf32, #tpu.memory_space<vmem>>, vector<1x4x1xf32>
    %19 = vector.shape_cast %18 : vector<1x4x1xf32> to vector<4x1xf32>
    %20 = vector.extract_strided_slice %9 {offsets = [0, 1, 0], sizes = [2, 1, 256], strides = [1, 1, 1]} : vector<2x4x256xf32> to vector<2x1x256xf32>
    %21 = vector.shape_cast %19 : vector<4x1xf32> to vector<1x4x1xf32>
    %22 = vector.broadcast %21 : vector<1x4x1xf32> to vector<2x4x256xf32>
    %23 = vector.broadcast %20 : vector<2x1x256xf32> to vector<2x4x256xf32>
    %24 = arith.mulf %22, %23 : vector<2x4x256xf32>
    %25 = arith.addf %17, %24 : vector<2x4x256xf32>
    %c2 = arith.constant 2 : index
    %c0_10 = arith.constant 0 : index
    %c0_11 = arith.constant 0 : index
    %26 = vector.load %arg3[%c2, %c0_10, %c0_11] : memref<36x4x1xf32, #tpu.memory_space<vmem>>, vector<1x4x1xf32>
    %27 = vector.shape_cast %26 : vector<1x4x1xf32> to vector<4x1xf32>
    %28 = vector.extract_strided_slice %9 {offsets = [0, 2, 0], sizes = [2, 1, 256], strides = [1, 1, 1]} : vector<2x4x256xf32> to vector<2x1x256xf32>
    %29 = vector.shape_cast %27 : vector<4x1xf32> to vector<1x4x1xf32>
    %30 = vector.broadcast %29 : vector<1x4x1xf32> to vector<2x4x256xf32>
    %31 = vector.broadcast %28 : vector<2x1x256xf32> to vector<2x4x256xf32>
    %32 = arith.mulf %30, %31 : vector<2x4x256xf32>
    %33 = arith.addf %25, %32 : vector<2x4x256xf32>
    %c3 = arith.constant 3 : index
    %c0_12 = arith.constant 0 : index
    %c0_13 = arith.constant 0 : index
    %34 = vector.load %arg3[%c3, %c0_12, %c0_13] : memref<36x4x1xf32, #tpu.memory_space<vmem>>, vector<1x4x1xf32>
    %35 = vector.shape_cast %34 : vector<1x4x1xf32> to vector<4x1xf32>
    %36 = vector.extract_strided_slice %9 {offsets = [0, 3, 0], sizes = [2, 1, 256], strides = [1, 1, 1]} : vector<2x4x256xf32> to vector<2x1x256xf32>
    %37 = vector.shape_cast %35 : vector<4x1xf32> to vector<1x4x1xf32>
    %38 = vector.broadcast %37 : vector<1x4x1xf32> to vector<2x4x256xf32>
    %39 = vector.broadcast %36 : vector<2x1x256xf32> to vector<2x4x256xf32>
    %40 = arith.mulf %38, %39 : vector<2x4x256xf32>
    %41 = arith.addf %33, %40 : vector<2x4x256xf32>
    %42 = vector.extract_strided_slice %0 {offsets = [0, 0, 240], sizes = [2, 4, 16], strides = [1, 1, 1]} : vector<2x4x256xf32> to vector<2x4x16xf32>
    %43 = vector.extract_strided_slice %0 {offsets = [0, 0, 0], sizes = [2, 4, 240], strides = [1, 1, 1]} : vector<2x4x256xf32> to vector<2x4x240xf32>
    %44 = tpu.concatenate %42, %43 in 2 : vector<2x4x16xf32>, vector<2x4x240xf32> -> vector<2x4x256xf32>
    %c1_14 = arith.constant 1 : index
    %c0_15 = arith.constant 0 : index
    %c0_16 = arith.constant 0 : index
    %45 = vector.load %arg2[%c1_14, %c0_15, %c0_16] : memref<9x1x256xf32, #tpu.memory_space<vmem>>, vector<1x1x256xf32>
    %46 = vector.shape_cast %45 : vector<1x1x256xf32> to vector<1x256xf32>
    %47 = vector.shape_cast %46 : vector<1x256xf32> to vector<1x1x256xf32>
    %48 = vector.broadcast %47 : vector<1x1x256xf32> to vector<2x4x256xf32>
    %49 = arith.mulf %44, %48 : vector<2x4x256xf32>
    %c4 = arith.constant 4 : index
    %c0_17 = arith.constant 0 : index
    %c0_18 = arith.constant 0 : index
    %50 = vector.load %arg3[%c4, %c0_17, %c0_18] : memref<36x4x1xf32, #tpu.memory_space<vmem>>, vector<1x4x1xf32>
    %51 = vector.shape_cast %50 : vector<1x4x1xf32> to vector<4x1xf32>
    %52 = vector.extract_strided_slice %49 {offsets = [0, 0, 0], sizes = [2, 1, 256], strides = [1, 1, 1]} : vector<2x4x256xf32> to vector<2x1x256xf32>
    %53 = vector.shape_cast %51 : vector<4x1xf32> to vector<1x4x1xf32>
    %54 = vector.broadcast %53 : vector<1x4x1xf32> to vector<2x4x256xf32>
    %55 = vector.broadcast %52 : vector<2x1x256xf32> to vector<2x4x256xf32>
    %56 = arith.mulf %54, %55 : vector<2x4x256xf32>
    %57 = arith.addf %41, %56 : vector<2x4x256xf32>
    %c5 = arith.constant 5 : index
    %c0_19 = arith.constant 0 : index
    %c0_20 = arith.constant 0 : index
    %58 = vector.load %arg3[%c5, %c0_19, %c0_20] : memref<36x4x1xf32, #tpu.memory_space<vmem>>, vector<1x4x1xf32>
    %59 = vector.shape_cast %58 : vector<1x4x1xf32> to vector<4x1xf32>
    %60 = vector.extract_strided_slice %49 {offsets = [0, 1, 0], sizes = [2, 1, 256], strides = [1, 1, 1]} : vector<2x4x256xf32> to vector<2x1x256xf32>
    %61 = vector.shape_cast %59 : vector<4x1xf32> to vector<1x4x1xf32>
    %62 = vector.broadcast %61 : vector<1x4x1xf32> to vector<2x4x256xf32>
    %63 = vector.broadcast %60 : vector<2x1x256xf32> to vector<2x4x256xf32>
    %64 = arith.mulf %62, %63 : vector<2x4x256xf32>
    %65 = arith.addf %57, %64 : vector<2x4x256xf32>
    %c6 = arith.constant 6 : index
    %c0_21 = arith.constant 0 : index
    %c0_22 = arith.constant 0 : index
    %66 = vector.load %arg3[%c6, %c0_21, %c0_22] : memref<36x4x1xf32, #tpu.memory_space<vmem>>, vector<1x4x1xf32>
    %67 = vector.shape_cast %66 : vector<1x4x1xf32> to vector<4x1xf32>
    %68 = vector.extract_strided_slice %49 {offsets = [0, 2, 0], sizes = [2, 1, 256], strides = [1, 1, 1]} : vector<2x4x256xf32> to vector<2x1x256xf32>
    %69 = vector.shape_cast %67 : vector<4x1xf32> to vector<1x4x1xf32>
    %70 = vector.broadcast %69 : vector<1x4x1xf32> to vector<2x4x256xf32>
    %71 = vector.broadcast %68 : vector<2x1x256xf32> to vector<2x4x256xf32>
    %72 = arith.mulf %70, %71 : vector<2x4x256xf32>
    %73 = arith.addf %65, %72 : vector<2x4x256xf32>
    %c7 = arith.constant 7 : index
    %c0_23 = arith.constant 0 : index
    %c0_24 = arith.constant 0 : index
    %74 = vector.load %arg3[%c7, %c0_23, %c0_24] : memref<36x4x1xf32, #tpu.memory_space<vmem>>, vector<1x4x1xf32>
    %75 = vector.shape_cast %74 : vector<1x4x1xf32> to vector<4x1xf32>
    %76 = vector.extract_strided_slice %49 {offsets = [0, 3, 0], sizes = [2, 1, 256], strides = [1, 1, 1]} : vector<2x4x256xf32> to vector<2x1x256xf32>
    %77 = vector.shape_cast %75 : vector<4x1xf32> to vector<1x4x1xf32>
    %78 = vector.broadcast %77 : vector<1x4x1xf32> to vector<2x4x256xf32>
    %79 = vector.broadcast %76 : vector<2x1x256xf32> to vector<2x4x256xf32>
    %80 = arith.mulf %78, %79 : vector<2x4x256xf32>
    %81 = arith.addf %73, %80 : vector<2x4x256xf32>
    %82 = vector.extract_strided_slice %0 {offsets = [0, 0, 241], sizes = [2, 4, 15], strides = [1, 1, 1]} : vector<2x4x256xf32> to vector<2x4x15xf32>
    %83 = vector.extract_strided_slice %0 {offsets = [0, 0, 0], sizes = [2, 4, 241], strides = [1, 1, 1]} : vector<2x4x256xf32> to vector<2x4x241xf32>
    %84 = tpu.concatenate %82, %83 in 2 : vector<2x4x15xf32>, vector<2x4x241xf32> -> vector<2x4x256xf32>
    %c2_25 = arith.constant 2 : index
    %c0_26 = arith.constant 0 : index
    %c0_27 = arith.constant 0 : index
    %85 = vector.load %arg2[%c2_25, %c0_26, %c0_27] : memref<9x1x256xf32, #tpu.memory_space<vmem>>, vector<1x1x256xf32>
    %86 = vector.shape_cast %85 : vector<1x1x256xf32> to vector<1x256xf32>
    %87 = vector.shape_cast %86 : vector<1x256xf32> to vector<1x1x256xf32>
    %88 = vector.broadcast %87 : vector<1x1x256xf32> to vector<2x4x256xf32>
    %89 = arith.mulf %84, %88 : vector<2x4x256xf32>
    %c8 = arith.constant 8 : index
    %c0_28 = arith.constant 0 : index
    %c0_29 = arith.constant 0 : index
    %90 = vector.load %arg3[%c8, %c0_28, %c0_29] : memref<36x4x1xf32, #tpu.memory_space<vmem>>, vector<1x4x1xf32>
    %91 = vector.shape_cast %90 : vector<1x4x1xf32> to vector<4x1xf32>
    %92 = vector.extract_strided_slice %89 {offsets = [0, 0, 0], sizes = [2, 1, 256], strides = [1, 1, 1]} : vector<2x4x256xf32> to vector<2x1x256xf32>
    %93 = vector.shape_cast %91 : vector<4x1xf32> to vector<1x4x1xf32>
    %94 = vector.broadcast %93 : vector<1x4x1xf32> to vector<2x4x256xf32>
    %95 = vector.broadcast %92 : vector<2x1x256xf32> to vector<2x4x256xf32>
    %96 = arith.mulf %94, %95 : vector<2x4x256xf32>
    %97 = arith.addf %81, %96 : vector<2x4x256xf32>
    %c9 = arith.constant 9 : index
    %c0_30 = arith.constant 0 : index
    %c0_31 = arith.constant 0 : index
    %98 = vector.load %arg3[%c9, %c0_30, %c0_31] : memref<36x4x1xf32, #tpu.memory_space<vmem>>, vector<1x4x1xf32>
    %99 = vector.shape_cast %98 : vector<1x4x1xf32> to vector<4x1xf32>
    %100 = vector.extract_strided_slice %89 {offsets = [0, 1, 0], sizes = [2, 1, 256], strides = [1, 1, 1]} : vector<2x4x256xf32> to vector<2x1x256xf32>
    %101 = vector.shape_cast %99 : vector<4x1xf32> to vector<1x4x1xf32>
    %102 = vector.broadcast %101 : vector<1x4x1xf32> to vector<2x4x256xf32>
    %103 = vector.broadcast %100 : vector<2x1x256xf32> to vector<2x4x256xf32>
    %104 = arith.mulf %102, %103 : vector<2x4x256xf32>
    %105 = arith.addf %97, %104 : vector<2x4x256xf32>
    %c10 = arith.constant 10 : index
    %c0_32 = arith.constant 0 : index
    %c0_33 = arith.constant 0 : index
    %106 = vector.load %arg3[%c10, %c0_32, %c0_33] : memref<36x4x1xf32, #tpu.memory_space<vmem>>, vector<1x4x1xf32>
    %107 = vector.shape_cast %106 : vector<1x4x1xf32> to vector<4x1xf32>
    %108 = vector.extract_strided_slice %89 {offsets = [0, 2, 0], sizes = [2, 1, 256], strides = [1, 1, 1]} : vector<2x4x256xf32> to vector<2x1x256xf32>
    %109 = vector.shape_cast %107 : vector<4x1xf32> to vector<1x4x1xf32>
    %110 = vector.broadcast %109 : vector<1x4x1xf32> to vector<2x4x256xf32>
    %111 = vector.broadcast %108 : vector<2x1x256xf32> to vector<2x4x256xf32>
    %112 = arith.mulf %110, %111 : vector<2x4x256xf32>
    %113 = arith.addf %105, %112 : vector<2x4x256xf32>
    %c11 = arith.constant 11 : index
    %c0_34 = arith.constant 0 : index
    %c0_35 = arith.constant 0 : index
    %114 = vector.load %arg3[%c11, %c0_34, %c0_35] : memref<36x4x1xf32, #tpu.memory_space<vmem>>, vector<1x4x1xf32>
    %115 = vector.shape_cast %114 : vector<1x4x1xf32> to vector<4x1xf32>
    %116 = vector.extract_strided_slice %89 {offsets = [0, 3, 0], sizes = [2, 1, 256], strides = [1, 1, 1]} : vector<2x4x256xf32> to vector<2x1x256xf32>
    %117 = vector.shape_cast %115 : vector<4x1xf32> to vector<1x4x1xf32>
    %118 = vector.broadcast %117 : vector<1x4x1xf32> to vector<2x4x256xf32>
    %119 = vector.broadcast %116 : vector<2x1x256xf32> to vector<2x4x256xf32>
    %120 = arith.mulf %118, %119 : vector<2x4x256xf32>
    %121 = arith.addf %113, %120 : vector<2x4x256xf32>
    %122 = vector.extract_strided_slice %0 {offsets = [0, 0, 255], sizes = [2, 4, 1], strides = [1, 1, 1]} : vector<2x4x256xf32> to vector<2x4x1xf32>
    %123 = vector.extract_strided_slice %0 {offsets = [0, 0, 0], sizes = [2, 4, 255], strides = [1, 1, 1]} : vector<2x4x256xf32> to vector<2x4x255xf32>
    %124 = tpu.concatenate %122, %123 in 2 : vector<2x4x1xf32>, vector<2x4x255xf32> -> vector<2x4x256xf32>
    %c3_36 = arith.constant 3 : index
    %c0_37 = arith.constant 0 : index
    %c0_38 = arith.constant 0 : index
    %125 = vector.load %arg2[%c3_36, %c0_37, %c0_38] : memref<9x1x256xf32, #tpu.memory_space<vmem>>, vector<1x1x256xf32>
    %126 = vector.shape_cast %125 : vector<1x1x256xf32> to vector<1x256xf32>
    %127 = vector.shape_cast %126 : vector<1x256xf32> to vector<1x1x256xf32>
    %128 = vector.broadcast %127 : vector<1x1x256xf32> to vector<2x4x256xf32>
    %129 = arith.mulf %124, %128 : vector<2x4x256xf32>
    %c12 = arith.constant 12 : index
    %c0_39 = arith.constant 0 : index
    %c0_40 = arith.constant 0 : index
    %130 = vector.load %arg3[%c12, %c0_39, %c0_40] : memref<36x4x1xf32, #tpu.memory_space<vmem>>, vector<1x4x1xf32>
    %131 = vector.shape_cast %130 : vector<1x4x1xf32> to vector<4x1xf32>
    %132 = vector.extract_strided_slice %129 {offsets = [0, 0, 0], sizes = [2, 1, 256], strides = [1, 1, 1]} : vector<2x4x256xf32> to vector<2x1x256xf32>
    %133 = vector.shape_cast %131 : vector<4x1xf32> to vector<1x4x1xf32>
    %134 = vector.broadcast %133 : vector<1x4x1xf32> to vector<2x4x256xf32>
    %135 = vector.broadcast %132 : vector<2x1x256xf32> to vector<2x4x256xf32>
    %136 = arith.mulf %134, %135 : vector<2x4x256xf32>
    %137 = arith.addf %121, %136 : vector<2x4x256xf32>
    %c13 = arith.constant 13 : index
    %c0_41 = arith.constant 0 : index
    %c0_42 = arith.constant 0 : index
    %138 = vector.load %arg3[%c13, %c0_41, %c0_42] : memref<36x4x1xf32, #tpu.memory_space<vmem>>, vector<1x4x1xf32>
    %139 = vector.shape_cast %138 : vector<1x4x1xf32> to vector<4x1xf32>
    %140 = vector.extract_strided_slice %129 {offsets = [0, 1, 0], sizes = [2, 1, 256], strides = [1, 1, 1]} : vector<2x4x256xf32> to vector<2x1x256xf32>
    %141 = vector.shape_cast %139 : vector<4x1xf32> to vector<1x4x1xf32>
    %142 = vector.broadcast %141 : vector<1x4x1xf32> to vector<2x4x256xf32>
    %143 = vector.broadcast %140 : vector<2x1x256xf32> to vector<2x4x256xf32>
    %144 = arith.mulf %142, %143 : vector<2x4x256xf32>
    %145 = arith.addf %137, %144 : vector<2x4x256xf32>
    %c14 = arith.constant 14 : index
    %c0_43 = arith.constant 0 : index
    %c0_44 = arith.constant 0 : index
    %146 = vector.load %arg3[%c14, %c0_43, %c0_44] : memref<36x4x1xf32, #tpu.memory_space<vmem>>, vector<1x4x1xf32>
    %147 = vector.shape_cast %146 : vector<1x4x1xf32> to vector<4x1xf32>
    %148 = vector.extract_strided_slice %129 {offsets = [0, 2, 0], sizes = [2, 1, 256], strides = [1, 1, 1]} : vector<2x4x256xf32> to vector<2x1x256xf32>
    %149 = vector.shape_cast %147 : vector<4x1xf32> to vector<1x4x1xf32>
    %150 = vector.broadcast %149 : vector<1x4x1xf32> to vector<2x4x256xf32>
    %151 = vector.broadcast %148 : vector<2x1x256xf32> to vector<2x4x256xf32>
    %152 = arith.mulf %150, %151 : vector<2x4x256xf32>
    %153 = arith.addf %145, %152 : vector<2x4x256xf32>
    %c15 = arith.constant 15 : index
    %c0_45 = arith.constant 0 : index
    %c0_46 = arith.constant 0 : index
    %154 = vector.load %arg3[%c15, %c0_45, %c0_46] : memref<36x4x1xf32, #tpu.memory_space<vmem>>, vector<1x4x1xf32>
    %155 = vector.shape_cast %154 : vector<1x4x1xf32> to vector<4x1xf32>
    %156 = vector.extract_strided_slice %129 {offsets = [0, 3, 0], sizes = [2, 1, 256], strides = [1, 1, 1]} : vector<2x4x256xf32> to vector<2x1x256xf32>
    %157 = vector.shape_cast %155 : vector<4x1xf32> to vector<1x4x1xf32>
    %158 = vector.broadcast %157 : vector<1x4x1xf32> to vector<2x4x256xf32>
    %159 = vector.broadcast %156 : vector<2x1x256xf32> to vector<2x4x256xf32>
    %160 = arith.mulf %158, %159 : vector<2x4x256xf32>
    %161 = arith.addf %153, %160 : vector<2x4x256xf32>
    %c16 = arith.constant 16 : index
    %c0_47 = arith.constant 0 : index
    %c0_48 = arith.constant 0 : index
    %162 = vector.load %arg3[%c16, %c0_47, %c0_48] : memref<36x4x1xf32, #tpu.memory_space<vmem>>, vector<1x4x1xf32>
    %163 = vector.shape_cast %162 : vector<1x4x1xf32> to vector<4x1xf32>
    %164 = vector.extract_strided_slice %0 {offsets = [0, 0, 0], sizes = [2, 1, 256], strides = [1, 1, 1]} : vector<2x4x256xf32> to vector<2x1x256xf32>
    %165 = vector.shape_cast %163 : vector<4x1xf32> to vector<1x4x1xf32>
    %166 = vector.broadcast %165 : vector<1x4x1xf32> to vector<2x4x256xf32>
    %167 = vector.broadcast %164 : vector<2x1x256xf32> to vector<2x4x256xf32>
    %168 = arith.mulf %166, %167 : vector<2x4x256xf32>
    %169 = arith.addf %161, %168 : vector<2x4x256xf32>
    %c17 = arith.constant 17 : index
    %c0_49 = arith.constant 0 : index
    %c0_50 = arith.constant 0 : index
    %170 = vector.load %arg3[%c17, %c0_49, %c0_50] : memref<36x4x1xf32, #tpu.memory_space<vmem>>, vector<1x4x1xf32>
    %171 = vector.shape_cast %170 : vector<1x4x1xf32> to vector<4x1xf32>
    %172 = vector.extract_strided_slice %0 {offsets = [0, 1, 0], sizes = [2, 1, 256], strides = [1, 1, 1]} : vector<2x4x256xf32> to vector<2x1x256xf32>
    %173 = vector.shape_cast %171 : vector<4x1xf32> to vector<1x4x1xf32>
    %174 = vector.broadcast %173 : vector<1x4x1xf32> to vector<2x4x256xf32>
    %175 = vector.broadcast %172 : vector<2x1x256xf32> to vector<2x4x256xf32>
    %176 = arith.mulf %174, %175 : vector<2x4x256xf32>
    %177 = arith.addf %169, %176 : vector<2x4x256xf32>
    %c18 = arith.constant 18 : index
    %c0_51 = arith.constant 0 : index
    %c0_52 = arith.constant 0 : index
    %178 = vector.load %arg3[%c18, %c0_51, %c0_52] : memref<36x4x1xf32, #tpu.memory_space<vmem>>, vector<1x4x1xf32>
    %179 = vector.shape_cast %178 : vector<1x4x1xf32> to vector<4x1xf32>
    %180 = vector.extract_strided_slice %0 {offsets = [0, 2, 0], sizes = [2, 1, 256], strides = [1, 1, 1]} : vector<2x4x256xf32> to vector<2x1x256xf32>
    %181 = vector.shape_cast %179 : vector<4x1xf32> to vector<1x4x1xf32>
    %182 = vector.broadcast %181 : vector<1x4x1xf32> to vector<2x4x256xf32>
    %183 = vector.broadcast %180 : vector<2x1x256xf32> to vector<2x4x256xf32>
    %184 = arith.mulf %182, %183 : vector<2x4x256xf32>
    %185 = arith.addf %177, %184 : vector<2x4x256xf32>
    %c19 = arith.constant 19 : index
    %c0_53 = arith.constant 0 : index
    %c0_54 = arith.constant 0 : index
    %186 = vector.load %arg3[%c19, %c0_53, %c0_54] : memref<36x4x1xf32, #tpu.memory_space<vmem>>, vector<1x4x1xf32>
    %187 = vector.shape_cast %186 : vector<1x4x1xf32> to vector<4x1xf32>
    %188 = vector.extract_strided_slice %0 {offsets = [0, 3, 0], sizes = [2, 1, 256], strides = [1, 1, 1]} : vector<2x4x256xf32> to vector<2x1x256xf32>
    %189 = vector.shape_cast %187 : vector<4x1xf32> to vector<1x4x1xf32>
    %190 = vector.broadcast %189 : vector<1x4x1xf32> to vector<2x4x256xf32>
    %191 = vector.broadcast %188 : vector<2x1x256xf32> to vector<2x4x256xf32>
    %192 = arith.mulf %190, %191 : vector<2x4x256xf32>
    %193 = arith.addf %185, %192 : vector<2x4x256xf32>
    %194 = vector.extract_strided_slice %0 {offsets = [0, 0, 1], sizes = [2, 4, 255], strides = [1, 1, 1]} : vector<2x4x256xf32> to vector<2x4x255xf32>
    %195 = vector.extract_strided_slice %0 {offsets = [0, 0, 0], sizes = [2, 4, 1], strides = [1, 1, 1]} : vector<2x4x256xf32> to vector<2x4x1xf32>
    %196 = tpu.concatenate %194, %195 in 2 : vector<2x4x255xf32>, vector<2x4x1xf32> -> vector<2x4x256xf32>
    %c5_55 = arith.constant 5 : index
    %c0_56 = arith.constant 0 : index
    %c0_57 = arith.constant 0 : index
    %197 = vector.load %arg2[%c5_55, %c0_56, %c0_57] : memref<9x1x256xf32, #tpu.memory_space<vmem>>, vector<1x1x256xf32>
    %198 = vector.shape_cast %197 : vector<1x1x256xf32> to vector<1x256xf32>
    %199 = vector.shape_cast %198 : vector<1x256xf32> to vector<1x1x256xf32>
    %200 = vector.broadcast %199 : vector<1x1x256xf32> to vector<2x4x256xf32>
    %201 = arith.mulf %196, %200 : vector<2x4x256xf32>
    %c20 = arith.constant 20 : index
    %c0_58 = arith.constant 0 : index
    %c0_59 = arith.constant 0 : index
    %202 = vector.load %arg3[%c20, %c0_58, %c0_59] : memref<36x4x1xf32, #tpu.memory_space<vmem>>, vector<1x4x1xf32>
    %203 = vector.shape_cast %202 : vector<1x4x1xf32> to vector<4x1xf32>
    %204 = vector.extract_strided_slice %201 {offsets = [0, 0, 0], sizes = [2, 1, 256], strides = [1, 1, 1]} : vector<2x4x256xf32> to vector<2x1x256xf32>
    %205 = vector.shape_cast %203 : vector<4x1xf32> to vector<1x4x1xf32>
    %206 = vector.broadcast %205 : vector<1x4x1xf32> to vector<2x4x256xf32>
    %207 = vector.broadcast %204 : vector<2x1x256xf32> to vector<2x4x256xf32>
    %208 = arith.mulf %206, %207 : vector<2x4x256xf32>
    %209 = arith.addf %193, %208 : vector<2x4x256xf32>
    %c21 = arith.constant 21 : index
    %c0_60 = arith.constant 0 : index
    %c0_61 = arith.constant 0 : index
    %210 = vector.load %arg3[%c21, %c0_60, %c0_61] : memref<36x4x1xf32, #tpu.memory_space<vmem>>, vector<1x4x1xf32>
    %211 = vector.shape_cast %210 : vector<1x4x1xf32> to vector<4x1xf32>
    %212 = vector.extract_strided_slice %201 {offsets = [0, 1, 0], sizes = [2, 1, 256], strides = [1, 1, 1]} : vector<2x4x256xf32> to vector<2x1x256xf32>
    %213 = vector.shape_cast %211 : vector<4x1xf32> to vector<1x4x1xf32>
    %214 = vector.broadcast %213 : vector<1x4x1xf32> to vector<2x4x256xf32>
    %215 = vector.broadcast %212 : vector<2x1x256xf32> to vector<2x4x256xf32>
    %216 = arith.mulf %214, %215 : vector<2x4x256xf32>
    %217 = arith.addf %209, %216 : vector<2x4x256xf32>
    %c22 = arith.constant 22 : index
    %c0_62 = arith.constant 0 : index
    %c0_63 = arith.constant 0 : index
    %218 = vector.load %arg3[%c22, %c0_62, %c0_63] : memref<36x4x1xf32, #tpu.memory_space<vmem>>, vector<1x4x1xf32>
    %219 = vector.shape_cast %218 : vector<1x4x1xf32> to vector<4x1xf32>
    %220 = vector.extract_strided_slice %201 {offsets = [0, 2, 0], sizes = [2, 1, 256], strides = [1, 1, 1]} : vector<2x4x256xf32> to vector<2x1x256xf32>
    %221 = vector.shape_cast %219 : vector<4x1xf32> to vector<1x4x1xf32>
    %222 = vector.broadcast %221 : vector<1x4x1xf32> to vector<2x4x256xf32>
    %223 = vector.broadcast %220 : vector<2x1x256xf32> to vector<2x4x256xf32>
    %224 = arith.mulf %222, %223 : vector<2x4x256xf32>
    %225 = arith.addf %217, %224 : vector<2x4x256xf32>
    %c23 = arith.constant 23 : index
    %c0_64 = arith.constant 0 : index
    %c0_65 = arith.constant 0 : index
    %226 = vector.load %arg3[%c23, %c0_64, %c0_65] : memref<36x4x1xf32, #tpu.memory_space<vmem>>, vector<1x4x1xf32>
    %227 = vector.shape_cast %226 : vector<1x4x1xf32> to vector<4x1xf32>
    %228 = vector.extract_strided_slice %201 {offsets = [0, 3, 0], sizes = [2, 1, 256], strides = [1, 1, 1]} : vector<2x4x256xf32> to vector<2x1x256xf32>
    %229 = vector.shape_cast %227 : vector<4x1xf32> to vector<1x4x1xf32>
    %230 = vector.broadcast %229 : vector<1x4x1xf32> to vector<2x4x256xf32>
    %231 = vector.broadcast %228 : vector<2x1x256xf32> to vector<2x4x256xf32>
    %232 = arith.mulf %230, %231 : vector<2x4x256xf32>
    %233 = arith.addf %225, %232 : vector<2x4x256xf32>
    %234 = vector.extract_strided_slice %0 {offsets = [0, 0, 15], sizes = [2, 4, 241], strides = [1, 1, 1]} : vector<2x4x256xf32> to vector<2x4x241xf32>
    %235 = vector.extract_strided_slice %0 {offsets = [0, 0, 0], sizes = [2, 4, 15], strides = [1, 1, 1]} : vector<2x4x256xf32> to vector<2x4x15xf32>
    %236 = tpu.concatenate %234, %235 in 2 : vector<2x4x241xf32>, vector<2x4x15xf32> -> vector<2x4x256xf32>
    %c6_66 = arith.constant 6 : index
    %c0_67 = arith.constant 0 : index
    %c0_68 = arith.constant 0 : index
    %237 = vector.load %arg2[%c6_66, %c0_67, %c0_68] : memref<9x1x256xf32, #tpu.memory_space<vmem>>, vector<1x1x256xf32>
    %238 = vector.shape_cast %237 : vector<1x1x256xf32> to vector<1x256xf32>
    %239 = vector.shape_cast %238 : vector<1x256xf32> to vector<1x1x256xf32>
    %240 = vector.broadcast %239 : vector<1x1x256xf32> to vector<2x4x256xf32>
    %241 = arith.mulf %236, %240 : vector<2x4x256xf32>
    %c24 = arith.constant 24 : index
    %c0_69 = arith.constant 0 : index
    %c0_70 = arith.constant 0 : index
    %242 = vector.load %arg3[%c24, %c0_69, %c0_70] : memref<36x4x1xf32, #tpu.memory_space<vmem>>, vector<1x4x1xf32>
    %243 = vector.shape_cast %242 : vector<1x4x1xf32> to vector<4x1xf32>
    %244 = vector.extract_strided_slice %241 {offsets = [0, 0, 0], sizes = [2, 1, 256], strides = [1, 1, 1]} : vector<2x4x256xf32> to vector<2x1x256xf32>
    %245 = vector.shape_cast %243 : vector<4x1xf32> to vector<1x4x1xf32>
    %246 = vector.broadcast %245 : vector<1x4x1xf32> to vector<2x4x256xf32>
    %247 = vector.broadcast %244 : vector<2x1x256xf32> to vector<2x4x256xf32>
    %248 = arith.mulf %246, %247 : vector<2x4x256xf32>
    %249 = arith.addf %233, %248 : vector<2x4x256xf32>
    %c25 = arith.constant 25 : index
    %c0_71 = arith.constant 0 : index
    %c0_72 = arith.constant 0 : index
    %250 = vector.load %arg3[%c25, %c0_71, %c0_72] : memref<36x4x1xf32, #tpu.memory_space<vmem>>, vector<1x4x1xf32>
    %251 = vector.shape_cast %250 : vector<1x4x1xf32> to vector<4x1xf32>
    %252 = vector.extract_strided_slice %241 {offsets = [0, 1, 0], sizes = [2, 1, 256], strides = [1, 1, 1]} : vector<2x4x256xf32> to vector<2x1x256xf32>
    %253 = vector.shape_cast %251 : vector<4x1xf32> to vector<1x4x1xf32>
    %254 = vector.broadcast %253 : vector<1x4x1xf32> to vector<2x4x256xf32>
    %255 = vector.broadcast %252 : vector<2x1x256xf32> to vector<2x4x256xf32>
    %256 = arith.mulf %254, %255 : vector<2x4x256xf32>
    %257 = arith.addf %249, %256 : vector<2x4x256xf32>
    %c26 = arith.constant 26 : index
    %c0_73 = arith.constant 0 : index
    %c0_74 = arith.constant 0 : index
    %258 = vector.load %arg3[%c26, %c0_73, %c0_74] : memref<36x4x1xf32, #tpu.memory_space<vmem>>, vector<1x4x1xf32>
    %259 = vector.shape_cast %258 : vector<1x4x1xf32> to vector<4x1xf32>
    %260 = vector.extract_strided_slice %241 {offsets = [0, 2, 0], sizes = [2, 1, 256], strides = [1, 1, 1]} : vector<2x4x256xf32> to vector<2x1x256xf32>
    %261 = vector.shape_cast %259 : vector<4x1xf32> to vector<1x4x1xf32>
    %262 = vector.broadcast %261 : vector<1x4x1xf32> to vector<2x4x256xf32>
    %263 = vector.broadcast %260 : vector<2x1x256xf32> to vector<2x4x256xf32>
    %264 = arith.mulf %262, %263 : vector<2x4x256xf32>
    %265 = arith.addf %257, %264 : vector<2x4x256xf32>
    %c27 = arith.constant 27 : index
    %c0_75 = arith.constant 0 : index
    %c0_76 = arith.constant 0 : index
    %266 = vector.load %arg3[%c27, %c0_75, %c0_76] : memref<36x4x1xf32, #tpu.memory_space<vmem>>, vector<1x4x1xf32>
    %267 = vector.shape_cast %266 : vector<1x4x1xf32> to vector<4x1xf32>
    %268 = vector.extract_strided_slice %241 {offsets = [0, 3, 0], sizes = [2, 1, 256], strides = [1, 1, 1]} : vector<2x4x256xf32> to vector<2x1x256xf32>
    %269 = vector.shape_cast %267 : vector<4x1xf32> to vector<1x4x1xf32>
    %270 = vector.broadcast %269 : vector<1x4x1xf32> to vector<2x4x256xf32>
    %271 = vector.broadcast %268 : vector<2x1x256xf32> to vector<2x4x256xf32>
    %272 = arith.mulf %270, %271 : vector<2x4x256xf32>
    %273 = arith.addf %265, %272 : vector<2x4x256xf32>
    %274 = vector.extract_strided_slice %0 {offsets = [0, 0, 16], sizes = [2, 4, 240], strides = [1, 1, 1]} : vector<2x4x256xf32> to vector<2x4x240xf32>
    %275 = vector.extract_strided_slice %0 {offsets = [0, 0, 0], sizes = [2, 4, 16], strides = [1, 1, 1]} : vector<2x4x256xf32> to vector<2x4x16xf32>
    %276 = tpu.concatenate %274, %275 in 2 : vector<2x4x240xf32>, vector<2x4x16xf32> -> vector<2x4x256xf32>
    %c7_77 = arith.constant 7 : index
    %c0_78 = arith.constant 0 : index
    %c0_79 = arith.constant 0 : index
    %277 = vector.load %arg2[%c7_77, %c0_78, %c0_79] : memref<9x1x256xf32, #tpu.memory_space<vmem>>, vector<1x1x256xf32>
    %278 = vector.shape_cast %277 : vector<1x1x256xf32> to vector<1x256xf32>
    %279 = vector.shape_cast %278 : vector<1x256xf32> to vector<1x1x256xf32>
    %280 = vector.broadcast %279 : vector<1x1x256xf32> to vector<2x4x256xf32>
    %281 = arith.mulf %276, %280 : vector<2x4x256xf32>
    %c28 = arith.constant 28 : index
    %c0_80 = arith.constant 0 : index
    %c0_81 = arith.constant 0 : index
    %282 = vector.load %arg3[%c28, %c0_80, %c0_81] : memref<36x4x1xf32, #tpu.memory_space<vmem>>, vector<1x4x1xf32>
    %283 = vector.shape_cast %282 : vector<1x4x1xf32> to vector<4x1xf32>
    %284 = vector.extract_strided_slice %281 {offsets = [0, 0, 0], sizes = [2, 1, 256], strides = [1, 1, 1]} : vector<2x4x256xf32> to vector<2x1x256xf32>
    %285 = vector.shape_cast %283 : vector<4x1xf32> to vector<1x4x1xf32>
    %286 = vector.broadcast %285 : vector<1x4x1xf32> to vector<2x4x256xf32>
    %287 = vector.broadcast %284 : vector<2x1x256xf32> to vector<2x4x256xf32>
    %288 = arith.mulf %286, %287 : vector<2x4x256xf32>
    %289 = arith.addf %273, %288 : vector<2x4x256xf32>
    %c29 = arith.constant 29 : index
    %c0_82 = arith.constant 0 : index
    %c0_83 = arith.constant 0 : index
    %290 = vector.load %arg3[%c29, %c0_82, %c0_83] : memref<36x4x1xf32, #tpu.memory_space<vmem>>, vector<1x4x1xf32>
    %291 = vector.shape_cast %290 : vector<1x4x1xf32> to vector<4x1xf32>
    %292 = vector.extract_strided_slice %281 {offsets = [0, 1, 0], sizes = [2, 1, 256], strides = [1, 1, 1]} : vector<2x4x256xf32> to vector<2x1x256xf32>
    %293 = vector.shape_cast %291 : vector<4x1xf32> to vector<1x4x1xf32>
    %294 = vector.broadcast %293 : vector<1x4x1xf32> to vector<2x4x256xf32>
    %295 = vector.broadcast %292 : vector<2x1x256xf32> to vector<2x4x256xf32>
    %296 = arith.mulf %294, %295 : vector<2x4x256xf32>
    %297 = arith.addf %289, %296 : vector<2x4x256xf32>
    %c30 = arith.constant 30 : index
    %c0_84 = arith.constant 0 : index
    %c0_85 = arith.constant 0 : index
    %298 = vector.load %arg3[%c30, %c0_84, %c0_85] : memref<36x4x1xf32, #tpu.memory_space<vmem>>, vector<1x4x1xf32>
    %299 = vector.shape_cast %298 : vector<1x4x1xf32> to vector<4x1xf32>
    %300 = vector.extract_strided_slice %281 {offsets = [0, 2, 0], sizes = [2, 1, 256], strides = [1, 1, 1]} : vector<2x4x256xf32> to vector<2x1x256xf32>
    %301 = vector.shape_cast %299 : vector<4x1xf32> to vector<1x4x1xf32>
    %302 = vector.broadcast %301 : vector<1x4x1xf32> to vector<2x4x256xf32>
    %303 = vector.broadcast %300 : vector<2x1x256xf32> to vector<2x4x256xf32>
    %304 = arith.mulf %302, %303 : vector<2x4x256xf32>
    %305 = arith.addf %297, %304 : vector<2x4x256xf32>
    %c31 = arith.constant 31 : index
    %c0_86 = arith.constant 0 : index
    %c0_87 = arith.constant 0 : index
    %306 = vector.load %arg3[%c31, %c0_86, %c0_87] : memref<36x4x1xf32, #tpu.memory_space<vmem>>, vector<1x4x1xf32>
    %307 = vector.shape_cast %306 : vector<1x4x1xf32> to vector<4x1xf32>
    %308 = vector.extract_strided_slice %281 {offsets = [0, 3, 0], sizes = [2, 1, 256], strides = [1, 1, 1]} : vector<2x4x256xf32> to vector<2x1x256xf32>
    %309 = vector.shape_cast %307 : vector<4x1xf32> to vector<1x4x1xf32>
    %310 = vector.broadcast %309 : vector<1x4x1xf32> to vector<2x4x256xf32>
    %311 = vector.broadcast %308 : vector<2x1x256xf32> to vector<2x4x256xf32>
    %312 = arith.mulf %310, %311 : vector<2x4x256xf32>
    %313 = arith.addf %305, %312 : vector<2x4x256xf32>
    %314 = vector.extract_strided_slice %0 {offsets = [0, 0, 17], sizes = [2, 4, 239], strides = [1, 1, 1]} : vector<2x4x256xf32> to vector<2x4x239xf32>
    %315 = vector.extract_strided_slice %0 {offsets = [0, 0, 0], sizes = [2, 4, 17], strides = [1, 1, 1]} : vector<2x4x256xf32> to vector<2x4x17xf32>
    %316 = tpu.concatenate %314, %315 in 2 : vector<2x4x239xf32>, vector<2x4x17xf32> -> vector<2x4x256xf32>
    %c8_88 = arith.constant 8 : index
    %c0_89 = arith.constant 0 : index
    %c0_90 = arith.constant 0 : index
    %317 = vector.load %arg2[%c8_88, %c0_89, %c0_90] : memref<9x1x256xf32, #tpu.memory_space<vmem>>, vector<1x1x256xf32>
    %318 = vector.shape_cast %317 : vector<1x1x256xf32> to vector<1x256xf32>
    %319 = vector.shape_cast %318 : vector<1x256xf32> to vector<1x1x256xf32>
    %320 = vector.broadcast %319 : vector<1x1x256xf32> to vector<2x4x256xf32>
    %321 = arith.mulf %316, %320 : vector<2x4x256xf32>
    %c32 = arith.constant 32 : index
    %c0_91 = arith.constant 0 : index
    %c0_92 = arith.constant 0 : index
    %322 = vector.load %arg3[%c32, %c0_91, %c0_92] : memref<36x4x1xf32, #tpu.memory_space<vmem>>, vector<1x4x1xf32>
    %323 = vector.shape_cast %322 : vector<1x4x1xf32> to vector<4x1xf32>
    %324 = vector.extract_strided_slice %321 {offsets = [0, 0, 0], sizes = [2, 1, 256], strides = [1, 1, 1]} : vector<2x4x256xf32> to vector<2x1x256xf32>
    %325 = vector.shape_cast %323 : vector<4x1xf32> to vector<1x4x1xf32>
    %326 = vector.broadcast %325 : vector<1x4x1xf32> to vector<2x4x256xf32>
    %327 = vector.broadcast %324 : vector<2x1x256xf32> to vector<2x4x256xf32>
    %328 = arith.mulf %326, %327 : vector<2x4x256xf32>
    %329 = arith.addf %313, %328 : vector<2x4x256xf32>
    %c33 = arith.constant 33 : index
    %c0_93 = arith.constant 0 : index
    %c0_94 = arith.constant 0 : index
    %330 = vector.load %arg3[%c33, %c0_93, %c0_94] : memref<36x4x1xf32, #tpu.memory_space<vmem>>, vector<1x4x1xf32>
    %331 = vector.shape_cast %330 : vector<1x4x1xf32> to vector<4x1xf32>
    %332 = vector.extract_strided_slice %321 {offsets = [0, 1, 0], sizes = [2, 1, 256], strides = [1, 1, 1]} : vector<2x4x256xf32> to vector<2x1x256xf32>
    %333 = vector.shape_cast %331 : vector<4x1xf32> to vector<1x4x1xf32>
    %334 = vector.broadcast %333 : vector<1x4x1xf32> to vector<2x4x256xf32>
    %335 = vector.broadcast %332 : vector<2x1x256xf32> to vector<2x4x256xf32>
    %336 = arith.mulf %334, %335 : vector<2x4x256xf32>
    %337 = arith.addf %329, %336 : vector<2x4x256xf32>
    %c34 = arith.constant 34 : index
    %c0_95 = arith.constant 0 : index
    %c0_96 = arith.constant 0 : index
    %338 = vector.load %arg3[%c34, %c0_95, %c0_96] : memref<36x4x1xf32, #tpu.memory_space<vmem>>, vector<1x4x1xf32>
    %339 = vector.shape_cast %338 : vector<1x4x1xf32> to vector<4x1xf32>
    %340 = vector.extract_strided_slice %321 {offsets = [0, 2, 0], sizes = [2, 1, 256], strides = [1, 1, 1]} : vector<2x4x256xf32> to vector<2x1x256xf32>
    %341 = vector.shape_cast %339 : vector<4x1xf32> to vector<1x4x1xf32>
    %342 = vector.broadcast %341 : vector<1x4x1xf32> to vector<2x4x256xf32>
    %343 = vector.broadcast %340 : vector<2x1x256xf32> to vector<2x4x256xf32>
    %344 = arith.mulf %342, %343 : vector<2x4x256xf32>
    %345 = arith.addf %337, %344 : vector<2x4x256xf32>
    %c35 = arith.constant 35 : index
    %c0_97 = arith.constant 0 : index
    %c0_98 = arith.constant 0 : index
    %346 = vector.load %arg3[%c35, %c0_97, %c0_98] : memref<36x4x1xf32, #tpu.memory_space<vmem>>, vector<1x4x1xf32>
    %347 = vector.shape_cast %346 : vector<1x4x1xf32> to vector<4x1xf32>
    %348 = vector.extract_strided_slice %321 {offsets = [0, 3, 0], sizes = [2, 1, 256], strides = [1, 1, 1]} : vector<2x4x256xf32> to vector<2x1x256xf32>
    %349 = vector.shape_cast %347 : vector<4x1xf32> to vector<1x4x1xf32>
    %350 = vector.broadcast %349 : vector<1x4x1xf32> to vector<2x4x256xf32>
    %351 = vector.broadcast %348 : vector<2x1x256xf32> to vector<2x4x256xf32>
    %352 = arith.mulf %350, %351 : vector<2x4x256xf32>
    %353 = arith.addf %345, %352 : vector<2x4x256xf32>
    %c0_99 = arith.constant 0 : index
    %c0_100 = arith.constant 0 : index
    %c0_101 = arith.constant 0 : index
    %354 = vector.load %arg4[%c0_99, %c0_100, %c0_101] : memref<1x4x1xf32, #tpu.memory_space<vmem>>, vector<1x4x1xf32>
    %355 = vector.broadcast %354 : vector<1x4x1xf32> to vector<2x4x256xf32>
    %356 = arith.addf %353, %355 : vector<2x4x256xf32>
    %cst_102 = arith.constant 0.000000e+00 : f32
    %357 = vector.broadcast %cst_102 : f32 to vector<2x4x256xf32>
    %358 = arith.maximumf %356, %357 : vector<2x4x256xf32>
    %cst_103 = arith.constant 0.000000e+00 : f32
    %359 = vector.broadcast %cst_103 : f32 to vector<2x4x256xf32>
    %360 = vector.extract_strided_slice %358 {offsets = [0, 0, 239], sizes = [2, 4, 17], strides = [1, 1, 1]} : vector<2x4x256xf32> to vector<2x4x17xf32>
    %361 = vector.extract_strided_slice %358 {offsets = [0, 0, 0], sizes = [2, 4, 239], strides = [1, 1, 1]} : vector<2x4x256xf32> to vector<2x4x239xf32>
    %362 = tpu.concatenate %360, %361 in 2 : vector<2x4x17xf32>, vector<2x4x239xf32> -> vector<2x4x256xf32>
    %c0_104 = arith.constant 0 : index
    %c0_105 = arith.constant 0 : index
    %c0_106 = arith.constant 0 : index
    %363 = vector.load %arg2[%c0_104, %c0_105, %c0_106] : memref<9x1x256xf32, #tpu.memory_space<vmem>>, vector<1x1x256xf32>
    %364 = vector.shape_cast %363 : vector<1x1x256xf32> to vector<1x256xf32>
    %365 = vector.shape_cast %364 : vector<1x256xf32> to vector<1x1x256xf32>
    %366 = vector.broadcast %365 : vector<1x1x256xf32> to vector<2x4x256xf32>
    %367 = arith.mulf %362, %366 : vector<2x4x256xf32>
    %c0_107 = arith.constant 0 : index
    %c0_108 = arith.constant 0 : index
    %c0_109 = arith.constant 0 : index
    %368 = vector.load %arg5[%c0_107, %c0_108, %c0_109] : memref<36x4x1xf32, #tpu.memory_space<vmem>>, vector<1x4x1xf32>
    %369 = vector.shape_cast %368 : vector<1x4x1xf32> to vector<4x1xf32>
    %370 = vector.extract_strided_slice %367 {offsets = [0, 0, 0], sizes = [2, 1, 256], strides = [1, 1, 1]} : vector<2x4x256xf32> to vector<2x1x256xf32>
    %371 = vector.shape_cast %369 : vector<4x1xf32> to vector<1x4x1xf32>
    %372 = vector.broadcast %371 : vector<1x4x1xf32> to vector<2x4x256xf32>
    %373 = vector.broadcast %370 : vector<2x1x256xf32> to vector<2x4x256xf32>
    %374 = arith.mulf %372, %373 : vector<2x4x256xf32>
    %375 = arith.addf %359, %374 : vector<2x4x256xf32>
    %c1_110 = arith.constant 1 : index
    %c0_111 = arith.constant 0 : index
    %c0_112 = arith.constant 0 : index
    %376 = vector.load %arg5[%c1_110, %c0_111, %c0_112] : memref<36x4x1xf32, #tpu.memory_space<vmem>>, vector<1x4x1xf32>
    %377 = vector.shape_cast %376 : vector<1x4x1xf32> to vector<4x1xf32>
    %378 = vector.extract_strided_slice %367 {offsets = [0, 1, 0], sizes = [2, 1, 256], strides = [1, 1, 1]} : vector<2x4x256xf32> to vector<2x1x256xf32>
    %379 = vector.shape_cast %377 : vector<4x1xf32> to vector<1x4x1xf32>
    %380 = vector.broadcast %379 : vector<1x4x1xf32> to vector<2x4x256xf32>
    %381 = vector.broadcast %378 : vector<2x1x256xf32> to vector<2x4x256xf32>
    %382 = arith.mulf %380, %381 : vector<2x4x256xf32>
    %383 = arith.addf %375, %382 : vector<2x4x256xf32>
    %c2_113 = arith.constant 2 : index
    %c0_114 = arith.constant 0 : index
    %c0_115 = arith.constant 0 : index
    %384 = vector.load %arg5[%c2_113, %c0_114, %c0_115] : memref<36x4x1xf32, #tpu.memory_space<vmem>>, vector<1x4x1xf32>
    %385 = vector.shape_cast %384 : vector<1x4x1xf32> to vector<4x1xf32>
    %386 = vector.extract_strided_slice %367 {offsets = [0, 2, 0], sizes = [2, 1, 256], strides = [1, 1, 1]} : vector<2x4x256xf32> to vector<2x1x256xf32>
    %387 = vector.shape_cast %385 : vector<4x1xf32> to vector<1x4x1xf32>
    %388 = vector.broadcast %387 : vector<1x4x1xf32> to vector<2x4x256xf32>
    %389 = vector.broadcast %386 : vector<2x1x256xf32> to vector<2x4x256xf32>
    %390 = arith.mulf %388, %389 : vector<2x4x256xf32>
    %391 = arith.addf %383, %390 : vector<2x4x256xf32>
    %c3_116 = arith.constant 3 : index
    %c0_117 = arith.constant 0 : index
    %c0_118 = arith.constant 0 : index
    %392 = vector.load %arg5[%c3_116, %c0_117, %c0_118] : memref<36x4x1xf32, #tpu.memory_space<vmem>>, vector<1x4x1xf32>
    %393 = vector.shape_cast %392 : vector<1x4x1xf32> to vector<4x1xf32>
    %394 = vector.extract_strided_slice %367 {offsets = [0, 3, 0], sizes = [2, 1, 256], strides = [1, 1, 1]} : vector<2x4x256xf32> to vector<2x1x256xf32>
    %395 = vector.shape_cast %393 : vector<4x1xf32> to vector<1x4x1xf32>
    %396 = vector.broadcast %395 : vector<1x4x1xf32> to vector<2x4x256xf32>
    %397 = vector.broadcast %394 : vector<2x1x256xf32> to vector<2x4x256xf32>
    %398 = arith.mulf %396, %397 : vector<2x4x256xf32>
    %399 = arith.addf %391, %398 : vector<2x4x256xf32>
    %400 = vector.extract_strided_slice %358 {offsets = [0, 0, 240], sizes = [2, 4, 16], strides = [1, 1, 1]} : vector<2x4x256xf32> to vector<2x4x16xf32>
    %401 = vector.extract_strided_slice %358 {offsets = [0, 0, 0], sizes = [2, 4, 240], strides = [1, 1, 1]} : vector<2x4x256xf32> to vector<2x4x240xf32>
    %402 = tpu.concatenate %400, %401 in 2 : vector<2x4x16xf32>, vector<2x4x240xf32> -> vector<2x4x256xf32>
    %c1_119 = arith.constant 1 : index
    %c0_120 = arith.constant 0 : index
    %c0_121 = arith.constant 0 : index
    %403 = vector.load %arg2[%c1_119, %c0_120, %c0_121] : memref<9x1x256xf32, #tpu.memory_space<vmem>>, vector<1x1x256xf32>
    %404 = vector.shape_cast %403 : vector<1x1x256xf32> to vector<1x256xf32>
    %405 = vector.shape_cast %404 : vector<1x256xf32> to vector<1x1x256xf32>
    %406 = vector.broadcast %405 : vector<1x1x256xf32> to vector<2x4x256xf32>
    %407 = arith.mulf %402, %406 : vector<2x4x256xf32>
    %c4_122 = arith.constant 4 : index
    %c0_123 = arith.constant 0 : index
    %c0_124 = arith.constant 0 : index
    %408 = vector.load %arg5[%c4_122, %c0_123, %c0_124] : memref<36x4x1xf32, #tpu.memory_space<vmem>>, vector<1x4x1xf32>
    %409 = vector.shape_cast %408 : vector<1x4x1xf32> to vector<4x1xf32>
    %410 = vector.extract_strided_slice %407 {offsets = [0, 0, 0], sizes = [2, 1, 256], strides = [1, 1, 1]} : vector<2x4x256xf32> to vector<2x1x256xf32>
    %411 = vector.shape_cast %409 : vector<4x1xf32> to vector<1x4x1xf32>
    %412 = vector.broadcast %411 : vector<1x4x1xf32> to vector<2x4x256xf32>
    %413 = vector.broadcast %410 : vector<2x1x256xf32> to vector<2x4x256xf32>
    %414 = arith.mulf %412, %413 : vector<2x4x256xf32>
    %415 = arith.addf %399, %414 : vector<2x4x256xf32>
    %c5_125 = arith.constant 5 : index
    %c0_126 = arith.constant 0 : index
    %c0_127 = arith.constant 0 : index
    %416 = vector.load %arg5[%c5_125, %c0_126, %c0_127] : memref<36x4x1xf32, #tpu.memory_space<vmem>>, vector<1x4x1xf32>
    %417 = vector.shape_cast %416 : vector<1x4x1xf32> to vector<4x1xf32>
    %418 = vector.extract_strided_slice %407 {offsets = [0, 1, 0], sizes = [2, 1, 256], strides = [1, 1, 1]} : vector<2x4x256xf32> to vector<2x1x256xf32>
    %419 = vector.shape_cast %417 : vector<4x1xf32> to vector<1x4x1xf32>
    %420 = vector.broadcast %419 : vector<1x4x1xf32> to vector<2x4x256xf32>
    %421 = vector.broadcast %418 : vector<2x1x256xf32> to vector<2x4x256xf32>
    %422 = arith.mulf %420, %421 : vector<2x4x256xf32>
    %423 = arith.addf %415, %422 : vector<2x4x256xf32>
    %c6_128 = arith.constant 6 : index
    %c0_129 = arith.constant 0 : index
    %c0_130 = arith.constant 0 : index
    %424 = vector.load %arg5[%c6_128, %c0_129, %c0_130] : memref<36x4x1xf32, #tpu.memory_space<vmem>>, vector<1x4x1xf32>
    %425 = vector.shape_cast %424 : vector<1x4x1xf32> to vector<4x1xf32>
    %426 = vector.extract_strided_slice %407 {offsets = [0, 2, 0], sizes = [2, 1, 256], strides = [1, 1, 1]} : vector<2x4x256xf32> to vector<2x1x256xf32>
    %427 = vector.shape_cast %425 : vector<4x1xf32> to vector<1x4x1xf32>
    %428 = vector.broadcast %427 : vector<1x4x1xf32> to vector<2x4x256xf32>
    %429 = vector.broadcast %426 : vector<2x1x256xf32> to vector<2x4x256xf32>
    %430 = arith.mulf %428, %429 : vector<2x4x256xf32>
    %431 = arith.addf %423, %430 : vector<2x4x256xf32>
    %c7_131 = arith.constant 7 : index
    %c0_132 = arith.constant 0 : index
    %c0_133 = arith.constant 0 : index
    %432 = vector.load %arg5[%c7_131, %c0_132, %c0_133] : memref<36x4x1xf32, #tpu.memory_space<vmem>>, vector<1x4x1xf32>
    %433 = vector.shape_cast %432 : vector<1x4x1xf32> to vector<4x1xf32>
    %434 = vector.extract_strided_slice %407 {offsets = [0, 3, 0], sizes = [2, 1, 256], strides = [1, 1, 1]} : vector<2x4x256xf32> to vector<2x1x256xf32>
    %435 = vector.shape_cast %433 : vector<4x1xf32> to vector<1x4x1xf32>
    %436 = vector.broadcast %435 : vector<1x4x1xf32> to vector<2x4x256xf32>
    %437 = vector.broadcast %434 : vector<2x1x256xf32> to vector<2x4x256xf32>
    %438 = arith.mulf %436, %437 : vector<2x4x256xf32>
    %439 = arith.addf %431, %438 : vector<2x4x256xf32>
    %440 = vector.extract_strided_slice %358 {offsets = [0, 0, 241], sizes = [2, 4, 15], strides = [1, 1, 1]} : vector<2x4x256xf32> to vector<2x4x15xf32>
    %441 = vector.extract_strided_slice %358 {offsets = [0, 0, 0], sizes = [2, 4, 241], strides = [1, 1, 1]} : vector<2x4x256xf32> to vector<2x4x241xf32>
    %442 = tpu.concatenate %440, %441 in 2 : vector<2x4x15xf32>, vector<2x4x241xf32> -> vector<2x4x256xf32>
    %c2_134 = arith.constant 2 : index
    %c0_135 = arith.constant 0 : index
    %c0_136 = arith.constant 0 : index
    %443 = vector.load %arg2[%c2_134, %c0_135, %c0_136] : memref<9x1x256xf32, #tpu.memory_space<vmem>>, vector<1x1x256xf32>
    %444 = vector.shape_cast %443 : vector<1x1x256xf32> to vector<1x256xf32>
    %445 = vector.shape_cast %444 : vector<1x256xf32> to vector<1x1x256xf32>
    %446 = vector.broadcast %445 : vector<1x1x256xf32> to vector<2x4x256xf32>
    %447 = arith.mulf %442, %446 : vector<2x4x256xf32>
    %c8_137 = arith.constant 8 : index
    %c0_138 = arith.constant 0 : index
    %c0_139 = arith.constant 0 : index
    %448 = vector.load %arg5[%c8_137, %c0_138, %c0_139] : memref<36x4x1xf32, #tpu.memory_space<vmem>>, vector<1x4x1xf32>
    %449 = vector.shape_cast %448 : vector<1x4x1xf32> to vector<4x1xf32>
    %450 = vector.extract_strided_slice %447 {offsets = [0, 0, 0], sizes = [2, 1, 256], strides = [1, 1, 1]} : vector<2x4x256xf32> to vector<2x1x256xf32>
    %451 = vector.shape_cast %449 : vector<4x1xf32> to vector<1x4x1xf32>
    %452 = vector.broadcast %451 : vector<1x4x1xf32> to vector<2x4x256xf32>
    %453 = vector.broadcast %450 : vector<2x1x256xf32> to vector<2x4x256xf32>
    %454 = arith.mulf %452, %453 : vector<2x4x256xf32>
    %455 = arith.addf %439, %454 : vector<2x4x256xf32>
    %c9_140 = arith.constant 9 : index
    %c0_141 = arith.constant 0 : index
    %c0_142 = arith.constant 0 : index
    %456 = vector.load %arg5[%c9_140, %c0_141, %c0_142] : memref<36x4x1xf32, #tpu.memory_space<vmem>>, vector<1x4x1xf32>
    %457 = vector.shape_cast %456 : vector<1x4x1xf32> to vector<4x1xf32>
    %458 = vector.extract_strided_slice %447 {offsets = [0, 1, 0], sizes = [2, 1, 256], strides = [1, 1, 1]} : vector<2x4x256xf32> to vector<2x1x256xf32>
    %459 = vector.shape_cast %457 : vector<4x1xf32> to vector<1x4x1xf32>
    %460 = vector.broadcast %459 : vector<1x4x1xf32> to vector<2x4x256xf32>
    %461 = vector.broadcast %458 : vector<2x1x256xf32> to vector<2x4x256xf32>
    %462 = arith.mulf %460, %461 : vector<2x4x256xf32>
    %463 = arith.addf %455, %462 : vector<2x4x256xf32>
    %c10_143 = arith.constant 10 : index
    %c0_144 = arith.constant 0 : index
    %c0_145 = arith.constant 0 : index
    %464 = vector.load %arg5[%c10_143, %c0_144, %c0_145] : memref<36x4x1xf32, #tpu.memory_space<vmem>>, vector<1x4x1xf32>
    %465 = vector.shape_cast %464 : vector<1x4x1xf32> to vector<4x1xf32>
    %466 = vector.extract_strided_slice %447 {offsets = [0, 2, 0], sizes = [2, 1, 256], strides = [1, 1, 1]} : vector<2x4x256xf32> to vector<2x1x256xf32>
    %467 = vector.shape_cast %465 : vector<4x1xf32> to vector<1x4x1xf32>
    %468 = vector.broadcast %467 : vector<1x4x1xf32> to vector<2x4x256xf32>
    %469 = vector.broadcast %466 : vector<2x1x256xf32> to vector<2x4x256xf32>
    %470 = arith.mulf %468, %469 : vector<2x4x256xf32>
    %471 = arith.addf %463, %470 : vector<2x4x256xf32>
    %c11_146 = arith.constant 11 : index
    %c0_147 = arith.constant 0 : index
    %c0_148 = arith.constant 0 : index
    %472 = vector.load %arg5[%c11_146, %c0_147, %c0_148] : memref<36x4x1xf32, #tpu.memory_space<vmem>>, vector<1x4x1xf32>
    %473 = vector.shape_cast %472 : vector<1x4x1xf32> to vector<4x1xf32>
    %474 = vector.extract_strided_slice %447 {offsets = [0, 3, 0], sizes = [2, 1, 256], strides = [1, 1, 1]} : vector<2x4x256xf32> to vector<2x1x256xf32>
    %475 = vector.shape_cast %473 : vector<4x1xf32> to vector<1x4x1xf32>
    %476 = vector.broadcast %475 : vector<1x4x1xf32> to vector<2x4x256xf32>
    %477 = vector.broadcast %474 : vector<2x1x256xf32> to vector<2x4x256xf32>
    %478 = arith.mulf %476, %477 : vector<2x4x256xf32>
    %479 = arith.addf %471, %478 : vector<2x4x256xf32>
    %480 = vector.extract_strided_slice %358 {offsets = [0, 0, 255], sizes = [2, 4, 1], strides = [1, 1, 1]} : vector<2x4x256xf32> to vector<2x4x1xf32>
    %481 = vector.extract_strided_slice %358 {offsets = [0, 0, 0], sizes = [2, 4, 255], strides = [1, 1, 1]} : vector<2x4x256xf32> to vector<2x4x255xf32>
    %482 = tpu.concatenate %480, %481 in 2 : vector<2x4x1xf32>, vector<2x4x255xf32> -> vector<2x4x256xf32>
    %c3_149 = arith.constant 3 : index
    %c0_150 = arith.constant 0 : index
    %c0_151 = arith.constant 0 : index
    %483 = vector.load %arg2[%c3_149, %c0_150, %c0_151] : memref<9x1x256xf32, #tpu.memory_space<vmem>>, vector<1x1x256xf32>
    %484 = vector.shape_cast %483 : vector<1x1x256xf32> to vector<1x256xf32>
    %485 = vector.shape_cast %484 : vector<1x256xf32> to vector<1x1x256xf32>
    %486 = vector.broadcast %485 : vector<1x1x256xf32> to vector<2x4x256xf32>
    %487 = arith.mulf %482, %486 : vector<2x4x256xf32>
    %c12_152 = arith.constant 12 : index
    %c0_153 = arith.constant 0 : index
    %c0_154 = arith.constant 0 : index
    %488 = vector.load %arg5[%c12_152, %c0_153, %c0_154] : memref<36x4x1xf32, #tpu.memory_space<vmem>>, vector<1x4x1xf32>
    %489 = vector.shape_cast %488 : vector<1x4x1xf32> to vector<4x1xf32>
    %490 = vector.extract_strided_slice %487 {offsets = [0, 0, 0], sizes = [2, 1, 256], strides = [1, 1, 1]} : vector<2x4x256xf32> to vector<2x1x256xf32>
    %491 = vector.shape_cast %489 : vector<4x1xf32> to vector<1x4x1xf32>
    %492 = vector.broadcast %491 : vector<1x4x1xf32> to vector<2x4x256xf32>
    %493 = vector.broadcast %490 : vector<2x1x256xf32> to vector<2x4x256xf32>
    %494 = arith.mulf %492, %493 : vector<2x4x256xf32>
    %495 = arith.addf %479, %494 : vector<2x4x256xf32>
    %c13_155 = arith.constant 13 : index
    %c0_156 = arith.constant 0 : index
    %c0_157 = arith.constant 0 : index
    %496 = vector.load %arg5[%c13_155, %c0_156, %c0_157] : memref<36x4x1xf32, #tpu.memory_space<vmem>>, vector<1x4x1xf32>
    %497 = vector.shape_cast %496 : vector<1x4x1xf32> to vector<4x1xf32>
    %498 = vector.extract_strided_slice %487 {offsets = [0, 1, 0], sizes = [2, 1, 256], strides = [1, 1, 1]} : vector<2x4x256xf32> to vector<2x1x256xf32>
    %499 = vector.shape_cast %497 : vector<4x1xf32> to vector<1x4x1xf32>
    %500 = vector.broadcast %499 : vector<1x4x1xf32> to vector<2x4x256xf32>
    %501 = vector.broadcast %498 : vector<2x1x256xf32> to vector<2x4x256xf32>
    %502 = arith.mulf %500, %501 : vector<2x4x256xf32>
    %503 = arith.addf %495, %502 : vector<2x4x256xf32>
    %c14_158 = arith.constant 14 : index
    %c0_159 = arith.constant 0 : index
    %c0_160 = arith.constant 0 : index
    %504 = vector.load %arg5[%c14_158, %c0_159, %c0_160] : memref<36x4x1xf32, #tpu.memory_space<vmem>>, vector<1x4x1xf32>
    %505 = vector.shape_cast %504 : vector<1x4x1xf32> to vector<4x1xf32>
    %506 = vector.extract_strided_slice %487 {offsets = [0, 2, 0], sizes = [2, 1, 256], strides = [1, 1, 1]} : vector<2x4x256xf32> to vector<2x1x256xf32>
    %507 = vector.shape_cast %505 : vector<4x1xf32> to vector<1x4x1xf32>
    %508 = vector.broadcast %507 : vector<1x4x1xf32> to vector<2x4x256xf32>
    %509 = vector.broadcast %506 : vector<2x1x256xf32> to vector<2x4x256xf32>
    %510 = arith.mulf %508, %509 : vector<2x4x256xf32>
    %511 = arith.addf %503, %510 : vector<2x4x256xf32>
    %c15_161 = arith.constant 15 : index
    %c0_162 = arith.constant 0 : index
    %c0_163 = arith.constant 0 : index
    %512 = vector.load %arg5[%c15_161, %c0_162, %c0_163] : memref<36x4x1xf32, #tpu.memory_space<vmem>>, vector<1x4x1xf32>
    %513 = vector.shape_cast %512 : vector<1x4x1xf32> to vector<4x1xf32>
    %514 = vector.extract_strided_slice %487 {offsets = [0, 3, 0], sizes = [2, 1, 256], strides = [1, 1, 1]} : vector<2x4x256xf32> to vector<2x1x256xf32>
    %515 = vector.shape_cast %513 : vector<4x1xf32> to vector<1x4x1xf32>
    %516 = vector.broadcast %515 : vector<1x4x1xf32> to vector<2x4x256xf32>
    %517 = vector.broadcast %514 : vector<2x1x256xf32> to vector<2x4x256xf32>
    %518 = arith.mulf %516, %517 : vector<2x4x256xf32>
    %519 = arith.addf %511, %518 : vector<2x4x256xf32>
    %c16_164 = arith.constant 16 : index
    %c0_165 = arith.constant 0 : index
    %c0_166 = arith.constant 0 : index
    %520 = vector.load %arg5[%c16_164, %c0_165, %c0_166] : memref<36x4x1xf32, #tpu.memory_space<vmem>>, vector<1x4x1xf32>
    %521 = vector.shape_cast %520 : vector<1x4x1xf32> to vector<4x1xf32>
    %522 = vector.extract_strided_slice %358 {offsets = [0, 0, 0], sizes = [2, 1, 256], strides = [1, 1, 1]} : vector<2x4x256xf32> to vector<2x1x256xf32>
    %523 = vector.shape_cast %521 : vector<4x1xf32> to vector<1x4x1xf32>
    %524 = vector.broadcast %523 : vector<1x4x1xf32> to vector<2x4x256xf32>
    %525 = vector.broadcast %522 : vector<2x1x256xf32> to vector<2x4x256xf32>
    %526 = arith.mulf %524, %525 : vector<2x4x256xf32>
    %527 = arith.addf %519, %526 : vector<2x4x256xf32>
    %c17_167 = arith.constant 17 : index
    %c0_168 = arith.constant 0 : index
    %c0_169 = arith.constant 0 : index
    %528 = vector.load %arg5[%c17_167, %c0_168, %c0_169] : memref<36x4x1xf32, #tpu.memory_space<vmem>>, vector<1x4x1xf32>
    %529 = vector.shape_cast %528 : vector<1x4x1xf32> to vector<4x1xf32>
    %530 = vector.extract_strided_slice %358 {offsets = [0, 1, 0], sizes = [2, 1, 256], strides = [1, 1, 1]} : vector<2x4x256xf32> to vector<2x1x256xf32>
    %531 = vector.shape_cast %529 : vector<4x1xf32> to vector<1x4x1xf32>
    %532 = vector.broadcast %531 : vector<1x4x1xf32> to vector<2x4x256xf32>
    %533 = vector.broadcast %530 : vector<2x1x256xf32> to vector<2x4x256xf32>
    %534 = arith.mulf %532, %533 : vector<2x4x256xf32>
    %535 = arith.addf %527, %534 : vector<2x4x256xf32>
    %c18_170 = arith.constant 18 : index
    %c0_171 = arith.constant 0 : index
    %c0_172 = arith.constant 0 : index
    %536 = vector.load %arg5[%c18_170, %c0_171, %c0_172] : memref<36x4x1xf32, #tpu.memory_space<vmem>>, vector<1x4x1xf32>
    %537 = vector.shape_cast %536 : vector<1x4x1xf32> to vector<4x1xf32>
    %538 = vector.extract_strided_slice %358 {offsets = [0, 2, 0], sizes = [2, 1, 256], strides = [1, 1, 1]} : vector<2x4x256xf32> to vector<2x1x256xf32>
    %539 = vector.shape_cast %537 : vector<4x1xf32> to vector<1x4x1xf32>
    %540 = vector.broadcast %539 : vector<1x4x1xf32> to vector<2x4x256xf32>
    %541 = vector.broadcast %538 : vector<2x1x256xf32> to vector<2x4x256xf32>
    %542 = arith.mulf %540, %541 : vector<2x4x256xf32>
    %543 = arith.addf %535, %542 : vector<2x4x256xf32>
    %c19_173 = arith.constant 19 : index
    %c0_174 = arith.constant 0 : index
    %c0_175 = arith.constant 0 : index
    %544 = vector.load %arg5[%c19_173, %c0_174, %c0_175] : memref<36x4x1xf32, #tpu.memory_space<vmem>>, vector<1x4x1xf32>
    %545 = vector.shape_cast %544 : vector<1x4x1xf32> to vector<4x1xf32>
    %546 = vector.extract_strided_slice %358 {offsets = [0, 3, 0], sizes = [2, 1, 256], strides = [1, 1, 1]} : vector<2x4x256xf32> to vector<2x1x256xf32>
    %547 = vector.shape_cast %545 : vector<4x1xf32> to vector<1x4x1xf32>
    %548 = vector.broadcast %547 : vector<1x4x1xf32> to vector<2x4x256xf32>
    %549 = vector.broadcast %546 : vector<2x1x256xf32> to vector<2x4x256xf32>
    %550 = arith.mulf %548, %549 : vector<2x4x256xf32>
    %551 = arith.addf %543, %550 : vector<2x4x256xf32>
    %552 = vector.extract_strided_slice %358 {offsets = [0, 0, 1], sizes = [2, 4, 255], strides = [1, 1, 1]} : vector<2x4x256xf32> to vector<2x4x255xf32>
    %553 = vector.extract_strided_slice %358 {offsets = [0, 0, 0], sizes = [2, 4, 1], strides = [1, 1, 1]} : vector<2x4x256xf32> to vector<2x4x1xf32>
    %554 = tpu.concatenate %552, %553 in 2 : vector<2x4x255xf32>, vector<2x4x1xf32> -> vector<2x4x256xf32>
    %c5_176 = arith.constant 5 : index
    %c0_177 = arith.constant 0 : index
    %c0_178 = arith.constant 0 : index
    %555 = vector.load %arg2[%c5_176, %c0_177, %c0_178] : memref<9x1x256xf32, #tpu.memory_space<vmem>>, vector<1x1x256xf32>
    %556 = vector.shape_cast %555 : vector<1x1x256xf32> to vector<1x256xf32>
    %557 = vector.shape_cast %556 : vector<1x256xf32> to vector<1x1x256xf32>
    %558 = vector.broadcast %557 : vector<1x1x256xf32> to vector<2x4x256xf32>
    %559 = arith.mulf %554, %558 : vector<2x4x256xf32>
    %c20_179 = arith.constant 20 : index
    %c0_180 = arith.constant 0 : index
    %c0_181 = arith.constant 0 : index
    %560 = vector.load %arg5[%c20_179, %c0_180, %c0_181] : memref<36x4x1xf32, #tpu.memory_space<vmem>>, vector<1x4x1xf32>
    %561 = vector.shape_cast %560 : vector<1x4x1xf32> to vector<4x1xf32>
    %562 = vector.extract_strided_slice %559 {offsets = [0, 0, 0], sizes = [2, 1, 256], strides = [1, 1, 1]} : vector<2x4x256xf32> to vector<2x1x256xf32>
    %563 = vector.shape_cast %561 : vector<4x1xf32> to vector<1x4x1xf32>
    %564 = vector.broadcast %563 : vector<1x4x1xf32> to vector<2x4x256xf32>
    %565 = vector.broadcast %562 : vector<2x1x256xf32> to vector<2x4x256xf32>
    %566 = arith.mulf %564, %565 : vector<2x4x256xf32>
    %567 = arith.addf %551, %566 : vector<2x4x256xf32>
    %c21_182 = arith.constant 21 : index
    %c0_183 = arith.constant 0 : index
    %c0_184 = arith.constant 0 : index
    %568 = vector.load %arg5[%c21_182, %c0_183, %c0_184] : memref<36x4x1xf32, #tpu.memory_space<vmem>>, vector<1x4x1xf32>
    %569 = vector.shape_cast %568 : vector<1x4x1xf32> to vector<4x1xf32>
    %570 = vector.extract_strided_slice %559 {offsets = [0, 1, 0], sizes = [2, 1, 256], strides = [1, 1, 1]} : vector<2x4x256xf32> to vector<2x1x256xf32>
    %571 = vector.shape_cast %569 : vector<4x1xf32> to vector<1x4x1xf32>
    %572 = vector.broadcast %571 : vector<1x4x1xf32> to vector<2x4x256xf32>
    %573 = vector.broadcast %570 : vector<2x1x256xf32> to vector<2x4x256xf32>
    %574 = arith.mulf %572, %573 : vector<2x4x256xf32>
    %575 = arith.addf %567, %574 : vector<2x4x256xf32>
    %c22_185 = arith.constant 22 : index
    %c0_186 = arith.constant 0 : index
    %c0_187 = arith.constant 0 : index
    %576 = vector.load %arg5[%c22_185, %c0_186, %c0_187] : memref<36x4x1xf32, #tpu.memory_space<vmem>>, vector<1x4x1xf32>
    %577 = vector.shape_cast %576 : vector<1x4x1xf32> to vector<4x1xf32>
    %578 = vector.extract_strided_slice %559 {offsets = [0, 2, 0], sizes = [2, 1, 256], strides = [1, 1, 1]} : vector<2x4x256xf32> to vector<2x1x256xf32>
    %579 = vector.shape_cast %577 : vector<4x1xf32> to vector<1x4x1xf32>
    %580 = vector.broadcast %579 : vector<1x4x1xf32> to vector<2x4x256xf32>
    %581 = vector.broadcast %578 : vector<2x1x256xf32> to vector<2x4x256xf32>
    %582 = arith.mulf %580, %581 : vector<2x4x256xf32>
    %583 = arith.addf %575, %582 : vector<2x4x256xf32>
    %c23_188 = arith.constant 23 : index
    %c0_189 = arith.constant 0 : index
    %c0_190 = arith.constant 0 : index
    %584 = vector.load %arg5[%c23_188, %c0_189, %c0_190] : memref<36x4x1xf32, #tpu.memory_space<vmem>>, vector<1x4x1xf32>
    %585 = vector.shape_cast %584 : vector<1x4x1xf32> to vector<4x1xf32>
    %586 = vector.extract_strided_slice %559 {offsets = [0, 3, 0], sizes = [2, 1, 256], strides = [1, 1, 1]} : vector<2x4x256xf32> to vector<2x1x256xf32>
    %587 = vector.shape_cast %585 : vector<4x1xf32> to vector<1x4x1xf32>
    %588 = vector.broadcast %587 : vector<1x4x1xf32> to vector<2x4x256xf32>
    %589 = vector.broadcast %586 : vector<2x1x256xf32> to vector<2x4x256xf32>
    %590 = arith.mulf %588, %589 : vector<2x4x256xf32>
    %591 = arith.addf %583, %590 : vector<2x4x256xf32>
    %592 = vector.extract_strided_slice %358 {offsets = [0, 0, 15], sizes = [2, 4, 241], strides = [1, 1, 1]} : vector<2x4x256xf32> to vector<2x4x241xf32>
    %593 = vector.extract_strided_slice %358 {offsets = [0, 0, 0], sizes = [2, 4, 15], strides = [1, 1, 1]} : vector<2x4x256xf32> to vector<2x4x15xf32>
    %594 = tpu.concatenate %592, %593 in 2 : vector<2x4x241xf32>, vector<2x4x15xf32> -> vector<2x4x256xf32>
    %c6_191 = arith.constant 6 : index
    %c0_192 = arith.constant 0 : index
    %c0_193 = arith.constant 0 : index
    %595 = vector.load %arg2[%c6_191, %c0_192, %c0_193] : memref<9x1x256xf32, #tpu.memory_space<vmem>>, vector<1x1x256xf32>
    %596 = vector.shape_cast %595 : vector<1x1x256xf32> to vector<1x256xf32>
    %597 = vector.shape_cast %596 : vector<1x256xf32> to vector<1x1x256xf32>
    %598 = vector.broadcast %597 : vector<1x1x256xf32> to vector<2x4x256xf32>
    %599 = arith.mulf %594, %598 : vector<2x4x256xf32>
    %c24_194 = arith.constant 24 : index
    %c0_195 = arith.constant 0 : index
    %c0_196 = arith.constant 0 : index
    %600 = vector.load %arg5[%c24_194, %c0_195, %c0_196] : memref<36x4x1xf32, #tpu.memory_space<vmem>>, vector<1x4x1xf32>
    %601 = vector.shape_cast %600 : vector<1x4x1xf32> to vector<4x1xf32>
    %602 = vector.extract_strided_slice %599 {offsets = [0, 0, 0], sizes = [2, 1, 256], strides = [1, 1, 1]} : vector<2x4x256xf32> to vector<2x1x256xf32>
    %603 = vector.shape_cast %601 : vector<4x1xf32> to vector<1x4x1xf32>
    %604 = vector.broadcast %603 : vector<1x4x1xf32> to vector<2x4x256xf32>
    %605 = vector.broadcast %602 : vector<2x1x256xf32> to vector<2x4x256xf32>
    %606 = arith.mulf %604, %605 : vector<2x4x256xf32>
    %607 = arith.addf %591, %606 : vector<2x4x256xf32>
    %c25_197 = arith.constant 25 : index
    %c0_198 = arith.constant 0 : index
    %c0_199 = arith.constant 0 : index
    %608 = vector.load %arg5[%c25_197, %c0_198, %c0_199] : memref<36x4x1xf32, #tpu.memory_space<vmem>>, vector<1x4x1xf32>
    %609 = vector.shape_cast %608 : vector<1x4x1xf32> to vector<4x1xf32>
    %610 = vector.extract_strided_slice %599 {offsets = [0, 1, 0], sizes = [2, 1, 256], strides = [1, 1, 1]} : vector<2x4x256xf32> to vector<2x1x256xf32>
    %611 = vector.shape_cast %609 : vector<4x1xf32> to vector<1x4x1xf32>
    %612 = vector.broadcast %611 : vector<1x4x1xf32> to vector<2x4x256xf32>
    %613 = vector.broadcast %610 : vector<2x1x256xf32> to vector<2x4x256xf32>
    %614 = arith.mulf %612, %613 : vector<2x4x256xf32>
    %615 = arith.addf %607, %614 : vector<2x4x256xf32>
    %c26_200 = arith.constant 26 : index
    %c0_201 = arith.constant 0 : index
    %c0_202 = arith.constant 0 : index
    %616 = vector.load %arg5[%c26_200, %c0_201, %c0_202] : memref<36x4x1xf32, #tpu.memory_space<vmem>>, vector<1x4x1xf32>
    %617 = vector.shape_cast %616 : vector<1x4x1xf32> to vector<4x1xf32>
    %618 = vector.extract_strided_slice %599 {offsets = [0, 2, 0], sizes = [2, 1, 256], strides = [1, 1, 1]} : vector<2x4x256xf32> to vector<2x1x256xf32>
    %619 = vector.shape_cast %617 : vector<4x1xf32> to vector<1x4x1xf32>
    %620 = vector.broadcast %619 : vector<1x4x1xf32> to vector<2x4x256xf32>
    %621 = vector.broadcast %618 : vector<2x1x256xf32> to vector<2x4x256xf32>
    %622 = arith.mulf %620, %621 : vector<2x4x256xf32>
    %623 = arith.addf %615, %622 : vector<2x4x256xf32>
    %c27_203 = arith.constant 27 : index
    %c0_204 = arith.constant 0 : index
    %c0_205 = arith.constant 0 : index
    %624 = vector.load %arg5[%c27_203, %c0_204, %c0_205] : memref<36x4x1xf32, #tpu.memory_space<vmem>>, vector<1x4x1xf32>
    %625 = vector.shape_cast %624 : vector<1x4x1xf32> to vector<4x1xf32>
    %626 = vector.extract_strided_slice %599 {offsets = [0, 3, 0], sizes = [2, 1, 256], strides = [1, 1, 1]} : vector<2x4x256xf32> to vector<2x1x256xf32>
    %627 = vector.shape_cast %625 : vector<4x1xf32> to vector<1x4x1xf32>
    %628 = vector.broadcast %627 : vector<1x4x1xf32> to vector<2x4x256xf32>
    %629 = vector.broadcast %626 : vector<2x1x256xf32> to vector<2x4x256xf32>
    %630 = arith.mulf %628, %629 : vector<2x4x256xf32>
    %631 = arith.addf %623, %630 : vector<2x4x256xf32>
    %632 = vector.extract_strided_slice %358 {offsets = [0, 0, 16], sizes = [2, 4, 240], strides = [1, 1, 1]} : vector<2x4x256xf32> to vector<2x4x240xf32>
    %633 = vector.extract_strided_slice %358 {offsets = [0, 0, 0], sizes = [2, 4, 16], strides = [1, 1, 1]} : vector<2x4x256xf32> to vector<2x4x16xf32>
    %634 = tpu.concatenate %632, %633 in 2 : vector<2x4x240xf32>, vector<2x4x16xf32> -> vector<2x4x256xf32>
    %c7_206 = arith.constant 7 : index
    %c0_207 = arith.constant 0 : index
    %c0_208 = arith.constant 0 : index
    %635 = vector.load %arg2[%c7_206, %c0_207, %c0_208] : memref<9x1x256xf32, #tpu.memory_space<vmem>>, vector<1x1x256xf32>
    %636 = vector.shape_cast %635 : vector<1x1x256xf32> to vector<1x256xf32>
    %637 = vector.shape_cast %636 : vector<1x256xf32> to vector<1x1x256xf32>
    %638 = vector.broadcast %637 : vector<1x1x256xf32> to vector<2x4x256xf32>
    %639 = arith.mulf %634, %638 : vector<2x4x256xf32>
    %c28_209 = arith.constant 28 : index
    %c0_210 = arith.constant 0 : index
    %c0_211 = arith.constant 0 : index
    %640 = vector.load %arg5[%c28_209, %c0_210, %c0_211] : memref<36x4x1xf32, #tpu.memory_space<vmem>>, vector<1x4x1xf32>
    %641 = vector.shape_cast %640 : vector<1x4x1xf32> to vector<4x1xf32>
    %642 = vector.extract_strided_slice %639 {offsets = [0, 0, 0], sizes = [2, 1, 256], strides = [1, 1, 1]} : vector<2x4x256xf32> to vector<2x1x256xf32>
    %643 = vector.shape_cast %641 : vector<4x1xf32> to vector<1x4x1xf32>
    %644 = vector.broadcast %643 : vector<1x4x1xf32> to vector<2x4x256xf32>
    %645 = vector.broadcast %642 : vector<2x1x256xf32> to vector<2x4x256xf32>
    %646 = arith.mulf %644, %645 : vector<2x4x256xf32>
    %647 = arith.addf %631, %646 : vector<2x4x256xf32>
    %c29_212 = arith.constant 29 : index
    %c0_213 = arith.constant 0 : index
    %c0_214 = arith.constant 0 : index
    %648 = vector.load %arg5[%c29_212, %c0_213, %c0_214] : memref<36x4x1xf32, #tpu.memory_space<vmem>>, vector<1x4x1xf32>
    %649 = vector.shape_cast %648 : vector<1x4x1xf32> to vector<4x1xf32>
    %650 = vector.extract_strided_slice %639 {offsets = [0, 1, 0], sizes = [2, 1, 256], strides = [1, 1, 1]} : vector<2x4x256xf32> to vector<2x1x256xf32>
    %651 = vector.shape_cast %649 : vector<4x1xf32> to vector<1x4x1xf32>
    %652 = vector.broadcast %651 : vector<1x4x1xf32> to vector<2x4x256xf32>
    %653 = vector.broadcast %650 : vector<2x1x256xf32> to vector<2x4x256xf32>
    %654 = arith.mulf %652, %653 : vector<2x4x256xf32>
    %655 = arith.addf %647, %654 : vector<2x4x256xf32>
    %c30_215 = arith.constant 30 : index
    %c0_216 = arith.constant 0 : index
    %c0_217 = arith.constant 0 : index
    %656 = vector.load %arg5[%c30_215, %c0_216, %c0_217] : memref<36x4x1xf32, #tpu.memory_space<vmem>>, vector<1x4x1xf32>
    %657 = vector.shape_cast %656 : vector<1x4x1xf32> to vector<4x1xf32>
    %658 = vector.extract_strided_slice %639 {offsets = [0, 2, 0], sizes = [2, 1, 256], strides = [1, 1, 1]} : vector<2x4x256xf32> to vector<2x1x256xf32>
    %659 = vector.shape_cast %657 : vector<4x1xf32> to vector<1x4x1xf32>
    %660 = vector.broadcast %659 : vector<1x4x1xf32> to vector<2x4x256xf32>
    %661 = vector.broadcast %658 : vector<2x1x256xf32> to vector<2x4x256xf32>
    %662 = arith.mulf %660, %661 : vector<2x4x256xf32>
    %663 = arith.addf %655, %662 : vector<2x4x256xf32>
    %c31_218 = arith.constant 31 : index
    %c0_219 = arith.constant 0 : index
    %c0_220 = arith.constant 0 : index
    %664 = vector.load %arg5[%c31_218, %c0_219, %c0_220] : memref<36x4x1xf32, #tpu.memory_space<vmem>>, vector<1x4x1xf32>
    %665 = vector.shape_cast %664 : vector<1x4x1xf32> to vector<4x1xf32>
    %666 = vector.extract_strided_slice %639 {offsets = [0, 3, 0], sizes = [2, 1, 256], strides = [1, 1, 1]} : vector<2x4x256xf32> to vector<2x1x256xf32>
    %667 = vector.shape_cast %665 : vector<4x1xf32> to vector<1x4x1xf32>
    %668 = vector.broadcast %667 : vector<1x4x1xf32> to vector<2x4x256xf32>
    %669 = vector.broadcast %666 : vector<2x1x256xf32> to vector<2x4x256xf32>
    %670 = arith.mulf %668, %669 : vector<2x4x256xf32>
    %671 = arith.addf %663, %670 : vector<2x4x256xf32>
    %672 = vector.extract_strided_slice %358 {offsets = [0, 0, 17], sizes = [2, 4, 239], strides = [1, 1, 1]} : vector<2x4x256xf32> to vector<2x4x239xf32>
    %673 = vector.extract_strided_slice %358 {offsets = [0, 0, 0], sizes = [2, 4, 17], strides = [1, 1, 1]} : vector<2x4x256xf32> to vector<2x4x17xf32>
    %674 = tpu.concatenate %672, %673 in 2 : vector<2x4x239xf32>, vector<2x4x17xf32> -> vector<2x4x256xf32>
    %c8_221 = arith.constant 8 : index
    %c0_222 = arith.constant 0 : index
    %c0_223 = arith.constant 0 : index
    %675 = vector.load %arg2[%c8_221, %c0_222, %c0_223] : memref<9x1x256xf32, #tpu.memory_space<vmem>>, vector<1x1x256xf32>
    %676 = vector.shape_cast %675 : vector<1x1x256xf32> to vector<1x256xf32>
    %677 = vector.shape_cast %676 : vector<1x256xf32> to vector<1x1x256xf32>
    %678 = vector.broadcast %677 : vector<1x1x256xf32> to vector<2x4x256xf32>
    %679 = arith.mulf %674, %678 : vector<2x4x256xf32>
    %c32_224 = arith.constant 32 : index
    %c0_225 = arith.constant 0 : index
    %c0_226 = arith.constant 0 : index
    %680 = vector.load %arg5[%c32_224, %c0_225, %c0_226] : memref<36x4x1xf32, #tpu.memory_space<vmem>>, vector<1x4x1xf32>
    %681 = vector.shape_cast %680 : vector<1x4x1xf32> to vector<4x1xf32>
    %682 = vector.extract_strided_slice %679 {offsets = [0, 0, 0], sizes = [2, 1, 256], strides = [1, 1, 1]} : vector<2x4x256xf32> to vector<2x1x256xf32>
    %683 = vector.shape_cast %681 : vector<4x1xf32> to vector<1x4x1xf32>
    %684 = vector.broadcast %683 : vector<1x4x1xf32> to vector<2x4x256xf32>
    %685 = vector.broadcast %682 : vector<2x1x256xf32> to vector<2x4x256xf32>
    %686 = arith.mulf %684, %685 : vector<2x4x256xf32>
    %687 = arith.addf %671, %686 : vector<2x4x256xf32>
    %c33_227 = arith.constant 33 : index
    %c0_228 = arith.constant 0 : index
    %c0_229 = arith.constant 0 : index
    %688 = vector.load %arg5[%c33_227, %c0_228, %c0_229] : memref<36x4x1xf32, #tpu.memory_space<vmem>>, vector<1x4x1xf32>
    %689 = vector.shape_cast %688 : vector<1x4x1xf32> to vector<4x1xf32>
    %690 = vector.extract_strided_slice %679 {offsets = [0, 1, 0], sizes = [2, 1, 256], strides = [1, 1, 1]} : vector<2x4x256xf32> to vector<2x1x256xf32>
    %691 = vector.shape_cast %689 : vector<4x1xf32> to vector<1x4x1xf32>
    %692 = vector.broadcast %691 : vector<1x4x1xf32> to vector<2x4x256xf32>
    %693 = vector.broadcast %690 : vector<2x1x256xf32> to vector<2x4x256xf32>
    %694 = arith.mulf %692, %693 : vector<2x4x256xf32>
    %695 = arith.addf %687, %694 : vector<2x4x256xf32>
    %c34_230 = arith.constant 34 : index
    %c0_231 = arith.constant 0 : index
    %c0_232 = arith.constant 0 : index
    %696 = vector.load %arg5[%c34_230, %c0_231, %c0_232] : memref<36x4x1xf32, #tpu.memory_space<vmem>>, vector<1x4x1xf32>
    %697 = vector.shape_cast %696 : vector<1x4x1xf32> to vector<4x1xf32>
    %698 = vector.extract_strided_slice %679 {offsets = [0, 2, 0], sizes = [2, 1, 256], strides = [1, 1, 1]} : vector<2x4x256xf32> to vector<2x1x256xf32>
    %699 = vector.shape_cast %697 : vector<4x1xf32> to vector<1x4x1xf32>
    %700 = vector.broadcast %699 : vector<1x4x1xf32> to vector<2x4x256xf32>
    %701 = vector.broadcast %698 : vector<2x1x256xf32> to vector<2x4x256xf32>
    %702 = arith.mulf %700, %701 : vector<2x4x256xf32>
    %703 = arith.addf %695, %702 : vector<2x4x256xf32>
    %c35_233 = arith.constant 35 : index
    %c0_234 = arith.constant 0 : index
    %c0_235 = arith.constant 0 : index
    %704 = vector.load %arg5[%c35_233, %c0_234, %c0_235] : memref<36x4x1xf32, #tpu.memory_space<vmem>>, vector<1x4x1xf32>
    %705 = vector.shape_cast %704 : vector<1x4x1xf32> to vector<4x1xf32>
    %706 = vector.extract_strided_slice %679 {offsets = [0, 3, 0], sizes = [2, 1, 256], strides = [1, 1, 1]} : vector<2x4x256xf32> to vector<2x1x256xf32>
    %707 = vector.shape_cast %705 : vector<4x1xf32> to vector<1x4x1xf32>
    %708 = vector.broadcast %707 : vector<1x4x1xf32> to vector<2x4x256xf32>
    %709 = vector.broadcast %706 : vector<2x1x256xf32> to vector<2x4x256xf32>
    %710 = arith.mulf %708, %709 : vector<2x4x256xf32>
    %711 = arith.addf %703, %710 : vector<2x4x256xf32>
    %c0_236 = arith.constant 0 : index
    %c0_237 = arith.constant 0 : index
    %c0_238 = arith.constant 0 : index
    %712 = vector.load %arg6[%c0_236, %c0_237, %c0_238] : memref<1x4x1xf32, #tpu.memory_space<vmem>>, vector<1x4x1xf32>
    %713 = vector.broadcast %712 : vector<1x4x1xf32> to vector<2x4x256xf32>
    %714 = arith.addf %711, %713 : vector<2x4x256xf32>
    %cst_239 = arith.constant 0.000000e+00 : f32
    %715 = vector.broadcast %cst_239 : f32 to vector<2x4x256xf32>
    %716 = arith.maximumf %714, %715 : vector<2x4x256xf32>
    %c0_240 = arith.constant 0 : index
    %c0_241 = arith.constant 0 : index
    %c0_242 = arith.constant 0 : index
    %717 = vector.load %arg1[%c0_240, %c0_241, %c0_242] : memref<2x4x256xf32, #tpu.memory_space<vmem>>, vector<2x4x256xf32>
    %718 = arith.addf %716, %717 : vector<2x4x256xf32>
    %c0_243 = arith.constant 0 : index
    %c0_244 = arith.constant 0 : index
    %c0_245 = arith.constant 0 : index
    %719 = vector.load %arg7[%c0_243, %c0_244, %c0_245] : memref<2x4x256xf32, #tpu.memory_space<vmem>>, vector<2x4x256xf32>
    tpu.vector_store %arg7[%c0_243, %c0_244, %c0_245], %718 {strides = array<i32>} : memref<2x4x256xf32, #tpu.memory_space<vmem>>, vector<2x4x256xf32>,
    return
  }
}

</mosaic_0001>

<llo_original>
// kernel: fetch_block_forward.1
$region0: #{fetch_block_forward.1}
  #allocation0 [shape = 'u32[]', space=smem, size = 0x4, offset = 0x4, fixed_abs, tag = 'smem constant byte address 0x4 - core index']
  #allocation1 [shape = 'u32[144,128]{1,0:T(1,128)}', space=vmem, size = 0x12000, scoped, tag = 'internal scratch']
  %s0 = inlined_call_operand.vmem [shape: f32[2,4,256], index: 0, kind: input, shape index: {}]
  %s1 = inlined_call_operand.vmem [shape: f32[2,4,256], index: 1, kind: input, shape index: {}]
  %s2 = inlined_call_operand.vmem [shape: f32[9,1,256], index: 2, kind: input, shape index: {}]
  %s3 = inlined_call_operand.vmem [shape: f32[36,4,1], index: 3, kind: input, shape index: {}]
  %s4 = inlined_call_operand.vmem [shape: f32[1,4,1], index: 4, kind: input, shape index: {}]
  %s5 = inlined_call_operand.vmem [shape: f32[36,4,1], index: 5, kind: input, shape index: {}]
  %s6 = inlined_call_operand.vmem [shape: f32[1,4,1], index: 6, kind: input, shape index: {}]
  %s7 = inlined_call_operand.vmem [shape: f32[2,4,256], index: 7, kind: output, shape index: {}]
  %s8 = sld [smem:[#allocation0]]
  $region38: #{fetch_block_forward.1} parent=0
    _
  %s10 = ssub.s32 1, %s8
  %s11 = scalar_select 0, %s10, %s8
  // Predicated region
  $region2: #{fetch_block_forward.1} parent=0 // pred_check
    _
  $region3: #{fetch_block_forward.1} parent=0 // pred_check_branch
    %13 = sbr.rel (0) target = $region5
  $region4: #{fetch_block_forward.1} parent=0 // pred_region
    _
  $region5: #{fetch_block_forward.1} parent=0 // pred_fallthru
    _
  // Predicated region
  $region6: #{fetch_block_forward.1} parent=0 // pred_check
    _
  $region7: #{fetch_block_forward.1} parent=0 // pred_check_branch
    %15 = sbr.rel (0) target = $region9
  $region8: #{fetch_block_forward.1} parent=0 // pred_region
    _
  $region9: #{fetch_block_forward.1} parent=0 // pred_fallthru
    _
  // Predicated region
  $region10: #{fetch_block_forward.1} parent=0 // pred_check
    _
  $region11: #{fetch_block_forward.1} parent=0 // pred_check_branch
    %17 = sbr.rel (0) target = $region13
  $region12: #{fetch_block_forward.1} parent=0 // pred_region
    _
  $region13: #{fetch_block_forward.1} parent=0 // pred_fallthru
    _
  // Predicated region
  $region14: #{fetch_block_forward.1} parent=0 // pred_check
    _
  $region15: #{fetch_block_forward.1} parent=0 // pred_check_branch
    %19 = sbr.rel (0) target = $region17
  $region16: #{fetch_block_forward.1} parent=0 // pred_region
    _
  $region17: #{fetch_block_forward.1} parent=0 // pred_fallthru
    _
  // Predicated region
  $region18: #{fetch_block_forward.1} parent=0 // pred_check
    _
  $region19: #{fetch_block_forward.1} parent=0 // pred_check_branch
    %21 = sbr.rel (0) target = $region21
  $region20: #{fetch_block_forward.1} parent=0 // pred_region
    _
  $region21: #{fetch_block_forward.1} parent=0 // pred_fallthru
    _
  // Predicated region
  $region22: #{fetch_block_forward.1} parent=0 // pred_check
    _
  $region23: #{fetch_block_forward.1} parent=0 // pred_check_branch
    %23 = sbr.rel (0) target = $region25
  $region24: #{fetch_block_forward.1} parent=0 // pred_region
    _
  $region25: #{fetch_block_forward.1} parent=0 // pred_fallthru
    _
  // Predicated region
  $region26: #{fetch_block_forward.1} parent=0 // pred_check
    _
  $region27: #{fetch_block_forward.1} parent=0 // pred_check_branch
    %25 = sbr.rel (0) target = $region29
  $region28: #{fetch_block_forward.1} parent=0 // pred_region
    _
  $region29: #{fetch_block_forward.1} parent=0 // pred_fallthru
    _
  %v26 = vld [vmem:[%s0] sm:$0xff]
  %v27 = vld [vmem:[%s0 + $0x8] sm:$0xff]
  %v30 = vcombine.high %v26, %v26
  %v31 = vcombine.high %v27, %v27
  %32 = vrot.lane.b32.xlu0 %v30, 17
  %v33 = vpop.permute.xlu0 %32
  %34 = vrot.lane.b32.xlu0 %v31, 17
  %v35 = vpop.permute.xlu0 %34
  %38 = vrot.lane.b32.xlu0 %v26, 17
  %v39 = vpop.permute.xlu0 %38
  %40 = vrot.lane.b32.xlu0 %v27, 17
  %v41 = vpop.permute.xlu0 %40
  %vm42 = vcmask 138240
  %v43 = vsel %vm42, %v39, %v33
  %v44 = vsel %vm42, %v41, %v35
  %v49 = vsel %vm42, %v33, %v39
  %v50 = vsel %vm42, %v35, %v41
  %v51 = vld [vmem:[%s2] sm:$0x3]
  %v53 = vlaneseq
  %v54 = vshrl.u32 %v53, 7
  %v55 = vsub.s32 0, %v54
  %v56 = vrot.slane %v51, %v55
  %v57 = vlaneseq
  %v58 = vshrl.u32 %v57, 7
  %v59 = vsub.s32 1, %v58
  %v60 = vrot.slane %v51, %v59
  %v63 = vmul.f32 %v49, %v56
  %v64 = vmul.f32 %v43, %v60
  %v65 = vmul.f32 %v50, %v56
  %v66 = vmul.f32 %v44, %v60
  %v67 = vld [vmem:[%s3] sm:$0xf]
  %69 = vset.pattern.permute.xlu0 0
  %70 = vperm.xlu0 %69, %v67
  %v71 = vpop.permute.xlu0 %70
  %v73 = vlaneseq
  %v74 = vshrl.u32 %v73, 7
  %v75 = vsub.s32 0, %v74
  %v76 = vrot.slane %v63, %v75
  %v77 = vlaneseq
  %v78 = vshrl.u32 %v77, 7
  %v79 = vsub.s32 0, %v78
  %v80 = vrot.slane %v64, %v79
  %v81 = vlaneseq
  %v82 = vshrl.u32 %v81, 7
  %v83 = vsub.s32 0, %v82
  %v84 = vrot.slane %v65, %v83
  %v85 = vlaneseq
  %v86 = vshrl.u32 %v85, 7
  %v87 = vsub.s32 0, %v86
  %v88 = vrot.slane %v66, %v87
  %v89 = vmul.f32 %v71, %v76
  %v90 = vmul.f32 %v71, %v80
  %v91 = vmul.f32 %v71, %v84
  %v92 = vmul.f32 %v71, %v88
  %v93 = vadd.f32 %v89, 0.0
  %v94 = vadd.f32 %v90, 0.0
  %v95 = vadd.f32 %v91, 0.0
  %v96 = vadd.f32 %v92, 0.0
  %s97 = scalar_lea.vmem %s3, 4
  %v98 = vld [vmem:[%s97] sm:$0xf]
  %100 = vset.pattern.permute.xlu0 0
  %101 = vperm.xlu0 %100, %v98
  %v102 = vpop.permute.xlu0 %101
  %v104 = vlaneseq
  %v105 = vshrl.u32 %v104, 7
  %v106 = vsub.s32 1, %v105
  %v107 = vrot.slane %v63, %v106
  %v108 = vlaneseq
  %v109 = vshrl.u32 %v108, 7
  %v110 = vsub.s32 1, %v109
  %v111 = vrot.slane %v64, %v110
  %v112 = vlaneseq
  %v113 = vshrl.u32 %v112, 7
  %v114 = vsub.s32 1, %v113
  %v115 = vrot.slane %v65, %v114
  %v116 = vlaneseq
  %v117 = vshrl.u32 %v116, 7
  %v118 = vsub.s32 1, %v117
  %v119 = vrot.slane %v66, %v118
  %v120 = vmul.f32 %v102, %v107
  %v121 = vmul.f32 %v102, %v111
  %v122 = vmul.f32 %v102, %v115
  %v123 = vmul.f32 %v102, %v119
  %v124 = vadd.f32 %v93, %v120
  %v125 = vadd.f32 %v94, %v121
  %v126 = vadd.f32 %v95, %v122
  %v127 = vadd.f32 %v96, %v123
  %s128 = scalar_lea.vmem %s3, 8
  %v129 = vld [vmem:[%s128] sm:$0xf]
  %131 = vset.pattern.permute.xlu0 0
  %132 = vperm.xlu0 %131, %v129
  %v133 = vpop.permute.xlu0 %132
  %v135 = vlaneseq
  %v136 = vshrl.u32 %v135, 7
  %v137 = vsub.s32 2, %v136
  %v138 = vrot.slane %v63, %v137
  %v139 = vlaneseq
  %v140 = vshrl.u32 %v139, 7
  %v141 = vsub.s32 2, %v140
  %v142 = vrot.slane %v64, %v141
  %v143 = vlaneseq
  %v144 = vshrl.u32 %v143, 7
  %v145 = vsub.s32 2, %v144
  %v146 = vrot.slane %v65, %v145
  %v147 = vlaneseq
  %v148 = vshrl.u32 %v147, 7
  %v149 = vsub.s32 2, %v148
  %v150 = vrot.slane %v66, %v149
  %v151 = vmul.f32 %v133, %v138
  %v152 = vmul.f32 %v133, %v142
  %v153 = vmul.f32 %v133, %v146
  %v154 = vmul.f32 %v133, %v150
  %v155 = vadd.f32 %v124, %v151
  %v156 = vadd.f32 %v125, %v152
  %v157 = vadd.f32 %v126, %v153
  %v158 = vadd.f32 %v127, %v154
  %s159 = scalar_lea.vmem %s3, 12
  %v160 = vld [vmem:[%s159] sm:$0xf]
  %162 = vset.pattern.permute.xlu0 0
  %163 = vperm.xlu0 %162, %v160
  %v164 = vpop.permute.xlu0 %163
  %v166 = vlaneseq
  %v167 = vshrl.u32 %v166, 7
  %v168 = vsub.s32 3, %v167
  %v169 = vrot.slane %v63, %v168
  %v170 = vlaneseq
  %v171 = vshrl.u32 %v170, 7
  %v172 = vsub.s32 3, %v171
  %v173 = vrot.slane %v64, %v172
  %v174 = vlaneseq
  %v175 = vshrl.u32 %v174, 7
  %v176 = vsub.s32 3, %v175
  %v177 = vrot.slane %v65, %v176
  %v178 = vlaneseq
  %v179 = vshrl.u32 %v178, 7
  %v180 = vsub.s32 3, %v179
  %v181 = vrot.slane %v66, %v180
  %v182 = vmul.f32 %v164, %v169
  %v183 = vmul.f32 %v164, %v173
  %v184 = vmul.f32 %v164, %v177
  %v185 = vmul.f32 %v164, %v181
  %v186 = vadd.f32 %v155, %v182
  %v187 = vadd.f32 %v156, %v183
  %v188 = vadd.f32 %v157, %v184
  %v189 = vadd.f32 %v158, %v185
  %190 = vrot.lane.b32.xlu0 %v30, 16
  %v191 = vpop.permute.xlu0 %190
  %192 = vrot.lane.b32.xlu0 %v31, 16
  %v193 = vpop.permute.xlu0 %192
  %196 = vrot.lane.b32.xlu0 %v26, 16
  %v197 = vpop.permute.xlu0 %196
  %198 = vrot.lane.b32.xlu0 %v27, 16
  %v199 = vpop.permute.xlu0 %198
  %vm200 = vcmask 130048
  %v201 = vsel %vm200, %v197, %v191
  %v202 = vsel %vm200, %v199, %v193
  %v207 = vsel %vm200, %v191, %v197
  %v208 = vsel %vm200, %v193, %v199
  %s209 = scalar_lea.vmem %s2, 2
  %v210 = vld [vmem:[%s209] sm:$0x3]
  %v212 = vlaneseq
  %v213 = vshrl.u32 %v212, 7
  %v214 = vsub.s32 0, %v213
  %v215 = vrot.slane %v210, %v214
  %v216 = vlaneseq
  %v217 = vshrl.u32 %v216, 7
  %v218 = vsub.s32 1, %v217
  %v219 = vrot.slane %v210, %v218
  %v222 = vmul.f32 %v207, %v215
  %v223 = vmul.f32 %v201, %v219
  %v224 = vmul.f32 %v208, %v215
  %v225 = vmul.f32 %v202, %v219
  %s226 = scalar_lea.vmem %s3, 16
  %v227 = vld [vmem:[%s226] sm:$0xf]
  %229 = vset.pattern.permute.xlu0 0
  %230 = vperm.xlu0 %229, %v227
  %v231 = vpop.permute.xlu0 %230
  %v233 = vlaneseq
  %v234 = vshrl.u32 %v233, 7
  %v235 = vsub.s32 0, %v234
  %v236 = vrot.slane %v222, %v235
  %v237 = vlaneseq
  %v238 = vshrl.u32 %v237, 7
  %v239 = vsub.s32 0, %v238
  %v240 = vrot.slane %v223, %v239
  %v241 = vlaneseq
  %v242 = vshrl.u32 %v241, 7
  %v243 = vsub.s32 0, %v242
  %v244 = vrot.slane %v224, %v243
  %v245 = vlaneseq
  %v246 = vshrl.u32 %v245, 7
  %v247 = vsub.s32 0, %v246
  %v248 = vrot.slane %v225, %v247
  %v249 = vmul.f32 %v231, %v236
  %v250 = vmul.f32 %v231, %v240
  %v251 = vmul.f32 %v231, %v244
  %v252 = vmul.f32 %v231, %v248
  %v253 = vadd.f32 %v186, %v249
  %v254 = vadd.f32 %v187, %v250
  %v255 = vadd.f32 %v188, %v251
  %v256 = vadd.f32 %v189, %v252
  %s257 = scalar_lea.vmem %s3, 20
  %v258 = vld [vmem:[%s257] sm:$0xf]
  %260 = vset.pattern.permute.xlu0 0
  %261 = vperm.xlu0 %260, %v258
  %v262 = vpop.permute.xlu0 %261
  %v264 = vlaneseq
  %v265 = vshrl.u32 %v264, 7
  %v266 = vsub.s32 1, %v265
  %v267 = vrot.slane %v222, %v266
  %v268 = vlaneseq
  %v269 = vshrl.u32 %v268, 7
  %v270 = vsub.s32 1, %v269
  %v271 = vrot.slane %v223, %v270
  %v272 = vlaneseq
  %v273 = vshrl.u32 %v272, 7
  %v274 = vsub.s32 1, %v273
  %v275 = vrot.slane %v224, %v274
  %v276 = vlaneseq
  %v277 = vshrl.u32 %v276, 7
  %v278 = vsub.s32 1, %v277
  %v279 = vrot.slane %v225, %v278
  %v280 = vmul.f32 %v262, %v267
  %v281 = vmul.f32 %v262, %v271
  %v282 = vmul.f32 %v262, %v275
  %v283 = vmul.f32 %v262, %v279
  %v284 = vadd.f32 %v253, %v280
  %v285 = vadd.f32 %v254, %v281
  %v286 = vadd.f32 %v255, %v282
  %v287 = vadd.f32 %v256, %v283
  %s288 = scalar_lea.vmem %s3, 24
  %v289 = vld [vmem:[%s288] sm:$0xf]
  %291 = vset.pattern.permute.xlu0 0
  %292 = vperm.xlu0 %291, %v289
  %v293 = vpop.permute.xlu0 %292
  %v295 = vlaneseq
  %v296 = vshrl.u32 %v295, 7
  %v297 = vsub.s32 2, %v296
  %v298 = vrot.slane %v222, %v297
  %v299 = vlaneseq
  %v300 = vshrl.u32 %v299, 7
  %v301 = vsub.s32 2, %v300
  %v302 = vrot.slane %v223, %v301
  %v303 = vlaneseq
  %v304 = vshrl.u32 %v303, 7
  %v305 = vsub.s32 2, %v304
  %v306 = vrot.slane %v224, %v305
  %v307 = vlaneseq
  %v308 = vshrl.u32 %v307, 7
  %v309 = vsub.s32 2, %v308
  %v310 = vrot.slane %v225, %v309
  %v311 = vmul.f32 %v293, %v298
  %v312 = vmul.f32 %v293, %v302
  %v313 = vmul.f32 %v293, %v306
  %v314 = vmul.f32 %v293, %v310
  %v315 = vadd.f32 %v284, %v311
  %v316 = vadd.f32 %v285, %v312
  %v317 = vadd.f32 %v286, %v313
  %v318 = vadd.f32 %v287, %v314
  %s319 = scalar_lea.vmem %s3, 28
  %v320 = vld [vmem:[%s319] sm:$0xf]
  %322 = vset.pattern.permute.xlu0 0
  %323 = vperm.xlu0 %322, %v320
  %v324 = vpop.permute.xlu0 %323
  %v326 = vlaneseq
  %v327 = vshrl.u32 %v326, 7
  %v328 = vsub.s32 3, %v327
  %v329 = vrot.slane %v222, %v328
  %v330 = vlaneseq
  %v331 = vshrl.u32 %v330, 7
  %v332 = vsub.s32 3, %v331
  %v333 = vrot.slane %v223, %v332
  %v334 = vlaneseq
  %v335 = vshrl.u32 %v334, 7
  %v336 = vsub.s32 3, %v335
  %v337 = vrot.slane %v224, %v336
  %v338 = vlaneseq
  %v339 = vshrl.u32 %v338, 7
  %v340 = vsub.s32 3, %v339
  %v341 = vrot.slane %v225, %v340
  %v342 = vmul.f32 %v324, %v329
  %v343 = vmul.f32 %v324, %v333
  %v344 = vmul.f32 %v324, %v337
  %v345 = vmul.f32 %v324, %v341
  %v346 = vadd.f32 %v315, %v342
  %v347 = vadd.f32 %v316, %v343
  %v348 = vadd.f32 %v317, %v344
  %v349 = vadd.f32 %v318, %v345
  %350 = vrot.lane.b32.xlu0 %v30, 15
  %v351 = vpop.permute.xlu0 %350
  %352 = vrot.lane.b32.xlu0 %v31, 15
  %v353 = vpop.permute.xlu0 %352
  %356 = vrot.lane.b32.xlu0 %v26, 15
  %v357 = vpop.permute.xlu0 %356
  %358 = vrot.lane.b32.xlu0 %v27, 15
  %v359 = vpop.permute.xlu0 %358
  %vm360 = vcmask 121856
  %v361 = vsel %vm360, %v357, %v351
  %v362 = vsel %vm360, %v359, %v353
  %v367 = vsel %vm360, %v351, %v357
  %v368 = vsel %vm360, %v353, %v359
  %s369 = scalar_lea.vmem %s2, 4
  %v370 = vld [vmem:[%s369] sm:$0x3]
  %v372 = vlaneseq
  %v373 = vshrl.u32 %v372, 7
  %v374 = vsub.s32 0, %v373
  %v375 = vrot.slane %v370, %v374
  %v376 = vlaneseq
  %v377 = vshrl.u32 %v376, 7
  %v378 = vsub.s32 1, %v377
  %v379 = vrot.slane %v370, %v378
  %v382 = vmul.f32 %v367, %v375
  %v383 = vmul.f32 %v361, %v379
  %v384 = vmul.f32 %v368, %v375
  %v385 = vmul.f32 %v362, %v379
  %s386 = scalar_lea.vmem %s3, 32
  %v387 = vld [vmem:[%s386] sm:$0xf]
  %389 = vset.pattern.permute.xlu0 0
  %390 = vperm.xlu0 %389, %v387
  %v391 = vpop.permute.xlu0 %390
  %v393 = vlaneseq
  %v394 = vshrl.u32 %v393, 7
  %v395 = vsub.s32 0, %v394
  %v396 = vrot.slane %v382, %v395
  %v397 = vlaneseq
  %v398 = vshrl.u32 %v397, 7
  %v399 = vsub.s32 0, %v398
  %v400 = vrot.slane %v383, %v399
  %v401 = vlaneseq
  %v402 = vshrl.u32 %v401, 7
  %v403 = vsub.s32 0, %v402
  %v404 = vrot.slane %v384, %v403
  %v405 = vlaneseq
  %v406 = vshrl.u32 %v405, 7
  %v407 = vsub.s32 0, %v406
  %v408 = vrot.slane %v385, %v407
  %v409 = vmul.f32 %v391, %v396
  %v410 = vmul.f32 %v391, %v400
  %v411 = vmul.f32 %v391, %v404
  %v412 = vmul.f32 %v391, %v408
  %v413 = vadd.f32 %v346, %v409
  %v414 = vadd.f32 %v347, %v410
  %v415 = vadd.f32 %v348, %v411
  %v416 = vadd.f32 %v349, %v412
  %s417 = scalar_lea.vmem %s3, 36
  %v418 = vld [vmem:[%s417] sm:$0xf]
  %420 = vset.pattern.permute.xlu0 0
  %421 = vperm.xlu0 %420, %v418
  %v422 = vpop.permute.xlu0 %421
  %v424 = vlaneseq
  %v425 = vshrl.u32 %v424, 7
  %v426 = vsub.s32 1, %v425
  %v427 = vrot.slane %v382, %v426
  %v428 = vlaneseq
  %v429 = vshrl.u32 %v428, 7
  %v430 = vsub.s32 1, %v429
  %v431 = vrot.slane %v383, %v430
  %v432 = vlaneseq
  %v433 = vshrl.u32 %v432, 7
  %v434 = vsub.s32 1, %v433
  %v435 = vrot.slane %v384, %v434
  %v436 = vlaneseq
  %v437 = vshrl.u32 %v436, 7
  %v438 = vsub.s32 1, %v437
  %v439 = vrot.slane %v385, %v438
  %v440 = vmul.f32 %v422, %v427
  %v441 = vmul.f32 %v422, %v431
  %v442 = vmul.f32 %v422, %v435
  %v443 = vmul.f32 %v422, %v439
  %v444 = vadd.f32 %v413, %v440
  %v445 = vadd.f32 %v414, %v441
  %v446 = vadd.f32 %v415, %v442
  %v447 = vadd.f32 %v416, %v443
  %s448 = scalar_lea.vmem %s3, 40
  %v449 = vld [vmem:[%s448] sm:$0xf]
  %451 = vset.pattern.permute.xlu0 0
  %452 = vperm.xlu0 %451, %v449
  %v453 = vpop.permute.xlu0 %452
  %v455 = vlaneseq
  %v456 = vshrl.u32 %v455, 7
  %v457 = vsub.s32 2, %v456
  %v458 = vrot.slane %v382, %v457
  %v459 = vlaneseq
  %v460 = vshrl.u32 %v459, 7
  %v461 = vsub.s32 2, %v460
  %v462 = vrot.slane %v383, %v461
  %v463 = vlaneseq
  %v464 = vshrl.u32 %v463, 7
  %v465 = vsub.s32 2, %v464
  %v466 = vrot.slane %v384, %v465
  %v467 = vlaneseq
  %v468 = vshrl.u32 %v467, 7
  %v469 = vsub.s32 2, %v468
  %v470 = vrot.slane %v385, %v469
  %v471 = vmul.f32 %v453, %v458
  %v472 = vmul.f32 %v453, %v462
  %v473 = vmul.f32 %v453, %v466
  %v474 = vmul.f32 %v453, %v470
  %v475 = vadd.f32 %v444, %v471
  %v476 = vadd.f32 %v445, %v472
  %v477 = vadd.f32 %v446, %v473
  %v478 = vadd.f32 %v447, %v474
  %s479 = scalar_lea.vmem %s3, 44
  %v480 = vld [vmem:[%s479] sm:$0xf]
  %482 = vset.pattern.permute.xlu0 0
  %483 = vperm.xlu0 %482, %v480
  %v484 = vpop.permute.xlu0 %483
  %v486 = vlaneseq
  %v487 = vshrl.u32 %v486, 7
  %v488 = vsub.s32 3, %v487
  %v489 = vrot.slane %v382, %v488
  %v490 = vlaneseq
  %v491 = vshrl.u32 %v490, 7
  %v492 = vsub.s32 3, %v491
  %v493 = vrot.slane %v383, %v492
  %v494 = vlaneseq
  %v495 = vshrl.u32 %v494, 7
  %v496 = vsub.s32 3, %v495
  %v497 = vrot.slane %v384, %v496
  %v498 = vlaneseq
  %v499 = vshrl.u32 %v498, 7
  %v500 = vsub.s32 3, %v499
  %v501 = vrot.slane %v385, %v500
  %v502 = vmul.f32 %v484, %v489
  %v503 = vmul.f32 %v484, %v493
  %v504 = vmul.f32 %v484, %v497
  %v505 = vmul.f32 %v484, %v501
  %v506 = vadd.f32 %v475, %v502
  %v507 = vadd.f32 %v476, %v503
  %v508 = vadd.f32 %v477, %v504
  %v509 = vadd.f32 %v478, %v505
  %510 = vrot.lane.b32.xlu0 %v30, 1
  %v511 = vpop.permute.xlu0 %510
  %512 = vrot.lane.b32.xlu0 %v31, 1
  %v513 = vpop.permute.xlu0 %512
  %516 = vrot.lane.b32.xlu0 %v26, 1
  %v517 = vpop.permute.xlu0 %516
  %518 = vrot.lane.b32.xlu0 %v27, 1
  %v519 = vpop.permute.xlu0 %518
  %vm520 = vcmask 7168
  %v521 = vsel %vm520, %v517, %v511
  %v522 = vsel %vm520, %v519, %v513
  %v527 = vsel %vm520, %v511, %v517
  %v528 = vsel %vm520, %v513, %v519
  %s529 = scalar_lea.vmem %s2, 6
  %v530 = vld [vmem:[%s529] sm:$0x3]
  %v532 = vlaneseq
  %v533 = vshrl.u32 %v532, 7
  %v534 = vsub.s32 0, %v533
  %v535 = vrot.slane %v530, %v534
  %v536 = vlaneseq
  %v537 = vshrl.u32 %v536, 7
  %v538 = vsub.s32 1, %v537
  %v539 = vrot.slane %v530, %v538
  %v542 = vmul.f32 %v527, %v535
  %v543 = vmul.f32 %v521, %v539
  %v544 = vmul.f32 %v528, %v535
  %v545 = vmul.f32 %v522, %v539
  %s546 = scalar_lea.vmem %s3, 48
  %v547 = vld [vmem:[%s546] sm:$0xf]
  %549 = vset.pattern.permute.xlu0 0
  %550 = vperm.xlu0 %549, %v547
  %v551 = vpop.permute.xlu0 %550
  %v553 = vlaneseq
  %v554 = vshrl.u32 %v553, 7
  %v555 = vsub.s32 0, %v554
  %v556 = vrot.slane %v542, %v555
  %v557 = vlaneseq
  %v558 = vshrl.u32 %v557, 7
  %v559 = vsub.s32 0, %v558
  %v560 = vrot.slane %v543, %v559
  %v561 = vlaneseq
  %v562 = vshrl.u32 %v561, 7
  %v563 = vsub.s32 0, %v562
  %v564 = vrot.slane %v544, %v563
  %v565 = vlaneseq
  %v566 = vshrl.u32 %v565, 7
  %v567 = vsub.s32 0, %v566
  %v568 = vrot.slane %v545, %v567
  %v569 = vmul.f32 %v551, %v556
  %v570 = vmul.f32 %v551, %v560
  %v571 = vmul.f32 %v551, %v564
  %v572 = vmul.f32 %v551, %v568
  %v573 = vadd.f32 %v506, %v569
  %v574 = vadd.f32 %v507, %v570
  %v575 = vadd.f32 %v508, %v571
  %v576 = vadd.f32 %v509, %v572
  %s577 = scalar_lea.vmem %s3, 52
  %v578 = vld [vmem:[%s577] sm:$0xf]
  %580 = vset.pattern.permute.xlu0 0
  %581 = vperm.xlu0 %580, %v578
  %v582 = vpop.permute.xlu0 %581
  %v584 = vlaneseq
  %v585 = vshrl.u32 %v584, 7
  %v586 = vsub.s32 1, %v585
  %v587 = vrot.slane %v542, %v586
  %v588 = vlaneseq
  %v589 = vshrl.u32 %v588, 7
  %v590 = vsub.s32 1, %v589
  %v591 = vrot.slane %v543, %v590
  %v592 = vlaneseq
  %v593 = vshrl.u32 %v592, 7
  %v594 = vsub.s32 1, %v593
  %v595 = vrot.slane %v544, %v594
  %v596 = vlaneseq
  %v597 = vshrl.u32 %v596, 7
  %v598 = vsub.s32 1, %v597
  %v599 = vrot.slane %v545, %v598
  %v600 = vmul.f32 %v582, %v587
  %v601 = vmul.f32 %v582, %v591
  %v602 = vmul.f32 %v582, %v595
  %v603 = vmul.f32 %v582, %v599
  %v604 = vadd.f32 %v573, %v600
  %v605 = vadd.f32 %v574, %v601
  %v606 = vadd.f32 %v575, %v602
  %v607 = vadd.f32 %v576, %v603
  %s608 = scalar_lea.vmem %s3, 56
  %v609 = vld [vmem:[%s608] sm:$0xf]
  %611 = vset.pattern.permute.xlu0 0
  %612 = vperm.xlu0 %611, %v609
  %v613 = vpop.permute.xlu0 %612
  %v615 = vlaneseq
  %v616 = vshrl.u32 %v615, 7
  %v617 = vsub.s32 2, %v616
  %v618 = vrot.slane %v542, %v617
  %v619 = vlaneseq
  %v620 = vshrl.u32 %v619, 7
  %v621 = vsub.s32 2, %v620
  %v622 = vrot.slane %v543, %v621
  %v623 = vlaneseq
  %v624 = vshrl.u32 %v623, 7
  %v625 = vsub.s32 2, %v624
  %v626 = vrot.slane %v544, %v625
  %v627 = vlaneseq
  %v628 = vshrl.u32 %v627, 7
  %v629 = vsub.s32 2, %v628
  %v630 = vrot.slane %v545, %v629
  %v631 = vmul.f32 %v613, %v618
  %v632 = vmul.f32 %v613, %v622
  %v633 = vmul.f32 %v613, %v626
  %v634 = vmul.f32 %v613, %v630
  %v635 = vadd.f32 %v604, %v631
  %v636 = vadd.f32 %v605, %v632
  %v637 = vadd.f32 %v606, %v633
  %v638 = vadd.f32 %v607, %v634
  %s639 = scalar_lea.vmem %s3, 60
  %v640 = vld [vmem:[%s639] sm:$0xf]
  %642 = vset.pattern.permute.xlu0 0
  %643 = vperm.xlu0 %642, %v640
  %v644 = vpop.permute.xlu0 %643
  %v646 = vlaneseq
  %v647 = vshrl.u32 %v646, 7
  %v648 = vsub.s32 3, %v647
  %v649 = vrot.slane %v542, %v648
  %v650 = vlaneseq
  %v651 = vshrl.u32 %v650, 7
  %v652 = vsub.s32 3, %v651
  %v653 = vrot.slane %v543, %v652
  %v654 = vlaneseq
  %v655 = vshrl.u32 %v654, 7
  %v656 = vsub.s32 3, %v655
  %v657 = vrot.slane %v544, %v656
  %v658 = vlaneseq
  %v659 = vshrl.u32 %v658, 7
  %v660 = vsub.s32 3, %v659
  %v661 = vrot.slane %v545, %v660
  %v662 = vmul.f32 %v644, %v649
  %v663 = vmul.f32 %v644, %v653
  %v664 = vmul.f32 %v644, %v657
  %v665 = vmul.f32 %v644, %v661
  %v666 = vadd.f32 %v635, %v662
  %v667 = vadd.f32 %v636, %v663
  %v668 = vadd.f32 %v637, %v664
  %v669 = vadd.f32 %v638, %v665
  %s670 = scalar_lea.vmem %s3, 64
  %v671 = vld [vmem:[%s670] sm:$0xf]
  %673 = vset.pattern.permute.xlu0 0
  %674 = vperm.xlu0 %673, %v671
  %v675 = vpop.permute.xlu0 %674
  %v677 = vlaneseq
  %v678 = vshrl.u32 %v677, 7
  %v679 = vsub.s32 0, %v678
  %v680 = vrot.slane %v26, %v679
  %v681 = vlaneseq
  %v682 = vshrl.u32 %v681, 7
  %v683 = vsub.s32 4, %v682
  %v684 = vrot.slane %v26, %v683
  %v685 = vlaneseq
  %v686 = vshrl.u32 %v685, 7
  %v687 = vsub.s32 0, %v686
  %v688 = vrot.slane %v27, %v687
  %v689 = vlaneseq
  %v690 = vshrl.u32 %v689, 7
  %v691 = vsub.s32 4, %v690
  %v692 = vrot.slane %v27, %v691
  %v697 = vlaneseq
  %v698 = vshrl.u32 %v697, 7
  %v699 = vsub.s32 0, %v698
  %v700 = vrot.slane %v680, %v699
  %v701 = vlaneseq
  %v702 = vshrl.u32 %v701, 7
  %v703 = vsub.s32 0, %v702
  %v704 = vrot.slane %v684, %v703
  %v705 = vlaneseq
  %v706 = vshrl.u32 %v705, 7
  %v707 = vsub.s32 0, %v706
  %v708 = vrot.slane %v688, %v707
  %v709 = vlaneseq
  %v710 = vshrl.u32 %v709, 7
  %v711 = vsub.s32 0, %v710
  %v712 = vrot.slane %v692, %v711
  %v713 = vmul.f32 %v675, %v700
  %v714 = vmul.f32 %v675, %v704
  %v715 = vmul.f32 %v675, %v708
  %v716 = vmul.f32 %v675, %v712
  %v717 = vadd.f32 %v666, %v713
  %v718 = vadd.f32 %v667, %v714
  %v719 = vadd.f32 %v668, %v715
  %v720 = vadd.f32 %v669, %v716
  %s721 = scalar_lea.vmem %s3, 68
  %v722 = vld [vmem:[%s721] sm:$0xf]
  %724 = vset.pattern.permute.xlu0 0
  %725 = vperm.xlu0 %724, %v722
  %v726 = vpop.permute.xlu0 %725
  %v728 = vlaneseq
  %v729 = vshrl.u32 %v728, 7
  %v730 = vsub.s32 1, %v729
  %v731 = vrot.slane %v26, %v730
  %v732 = vlaneseq
  %v733 = vshrl.u32 %v732, 7
  %v734 = vsub.s32 5, %v733
  %v735 = vrot.slane %v26, %v734
  %v736 = vlaneseq
  %v737 = vshrl.u32 %v736, 7
  %v738 = vsub.s32 1, %v737
  %v739 = vrot.slane %v27, %v738
  %v740 = vlaneseq
  %v741 = vshrl.u32 %v740, 7
  %v742 = vsub.s32 5, %v741
  %v743 = vrot.slane %v27, %v742
  %v748 = vlaneseq
  %v749 = vshrl.u32 %v748, 7
  %v750 = vsub.s32 1, %v749
  %v751 = vrot.slane %v731, %v750
  %v752 = vlaneseq
  %v753 = vshrl.u32 %v752, 7
  %v754 = vsub.s32 1, %v753
  %v755 = vrot.slane %v735, %v754
  %v756 = vlaneseq
  %v757 = vshrl.u32 %v756, 7
  %v758 = vsub.s32 1, %v757
  %v759 = vrot.slane %v739, %v758
  %v760 = vlaneseq
  %v761 = vshrl.u32 %v760, 7
  %v762 = vsub.s32 1, %v761
  %v763 = vrot.slane %v743, %v762
  %v764 = vmul.f32 %v726, %v751
  %v765 = vmul.f32 %v726, %v755
  %v766 = vmul.f32 %v726, %v759
  %v767 = vmul.f32 %v726, %v763
  %v768 = vadd.f32 %v717, %v764
  %v769 = vadd.f32 %v718, %v765
  %v770 = vadd.f32 %v719, %v766
  %v771 = vadd.f32 %v720, %v767
  %s772 = scalar_lea.vmem %s3, 72
  %v773 = vld [vmem:[%s772] sm:$0xf]
  %775 = vset.pattern.permute.xlu0 0
  %776 = vperm.xlu0 %775, %v773
  %v777 = vpop.permute.xlu0 %776
  %v779 = vlaneseq
  %v780 = vshrl.u32 %v779, 7
  %v781 = vsub.s32 2, %v780
  %v782 = vrot.slane %v26, %v781
  %v783 = vlaneseq
  %v784 = vshrl.u32 %v783, 7
  %v785 = vsub.s32 6, %v784
  %v786 = vrot.slane %v26, %v785
  %v787 = vlaneseq
  %v788 = vshrl.u32 %v787, 7
  %v789 = vsub.s32 2, %v788
  %v790 = vrot.slane %v27, %v789
  %v791 = vlaneseq
  %v792 = vshrl.u32 %v791, 7
  %v793 = vsub.s32 6, %v792
  %v794 = vrot.slane %v27, %v793
  %v799 = vlaneseq
  %v800 = vshrl.u32 %v799, 7
  %v801 = vsub.s32 2, %v800
  %v802 = vrot.slane %v782, %v801
  %v803 = vlaneseq
  %v804 = vshrl.u32 %v803, 7
  %v805 = vsub.s32 2, %v804
  %v806 = vrot.slane %v786, %v805
  %v807 = vlaneseq
  %v808 = vshrl.u32 %v807, 7
  %v809 = vsub.s32 2, %v808
  %v810 = vrot.slane %v790, %v809
  %v811 = vlaneseq
  %v812 = vshrl.u32 %v811, 7
  %v813 = vsub.s32 2, %v812
  %v814 = vrot.slane %v794, %v813
  %v815 = vmul.f32 %v777, %v802
  %v816 = vmul.f32 %v777, %v806
  %v817 = vmul.f32 %v777, %v810
  %v818 = vmul.f32 %v777, %v814
  %v819 = vadd.f32 %v768, %v815
  %v820 = vadd.f32 %v769, %v816
  %v821 = vadd.f32 %v770, %v817
  %v822 = vadd.f32 %v771, %v818
  %s823 = scalar_lea.vmem %s3, 76
  %v824 = vld [vmem:[%s823] sm:$0xf]
  %826 = vset.pattern.permute.xlu0 0
  %827 = vperm.xlu0 %826, %v824
  %v828 = vpop.permute.xlu0 %827
  %v830 = vlaneseq
  %v831 = vshrl.u32 %v830, 7
  %v832 = vsub.s32 3, %v831
  %v833 = vrot.slane %v26, %v832
  %v834 = vlaneseq
  %v835 = vshrl.u32 %v834, 7
  %v836 = vsub.s32 7, %v835
  %v837 = vrot.slane %v26, %v836
  %v838 = vlaneseq
  %v839 = vshrl.u32 %v838, 7
  %v840 = vsub.s32 3, %v839
  %v841 = vrot.slane %v27, %v840
  %v842 = vlaneseq
  %v843 = vshrl.u32 %v842, 7
  %v844 = vsub.s32 7, %v843
  %v845 = vrot.slane %v27, %v844
  %v850 = vlaneseq
  %v851 = vshrl.u32 %v850, 7
  %v852 = vsub.s32 3, %v851
  %v853 = vrot.slane %v833, %v852
  %v854 = vlaneseq
  %v855 = vshrl.u32 %v854, 7
  %v856 = vsub.s32 3, %v855
  %v857 = vrot.slane %v837, %v856
  %v858 = vlaneseq
  %v859 = vshrl.u32 %v858, 7
  %v860 = vsub.s32 3, %v859
  %v861 = vrot.slane %v841, %v860
  %v862 = vlaneseq
  %v863 = vshrl.u32 %v862, 7
  %v864 = vsub.s32 3, %v863
  %v865 = vrot.slane %v845, %v864
  %v866 = vmul.f32 %v828, %v853
  %v867 = vmul.f32 %v828, %v857
  %v868 = vmul.f32 %v828, %v861
  %v869 = vmul.f32 %v828, %v865
  %v870 = vadd.f32 %v819, %v866
  %v871 = vadd.f32 %v820, %v867
  %v872 = vadd.f32 %v821, %v868
  %v873 = vadd.f32 %v822, %v869
  %874 = vrot.lane.b32.xlu0 %v26, 127
  %v875 = vpop.permute.xlu0 %874
  %876 = vrot.lane.b32.xlu0 %v30, 127
  %v877 = vpop.permute.xlu0 %876
  %878 = vrot.lane.b32.xlu0 %v27, 127
  %v879 = vpop.permute.xlu0 %878
  %880 = vrot.lane.b32.xlu0 %v31, 127
  %v881 = vpop.permute.xlu0 %880
  %vm882 = vcmask 1039360
  %v883 = vsel %vm882, %v875, %v877
  %v884 = vsel %vm882, %v879, %v881
  %v891 = vsel %vm882, %v877, %v875
  %v892 = vsel %vm882, %v881, %v879
  %s893 = scalar_lea.vmem %s2, 10
  %v894 = vld [vmem:[%s893] sm:$0x3]
  %v896 = vlaneseq
  %v897 = vshrl.u32 %v896, 7
  %v898 = vsub.s32 0, %v897
  %v899 = vrot.slane %v894, %v898
  %v900 = vlaneseq
  %v901 = vshrl.u32 %v900, 7
  %v902 = vsub.s32 1, %v901
  %v903 = vrot.slane %v894, %v902
  %v906 = vmul.f32 %v883, %v899
  %v907 = vmul.f32 %v891, %v903
  %v908 = vmul.f32 %v884, %v899
  %v909 = vmul.f32 %v892, %v903
  %s910 = scalar_lea.vmem %s3, 80
  %v911 = vld [vmem:[%s910] sm:$0xf]
  %913 = vset.pattern.permute.xlu0 0
  %914 = vperm.xlu0 %913, %v911
  %v915 = vpop.permute.xlu0 %914
  %v917 = vlaneseq
  %v918 = vshrl.u32 %v917, 7
  %v919 = vsub.s32 0, %v918
  %v920 = vrot.slane %v906, %v919
  %v921 = vlaneseq
  %v922 = vshrl.u32 %v921, 7
  %v923 = vsub.s32 0, %v922
  %v924 = vrot.slane %v907, %v923
  %v925 = vlaneseq
  %v926 = vshrl.u32 %v925, 7
  %v927 = vsub.s32 0, %v926
  %v928 = vrot.slane %v908, %v927
  %v929 = vlaneseq
  %v930 = vshrl.u32 %v929, 7
  %v931 = vsub.s32 0, %v930
  %v932 = vrot.slane %v909, %v931
  %v933 = vmul.f32 %v915, %v920
  %v934 = vmul.f32 %v915, %v924
  %v935 = vmul.f32 %v915, %v928
  %v936 = vmul.f32 %v915, %v932
  %v937 = vadd.f32 %v870, %v933
  %v938 = vadd.f32 %v871, %v934
  %v939 = vadd.f32 %v872, %v935
  %v940 = vadd.f32 %v873, %v936
  %s941 = scalar_lea.vmem %s3, 84
  %v942 = vld [vmem:[%s941] sm:$0xf]
  %944 = vset.pattern.permute.xlu0 0
  %945 = vperm.xlu0 %944, %v942
  %v946 = vpop.permute.xlu0 %945
  %v948 = vlaneseq
  %v949 = vshrl.u32 %v948, 7
  %v950 = vsub.s32 1, %v949
  %v951 = vrot.slane %v906, %v950
  %v952 = vlaneseq
  %v953 = vshrl.u32 %v952, 7
  %v954 = vsub.s32 1, %v953
  %v955 = vrot.slane %v907, %v954
  %v956 = vlaneseq
  %v957 = vshrl.u32 %v956, 7
  %v958 = vsub.s32 1, %v957
  %v959 = vrot.slane %v908, %v958
  %v960 = vlaneseq
  %v961 = vshrl.u32 %v960, 7
  %v962 = vsub.s32 1, %v961
  %v963 = vrot.slane %v909, %v962
  %v964 = vmul.f32 %v946, %v951
  %v965 = vmul.f32 %v946, %v955
  %v966 = vmul.f32 %v946, %v959
  %v967 = vmul.f32 %v946, %v963
  %v968 = vadd.f32 %v937, %v964
  %v969 = vadd.f32 %v938, %v965
  %v970 = vadd.f32 %v939, %v966
  %v971 = vadd.f32 %v940, %v967
  %s972 = scalar_lea.vmem %s3, 88
  %v973 = vld [vmem:[%s972] sm:$0xf]
  %975 = vset.pattern.permute.xlu0 0
  %976 = vperm.xlu0 %975, %v973
  %v977 = vpop.permute.xlu0 %976
  %v979 = vlaneseq
  %v980 = vshrl.u32 %v979, 7
  %v981 = vsub.s32 2, %v980
  %v982 = vrot.slane %v906, %v981
  %v983 = vlaneseq
  %v984 = vshrl.u32 %v983, 7
  %v985 = vsub.s32 2, %v984
  %v986 = vrot.slane %v907, %v985
  %v987 = vlaneseq
  %v988 = vshrl.u32 %v987, 7
  %v989 = vsub.s32 2, %v988
  %v990 = vrot.slane %v908, %v989
  %v991 = vlaneseq
  %v992 = vshrl.u32 %v991, 7
  %v993 = vsub.s32 2, %v992
  %v994 = vrot.slane %v909, %v993
  %v995 = vmul.f32 %v977, %v982
  %v996 = vmul.f32 %v977, %v986
  %v997 = vmul.f32 %v977, %v990
  %v998 = vmul.f32 %v977, %v994
  %v999 = vadd.f32 %v968, %v995
  %v1000 = vadd.f32 %v969, %v996
  %v1001 = vadd.f32 %v970, %v997
  %v1002 = vadd.f32 %v971, %v998
  %s1003 = scalar_lea.vmem %s3, 92
  %v1004 = vld [vmem:[%s1003] sm:$0xf]
  %1006 = vset.pattern.permute.xlu0 0
  %1007 = vperm.xlu0 %1006, %v1004
  %v1008 = vpop.permute.xlu0 %1007
  %v1010 = vlaneseq
  %v1011 = vshrl.u32 %v1010, 7
  %v1012 = vsub.s32 3, %v1011
  %v1013 = vrot.slane %v906, %v1012
  %v1014 = vlaneseq
  %v1015 = vshrl.u32 %v1014, 7
  %v1016 = vsub.s32 3, %v1015
  %v1017 = vrot.slane %v907, %v1016
  %v1018 = vlaneseq
  %v1019 = vshrl.u32 %v1018, 7
  %v1020 = vsub.s32 3, %v1019
  %v1021 = vrot.slane %v908, %v1020
  %v1022 = vlaneseq
  %v1023 = vshrl.u32 %v1022, 7
  %v1024 = vsub.s32 3, %v1023
  %v1025 = vrot.slane %v909, %v1024
  %v1026 = vmul.f32 %v1008, %v1013
  %v1027 = vmul.f32 %v1008, %v1017
  %v1028 = vmul.f32 %v1008, %v1021
  %v1029 = vmul.f32 %v1008, %v1025
  %v1030 = vadd.f32 %v999, %v1026
  %v1031 = vadd.f32 %v1000, %v1027
  %v1032 = vadd.f32 %v1001, %v1028
  %v1033 = vadd.f32 %v1002, %v1029
  %1034 = vrot.lane.b32.xlu0 %v26, 113
  %v1035 = vpop.permute.xlu0 %1034
  %1036 = vrot.lane.b32.xlu0 %v30, 113
  %v1037 = vpop.permute.xlu0 %1036
  %1038 = vrot.lane.b32.xlu0 %v27, 113
  %v1039 = vpop.permute.xlu0 %1038
  %1040 = vrot.lane.b32.xlu0 %v31, 113
  %v1041 = vpop.permute.xlu0 %1040
  %vm1042 = vcmask 924672
  %v1043 = vsel %vm1042, %v1035, %v1037
  %v1044 = vsel %vm1042, %v1039, %v1041
  %v1051 = vsel %vm1042, %v1037, %v1035
  %v1052 = vsel %vm1042, %v1041, %v1039
  %s1053 = scalar_lea.vmem %s2, 12
  %v1054 = vld [vmem:[%s1053] sm:$0x3]
  %v1056 = vlaneseq
  %v1057 = vshrl.u32 %v1056, 7
  %v1058 = vsub.s32 0, %v1057
  %v1059 = vrot.slane %v1054, %v1058
  %v1060 = vlaneseq
  %v1061 = vshrl.u32 %v1060, 7
  %v1062 = vsub.s32 1, %v1061
  %v1063 = vrot.slane %v1054, %v1062
  %v1066 = vmul.f32 %v1043, %v1059
  %v1067 = vmul.f32 %v1051, %v1063
  %v1068 = vmul.f32 %v1044, %v1059
  %v1069 = vmul.f32 %v1052, %v1063
  %s1070 = scalar_lea.vmem %s3, 96
  %v1071 = vld [vmem:[%s1070] sm:$0xf]
  %1073 = vset.pattern.permute.xlu0 0
  %1074 = vperm.xlu0 %1073, %v1071
  %v1075 = vpop.permute.xlu0 %1074
  %v1077 = vlaneseq
  %v1078 = vshrl.u32 %v1077, 7
  %v1079 = vsub.s32 0, %v1078
  %v1080 = vrot.slane %v1066, %v1079
  %v1081 = vlaneseq
  %v1082 = vshrl.u32 %v1081, 7
  %v1083 = vsub.s32 0, %v1082
  %v1084 = vrot.slane %v1067, %v1083
  %v1085 = vlaneseq
  %v1086 = vshrl.u32 %v1085, 7
  %v1087 = vsub.s32 0, %v1086
  %v1088 = vrot.slane %v1068, %v1087
  %v1089 = vlaneseq
  %v1090 = vshrl.u32 %v1089, 7
  %v1091 = vsub.s32 0, %v1090
  %v1092 = vrot.slane %v1069, %v1091
  %v1093 = vmul.f32 %v1075, %v1080
  %v1094 = vmul.f32 %v1075, %v1084
  %v1095 = vmul.f32 %v1075, %v1088
  %v1096 = vmul.f32 %v1075, %v1092
  %v1097 = vadd.f32 %v1030, %v1093
  %v1098 = vadd.f32 %v1031, %v1094
  %v1099 = vadd.f32 %v1032, %v1095
  %v1100 = vadd.f32 %v1033, %v1096
  %s1101 = scalar_lea.vmem %s3, 100
  %v1102 = vld [vmem:[%s1101] sm:$0xf]
  %1104 = vset.pattern.permute.xlu0 0
  %1105 = vperm.xlu0 %1104, %v1102
  %v1106 = vpop.permute.xlu0 %1105
  %v1108 = vlaneseq
  %v1109 = vshrl.u32 %v1108, 7
  %v1110 = vsub.s32 1, %v1109
  %v1111 = vrot.slane %v1066, %v1110
  %v1112 = vlaneseq
  %v1113 = vshrl.u32 %v1112, 7
  %v1114 = vsub.s32 1, %v1113
  %v1115 = vrot.slane %v1067, %v1114
  %v1116 = vlaneseq
  %v1117 = vshrl.u32 %v1116, 7
  %v1118 = vsub.s32 1, %v1117
  %v1119 = vrot.slane %v1068, %v1118
  %v1120 = vlaneseq
  %v1121 = vshrl.u32 %v1120, 7
  %v1122 = vsub.s32 1, %v1121
  %v1123 = vrot.slane %v1069, %v1122
  %v1124 = vmul.f32 %v1106, %v1111
  %v1125 = vmul.f32 %v1106, %v1115
  %v1126 = vmul.f32 %v1106, %v1119
  %v1127 = vmul.f32 %v1106, %v1123
  %v1128 = vadd.f32 %v1097, %v1124
  %v1129 = vadd.f32 %v1098, %v1125
  %v1130 = vadd.f32 %v1099, %v1126
  %v1131 = vadd.f32 %v1100, %v1127
  %s1132 = scalar_lea.vmem %s3, 104
  %v1133 = vld [vmem:[%s1132] sm:$0xf]
  %1135 = vset.pattern.permute.xlu0 0
  %1136 = vperm.xlu0 %1135, %v1133
  %v1137 = vpop.permute.xlu0 %1136
  %v1139 = vlaneseq
  %v1140 = vshrl.u32 %v1139, 7
  %v1141 = vsub.s32 2, %v1140
  %v1142 = vrot.slane %v1066, %v1141
  %v1143 = vlaneseq
  %v1144 = vshrl.u32 %v1143, 7
  %v1145 = vsub.s32 2, %v1144
  %v1146 = vrot.slane %v1067, %v1145
  %v1147 = vlaneseq
  %v1148 = vshrl.u32 %v1147, 7
  %v1149 = vsub.s32 2, %v1148
  %v1150 = vrot.slane %v1068, %v1149
  %v1151 = vlaneseq
  %v1152 = vshrl.u32 %v1151, 7
  %v1153 = vsub.s32 2, %v1152
  %v1154 = vrot.slane %v1069, %v1153
  %v1155 = vmul.f32 %v1137, %v1142
  %v1156 = vmul.f32 %v1137, %v1146
  %v1157 = vmul.f32 %v1137, %v1150
  %v1158 = vmul.f32 %v1137, %v1154
  %v1159 = vadd.f32 %v1128, %v1155
  %v1160 = vadd.f32 %v1129, %v1156
  %v1161 = vadd.f32 %v1130, %v1157
  %v1162 = vadd.f32 %v1131, %v1158
  %s1163 = scalar_lea.vmem %s3, 108
  %v1164 = vld [vmem:[%s1163] sm:$0xf]
  %1166 = vset.pattern.permute.xlu0 0
  %1167 = vperm.xlu0 %1166, %v1164
  %v1168 = vpop.permute.xlu0 %1167
  %v1170 = vlaneseq
  %v1171 = vshrl.u32 %v1170, 7
  %v1172 = vsub.s32 3, %v1171
  %v1173 = vrot.slane %v1066, %v1172
  %v1174 = vlaneseq
  %v1175 = vshrl.u32 %v1174, 7
  %v1176 = vsub.s32 3, %v1175
  %v1177 = vrot.slane %v1067, %v1176
  %v1178 = vlaneseq
  %v1179 = vshrl.u32 %v1178, 7
  %v1180 = vsub.s32 3, %v1179
  %v1181 = vrot.slane %v1068, %v1180
  %v1182 = vlaneseq
  %v1183 = vshrl.u32 %v1182, 7
  %v1184 = vsub.s32 3, %v1183
  %v1185 = vrot.slane %v1069, %v1184
  %v1186 = vmul.f32 %v1168, %v1173
  %v1187 = vmul.f32 %v1168, %v1177
  %v1188 = vmul.f32 %v1168, %v1181
  %v1189 = vmul.f32 %v1168, %v1185
  %v1190 = vadd.f32 %v1159, %v1186
  %v1191 = vadd.f32 %v1160, %v1187
  %v1192 = vadd.f32 %v1161, %v1188
  %v1193 = vadd.f32 %v1162, %v1189
  %1194 = vrot.lane.b32.xlu0 %v26, 112
  %v1195 = vpop.permute.xlu0 %1194
  %1196 = vrot.lane.b32.xlu0 %v30, 112
  %v1197 = vpop.permute.xlu0 %1196
  %1198 = vrot.lane.b32.xlu0 %v27, 112
  %v1199 = vpop.permute.xlu0 %1198
  %1200 = vrot.lane.b32.xlu0 %v31, 112
  %v1201 = vpop.permute.xlu0 %1200
  %vm1202 = vcmask 916480
  %v1203 = vsel %vm1202, %v1195, %v1197
  %v1204 = vsel %vm1202, %v1199, %v1201
  %v1211 = vsel %vm1202, %v1197, %v1195
  %v1212 = vsel %vm1202, %v1201, %v1199
  %s1213 = scalar_lea.vmem %s2, 14
  %v1214 = vld [vmem:[%s1213] sm:$0x3]
  %v1216 = vlaneseq
  %v1217 = vshrl.u32 %v1216, 7
  %v1218 = vsub.s32 0, %v1217
  %v1219 = vrot.slane %v1214, %v1218
  %v1220 = vlaneseq
  %v1221 = vshrl.u32 %v1220, 7
  %v1222 = vsub.s32 1, %v1221
  %v1223 = vrot.slane %v1214, %v1222
  %v1226 = vmul.f32 %v1203, %v1219
  %v1227 = vmul.f32 %v1211, %v1223
  %v1228 = vmul.f32 %v1204, %v1219
  %v1229 = vmul.f32 %v1212, %v1223
  %s1230 = scalar_lea.vmem %s3, 112
  %v1231 = vld [vmem:[%s1230] sm:$0xf]
  %1233 = vset.pattern.permute.xlu0 0
  %1234 = vperm.xlu0 %1233, %v1231
  %v1235 = vpop.permute.xlu0 %1234
  %v1237 = vlaneseq
  %v1238 = vshrl.u32 %v1237, 7
  %v1239 = vsub.s32 0, %v1238
  %v1240 = vrot.slane %v1226, %v1239
  %v1241 = vlaneseq
  %v1242 = vshrl.u32 %v1241, 7
  %v1243 = vsub.s32 0, %v1242
  %v1244 = vrot.slane %v1227, %v1243
  %v1245 = vlaneseq
  %v1246 = vshrl.u32 %v1245, 7
  %v1247 = vsub.s32 0, %v1246
  %v1248 = vrot.slane %v1228, %v1247
  %v1249 = vlaneseq
  %v1250 = vshrl.u32 %v1249, 7
  %v1251 = vsub.s32 0, %v1250
  %v1252 = vrot.slane %v1229, %v1251
  %v1253 = vmul.f32 %v1235, %v1240
  %v1254 = vmul.f32 %v1235, %v1244
  %v1255 = vmul.f32 %v1235, %v1248
  %v1256 = vmul.f32 %v1235, %v1252
  %v1257 = vadd.f32 %v1190, %v1253
  %v1258 = vadd.f32 %v1191, %v1254
  %v1259 = vadd.f32 %v1192, %v1255
  %v1260 = vadd.f32 %v1193, %v1256
  %s1261 = scalar_lea.vmem %s3, 116
  %v1262 = vld [vmem:[%s1261] sm:$0xf]
  %1264 = vset.pattern.permute.xlu0 0
  %1265 = vperm.xlu0 %1264, %v1262
  %v1266 = vpop.permute.xlu0 %1265
  %v1268 = vlaneseq
  %v1269 = vshrl.u32 %v1268, 7
  %v1270 = vsub.s32 1, %v1269
  %v1271 = vrot.slane %v1226, %v1270
  %v1272 = vlaneseq
  %v1273 = vshrl.u32 %v1272, 7
  %v1274 = vsub.s32 1, %v1273
  %v1275 = vrot.slane %v1227, %v1274
  %v1276 = vlaneseq
  %v1277 = vshrl.u32 %v1276, 7
  %v1278 = vsub.s32 1, %v1277
  %v1279 = vrot.slane %v1228, %v1278
  %v1280 = vlaneseq
  %v1281 = vshrl.u32 %v1280, 7
  %v1282 = vsub.s32 1, %v1281
  %v1283 = vrot.slane %v1229, %v1282
  %v1284 = vmul.f32 %v1266, %v1271
  %v1285 = vmul.f32 %v1266, %v1275
  %v1286 = vmul.f32 %v1266, %v1279
  %v1287 = vmul.f32 %v1266, %v1283
  %v1288 = vadd.f32 %v1257, %v1284
  %v1289 = vadd.f32 %v1258, %v1285
  %v1290 = vadd.f32 %v1259, %v1286
  %v1291 = vadd.f32 %v1260, %v1287
  %s1292 = scalar_lea.vmem %s3, 120
  %v1293 = vld [vmem:[%s1292] sm:$0xf]
  %1295 = vset.pattern.permute.xlu0 0
  %1296 = vperm.xlu0 %1295, %v1293
  %v1297 = vpop.permute.xlu0 %1296
  %v1299 = vlaneseq
  %v1300 = vshrl.u32 %v1299, 7
  %v1301 = vsub.s32 2, %v1300
  %v1302 = vrot.slane %v1226, %v1301
  %v1303 = vlaneseq
  %v1304 = vshrl.u32 %v1303, 7
  %v1305 = vsub.s32 2, %v1304
  %v1306 = vrot.slane %v1227, %v1305
  %v1307 = vlaneseq
  %v1308 = vshrl.u32 %v1307, 7
  %v1309 = vsub.s32 2, %v1308
  %v1310 = vrot.slane %v1228, %v1309
  %v1311 = vlaneseq
  %v1312 = vshrl.u32 %v1311, 7
  %v1313 = vsub.s32 2, %v1312
  %v1314 = vrot.slane %v1229, %v1313
  %v1315 = vmul.f32 %v1297, %v1302
  %v1316 = vmul.f32 %v1297, %v1306
  %v1317 = vmul.f32 %v1297, %v1310
  %v1318 = vmul.f32 %v1297, %v1314
  %v1319 = vadd.f32 %v1288, %v1315
  %v1320 = vadd.f32 %v1289, %v1316
  %v1321 = vadd.f32 %v1290, %v1317
  %v1322 = vadd.f32 %v1291, %v1318
  %s1323 = scalar_lea.vmem %s3, 124
  %v1324 = vld [vmem:[%s1323] sm:$0xf]
  %1326 = vset.pattern.permute.xlu0 0
  %1327 = vperm.xlu0 %1326, %v1324
  %v1328 = vpop.permute.xlu0 %1327
  %v1330 = vlaneseq
  %v1331 = vshrl.u32 %v1330, 7
  %v1332 = vsub.s32 3, %v1331
  %v1333 = vrot.slane %v1226, %v1332
  %v1334 = vlaneseq
  %v1335 = vshrl.u32 %v1334, 7
  %v1336 = vsub.s32 3, %v1335
  %v1337 = vrot.slane %v1227, %v1336
  %v1338 = vlaneseq
  %v1339 = vshrl.u32 %v1338, 7
  %v1340 = vsub.s32 3, %v1339
  %v1341 = vrot.slane %v1228, %v1340
  %v1342 = vlaneseq
  %v1343 = vshrl.u32 %v1342, 7
  %v1344 = vsub.s32 3, %v1343
  %v1345 = vrot.slane %v1229, %v1344
  %v1346 = vmul.f32 %v1328, %v1333
  %v1347 = vmul.f32 %v1328, %v1337
  %v1348 = vmul.f32 %v1328, %v1341
  %v1349 = vmul.f32 %v1328, %v1345
  %v1350 = vadd.f32 %v1319, %v1346
  %v1351 = vadd.f32 %v1320, %v1347
  %v1352 = vadd.f32 %v1321, %v1348
  %v1353 = vadd.f32 %v1322, %v1349
  %1354 = vrot.lane.b32.xlu0 %v26, 111
  %v1355 = vpop.permute.xlu0 %1354
  %1356 = vrot.lane.b32.xlu0 %v30, 111
  %v1357 = vpop.permute.xlu0 %1356
  %1358 = vrot.lane.b32.xlu0 %v27, 111
  %v1359 = vpop.permute.xlu0 %1358
  %1360 = vrot.lane.b32.xlu0 %v31, 111
  %v1361 = vpop.permute.xlu0 %1360
  %vm1362 = vcmask 908288
  %v1363 = vsel %vm1362, %v1355, %v1357
  %v1364 = vsel %vm1362, %v1359, %v1361
  %v1371 = vsel %vm1362, %v1357, %v1355
  %v1372 = vsel %vm1362, %v1361, %v1359
  %s1373 = scalar_lea.vmem %s2, 16
  %v1374 = vld [vmem:[%s1373] sm:$0x3]
  %v1376 = vlaneseq
  %v1377 = vshrl.u32 %v1376, 7
  %v1378 = vsub.s32 0, %v1377
  %v1379 = vrot.slane %v1374, %v1378
  %v1380 = vlaneseq
  %v1381 = vshrl.u32 %v1380, 7
  %v1382 = vsub.s32 1, %v1381
  %v1383 = vrot.slane %v1374, %v1382
  %v1386 = vmul.f32 %v1363, %v1379
  %v1387 = vmul.f32 %v1371, %v1383
  %v1388 = vmul.f32 %v1364, %v1379
  %v1389 = vmul.f32 %v1372, %v1383
  %s1390 = scalar_lea.vmem %s3, 128
  %v1391 = vld [vmem:[%s1390] sm:$0xf]
  %1393 = vset.pattern.permute.xlu0 0
  %1394 = vperm.xlu0 %1393, %v1391
  %v1395 = vpop.permute.xlu0 %1394
  %v1397 = vlaneseq
  %v1398 = vshrl.u32 %v1397, 7
  %v1399 = vsub.s32 0, %v1398
  %v1400 = vrot.slane %v1386, %v1399
  %v1401 = vlaneseq
  %v1402 = vshrl.u32 %v1401, 7
  %v1403 = vsub.s32 0, %v1402
  %v1404 = vrot.slane %v1387, %v1403
  %v1405 = vlaneseq
  %v1406 = vshrl.u32 %v1405, 7
  %v1407 = vsub.s32 0, %v1406
  %v1408 = vrot.slane %v1388, %v1407
  %v1409 = vlaneseq
  %v1410 = vshrl.u32 %v1409, 7
  %v1411 = vsub.s32 0, %v1410
  %v1412 = vrot.slane %v1389, %v1411
  %v1413 = vmul.f32 %v1395, %v1400
  %v1414 = vmul.f32 %v1395, %v1404
  %v1415 = vmul.f32 %v1395, %v1408
  %v1416 = vmul.f32 %v1395, %v1412
  %v1417 = vadd.f32 %v1350, %v1413
  %v1418 = vadd.f32 %v1351, %v1414
  %v1419 = vadd.f32 %v1352, %v1415
  %v1420 = vadd.f32 %v1353, %v1416
  %s1421 = scalar_lea.vmem %s3, 132
  %v1422 = vld [vmem:[%s1421] sm:$0xf]
  %1424 = vset.pattern.permute.xlu0 0
  %1425 = vperm.xlu0 %1424, %v1422
  %v1426 = vpop.permute.xlu0 %1425
  %v1428 = vlaneseq
  %v1429 = vshrl.u32 %v1428, 7
  %v1430 = vsub.s32 1, %v1429
  %v1431 = vrot.slane %v1386, %v1430
  %v1432 = vlaneseq
  %v1433 = vshrl.u32 %v1432, 7
  %v1434 = vsub.s32 1, %v1433
  %v1435 = vrot.slane %v1387, %v1434
  %v1436 = vlaneseq
  %v1437 = vshrl.u32 %v1436, 7
  %v1438 = vsub.s32 1, %v1437
  %v1439 = vrot.slane %v1388, %v1438
  %v1440 = vlaneseq
  %v1441 = vshrl.u32 %v1440, 7
  %v1442 = vsub.s32 1, %v1441
  %v1443 = vrot.slane %v1389, %v1442
  %v1444 = vmul.f32 %v1426, %v1431
  %v1445 = vmul.f32 %v1426, %v1435
  %v1446 = vmul.f32 %v1426, %v1439
  %v1447 = vmul.f32 %v1426, %v1443
  %v1448 = vadd.f32 %v1417, %v1444
  %v1449 = vadd.f32 %v1418, %v1445
  %v1450 = vadd.f32 %v1419, %v1446
  %v1451 = vadd.f32 %v1420, %v1447
  %s1452 = scalar_lea.vmem %s3, 136
  %v1453 = vld [vmem:[%s1452] sm:$0xf]
  %1455 = vset.pattern.permute.xlu0 0
  %1456 = vperm.xlu0 %1455, %v1453
  %v1457 = vpop.permute.xlu0 %1456
  %v1459 = vlaneseq
  %v1460 = vshrl.u32 %v1459, 7
  %v1461 = vsub.s32 2, %v1460
  %v1462 = vrot.slane %v1386, %v1461
  %v1463 = vlaneseq
  %v1464 = vshrl.u32 %v1463, 7
  %v1465 = vsub.s32 2, %v1464
  %v1466 = vrot.slane %v1387, %v1465
  %v1467 = vlaneseq
  %v1468 = vshrl.u32 %v1467, 7
  %v1469 = vsub.s32 2, %v1468
  %v1470 = vrot.slane %v1388, %v1469
  %v1471 = vlaneseq
  %v1472 = vshrl.u32 %v1471, 7
  %v1473 = vsub.s32 2, %v1472
  %v1474 = vrot.slane %v1389, %v1473
  %v1475 = vmul.f32 %v1457, %v1462
  %v1476 = vmul.f32 %v1457, %v1466
  %v1477 = vmul.f32 %v1457, %v1470
  %v1478 = vmul.f32 %v1457, %v1474
  %v1479 = vadd.f32 %v1448, %v1475
  %v1480 = vadd.f32 %v1449, %v1476
  %v1481 = vadd.f32 %v1450, %v1477
  %v1482 = vadd.f32 %v1451, %v1478
  %s1483 = scalar_lea.vmem %s3, 140
  %v1484 = vld [vmem:[%s1483] sm:$0xf]
  %1486 = vset.pattern.permute.xlu0 0
  %1487 = vperm.xlu0 %1486, %v1484
  %v1488 = vpop.permute.xlu0 %1487
  %v1490 = vlaneseq
  %v1491 = vshrl.u32 %v1490, 7
  %v1492 = vsub.s32 3, %v1491
  %v1493 = vrot.slane %v1386, %v1492
  %v1494 = vlaneseq
  %v1495 = vshrl.u32 %v1494, 7
  %v1496 = vsub.s32 3, %v1495
  %v1497 = vrot.slane %v1387, %v1496
  %v1498 = vlaneseq
  %v1499 = vshrl.u32 %v1498, 7
  %v1500 = vsub.s32 3, %v1499
  %v1501 = vrot.slane %v1388, %v1500
  %v1502 = vlaneseq
  %v1503 = vshrl.u32 %v1502, 7
  %v1504 = vsub.s32 3, %v1503
  %v1505 = vrot.slane %v1389, %v1504
  %v1506 = vmul.f32 %v1488, %v1493
  %v1507 = vmul.f32 %v1488, %v1497
  %v1508 = vmul.f32 %v1488, %v1501
  %v1509 = vmul.f32 %v1488, %v1505
  %v1510 = vadd.f32 %v1479, %v1506
  %v1511 = vadd.f32 %v1480, %v1507
  %v1512 = vadd.f32 %v1481, %v1508
  %v1513 = vadd.f32 %v1482, %v1509
  %v1514 = vld [vmem:[%s4] sm:$0xf]
  %1516 = vset.pattern.permute.xlu0 0
  %1517 = vperm.xlu0 %1516, %v1514
  %v1518 = vpop.permute.xlu0 %1517
  %v1520 = vadd.f32 %v1510, %v1518
  %v1521 = vadd.f32 %v1511, %v1518
  %v1522 = vadd.f32 %v1512, %v1518
  %v1523 = vadd.f32 %v1513, %v1518
  %v1524 = vmax.f32 %v1520, 0.0
  %v1525 = vmax.f32 %v1521, 0.0
  %v1526 = vmax.f32 %v1522, 0.0
  %v1527 = vmax.f32 %v1523, 0.0
  %1530 = vrot.lane.b32.xlu0 %v1525, 17
  %v1531 = vpop.permute.xlu0 %1530
  %1532 = vrot.lane.b32.xlu0 %v1527, 17
  %v1533 = vpop.permute.xlu0 %1532
  %1538 = vrot.lane.b32.xlu0 %v1524, 17
  %v1539 = vpop.permute.xlu0 %1538
  %1540 = vrot.lane.b32.xlu0 %v1526, 17
  %v1541 = vpop.permute.xlu0 %1540
  %v1542 = vsel %vm42, %v1539, %v1531
  %v1543 = vsel %vm42, %v1541, %v1533
  %v1548 = vsel %vm42, %v1531, %v1539
  %v1549 = vsel %vm42, %v1533, %v1541
  %v1550 = vmul.f32 %v1548, %v56
  %v1551 = vmul.f32 %v1542, %v60
  %v1552 = vmul.f32 %v1549, %v56
  %v1553 = vmul.f32 %v1543, %v60
  %v1554 = vld [vmem:[%s5] sm:$0xf]
  %1556 = vset.pattern.permute.xlu0 0
  %1557 = vperm.xlu0 %1556, %v1554
  %v1558 = vpop.permute.xlu0 %1557
  %v1560 = vlaneseq
  %v1561 = vshrl.u32 %v1560, 7
  %v1562 = vsub.s32 0, %v1561
  %v1563 = vrot.slane %v1550, %v1562
  %v1564 = vlaneseq
  %v1565 = vshrl.u32 %v1564, 7
  %v1566 = vsub.s32 0, %v1565
  %v1567 = vrot.slane %v1551, %v1566
  %v1568 = vlaneseq
  %v1569 = vshrl.u32 %v1568, 7
  %v1570 = vsub.s32 0, %v1569
  %v1571 = vrot.slane %v1552, %v1570
  %v1572 = vlaneseq
  %v1573 = vshrl.u32 %v1572, 7
  %v1574 = vsub.s32 0, %v1573
  %v1575 = vrot.slane %v1553, %v1574
  %v1576 = vmul.f32 %v1558, %v1563
  %v1577 = vmul.f32 %v1558, %v1567
  %v1578 = vmul.f32 %v1558, %v1571
  %v1579 = vmul.f32 %v1558, %v1575
  %v1580 = vadd.f32 %v1576, 0.0
  %v1581 = vadd.f32 %v1577, 0.0
  %v1582 = vadd.f32 %v1578, 0.0
  %v1583 = vadd.f32 %v1579, 0.0
  %s1584 = scalar_lea.vmem %s5, 4
  %v1585 = vld [vmem:[%s1584] sm:$0xf]
  %1587 = vset.pattern.permute.xlu0 0
  %1588 = vperm.xlu0 %1587, %v1585
  %v1589 = vpop.permute.xlu0 %1588
  %v1591 = vlaneseq
  %v1592 = vshrl.u32 %v1591, 7
  %v1593 = vsub.s32 1, %v1592
  %v1594 = vrot.slane %v1550, %v1593
  %v1595 = vlaneseq
  %v1596 = vshrl.u32 %v1595, 7
  %v1597 = vsub.s32 1, %v1596
  %v1598 = vrot.slane %v1551, %v1597
  %v1599 = vlaneseq
  %v1600 = vshrl.u32 %v1599, 7
  %v1601 = vsub.s32 1, %v1600
  %v1602 = vrot.slane %v1552, %v1601
  %v1603 = vlaneseq
  %v1604 = vshrl.u32 %v1603, 7
  %v1605 = vsub.s32 1, %v1604
  %v1606 = vrot.slane %v1553, %v1605
  %v1607 = vmul.f32 %v1589, %v1594
  %v1608 = vmul.f32 %v1589, %v1598
  %v1609 = vmul.f32 %v1589, %v1602
  %v1610 = vmul.f32 %v1589, %v1606
  %v1611 = vadd.f32 %v1580, %v1607
  %v1612 = vadd.f32 %v1581, %v1608
  %v1613 = vadd.f32 %v1582, %v1609
  %v1614 = vadd.f32 %v1583, %v1610
  %s1615 = scalar_lea.vmem %s5, 8
  %v1616 = vld [vmem:[%s1615] sm:$0xf]
  %1618 = vset.pattern.permute.xlu0 0
  %1619 = vperm.xlu0 %1618, %v1616
  %v1620 = vpop.permute.xlu0 %1619
  %v1622 = vlaneseq
  %v1623 = vshrl.u32 %v1622, 7
  %v1624 = vsub.s32 2, %v1623
  %v1625 = vrot.slane %v1550, %v1624
  %v1626 = vlaneseq
  %v1627 = vshrl.u32 %v1626, 7
  %v1628 = vsub.s32 2, %v1627
  %v1629 = vrot.slane %v1551, %v1628
  %v1630 = vlaneseq
  %v1631 = vshrl.u32 %v1630, 7
  %v1632 = vsub.s32 2, %v1631
  %v1633 = vrot.slane %v1552, %v1632
  %v1634 = vlaneseq
  %v1635 = vshrl.u32 %v1634, 7
  %v1636 = vsub.s32 2, %v1635
  %v1637 = vrot.slane %v1553, %v1636
  %v1638 = vmul.f32 %v1620, %v1625
  %v1639 = vmul.f32 %v1620, %v1629
  %v1640 = vmul.f32 %v1620, %v1633
  %v1641 = vmul.f32 %v1620, %v1637
  %v1642 = vadd.f32 %v1611, %v1638
  %v1643 = vadd.f32 %v1612, %v1639
  %v1644 = vadd.f32 %v1613, %v1640
  %v1645 = vadd.f32 %v1614, %v1641
  %s1646 = scalar_lea.vmem %s5, 12
  %v1647 = vld [vmem:[%s1646] sm:$0xf]
  %1649 = vset.pattern.permute.xlu0 0
  %1650 = vperm.xlu0 %1649, %v1647
  %v1651 = vpop.permute.xlu0 %1650
  %v1653 = vlaneseq
  %v1654 = vshrl.u32 %v1653, 7
  %v1655 = vsub.s32 3, %v1654
  %v1656 = vrot.slane %v1550, %v1655
  %v1657 = vlaneseq
  %v1658 = vshrl.u32 %v1657, 7
  %v1659 = vsub.s32 3, %v1658
  %v1660 = vrot.slane %v1551, %v1659
  %v1661 = vlaneseq
  %v1662 = vshrl.u32 %v1661, 7
  %v1663 = vsub.s32 3, %v1662
  %v1664 = vrot.slane %v1552, %v1663
  %v1665 = vlaneseq
  %v1666 = vshrl.u32 %v1665, 7
  %v1667 = vsub.s32 3, %v1666
  %v1668 = vrot.slane %v1553, %v1667
  %v1669 = vmul.f32 %v1651, %v1656
  %v1670 = vmul.f32 %v1651, %v1660
  %v1671 = vmul.f32 %v1651, %v1664
  %v1672 = vmul.f32 %v1651, %v1668
  %v1673 = vadd.f32 %v1642, %v1669
  %v1674 = vadd.f32 %v1643, %v1670
  %v1675 = vadd.f32 %v1644, %v1671
  %v1676 = vadd.f32 %v1645, %v1672
  %1677 = vrot.lane.b32.xlu0 %v1525, 16
  %v1678 = vpop.permute.xlu0 %1677
  %1679 = vrot.lane.b32.xlu0 %v1527, 16
  %v1680 = vpop.permute.xlu0 %1679
  %1683 = vrot.lane.b32.xlu0 %v1524, 16
  %v1684 = vpop.permute.xlu0 %1683
  %1685 = vrot.lane.b32.xlu0 %v1526, 16
  %v1686 = vpop.permute.xlu0 %1685
  %v1687 = vsel %vm200, %v1684, %v1678
  %v1688 = vsel %vm200, %v1686, %v1680
  %v1693 = vsel %vm200, %v1678, %v1684
  %v1694 = vsel %vm200, %v1680, %v1686
  %v1695 = vmul.f32 %v1693, %v215
  %v1696 = vmul.f32 %v1687, %v219
  %v1697 = vmul.f32 %v1694, %v215
  %v1698 = vmul.f32 %v1688, %v219
  %s1699 = scalar_lea.vmem %s5, 16
  %v1700 = vld [vmem:[%s1699] sm:$0xf]
  %1702 = vset.pattern.permute.xlu0 0
  %1703 = vperm.xlu0 %1702, %v1700
  %v1704 = vpop.permute.xlu0 %1703
  %v1706 = vlaneseq
  %v1707 = vshrl.u32 %v1706, 7
  %v1708 = vsub.s32 0, %v1707
  %v1709 = vrot.slane %v1695, %v1708
  %v1710 = vlaneseq
  %v1711 = vshrl.u32 %v1710, 7
  %v1712 = vsub.s32 0, %v1711
  %v1713 = vrot.slane %v1696, %v1712
  %v1714 = vlaneseq
  %v1715 = vshrl.u32 %v1714, 7
  %v1716 = vsub.s32 0, %v1715
  %v1717 = vrot.slane %v1697, %v1716
  %v1718 = vlaneseq
  %v1719 = vshrl.u32 %v1718, 7
  %v1720 = vsub.s32 0, %v1719
  %v1721 = vrot.slane %v1698, %v1720
  %v1722 = vmul.f32 %v1704, %v1709
  %v1723 = vmul.f32 %v1704, %v1713
  %v1724 = vmul.f32 %v1704, %v1717
  %v1725 = vmul.f32 %v1704, %v1721
  %v1726 = vadd.f32 %v1673, %v1722
  %v1727 = vadd.f32 %v1674, %v1723
  %v1728 = vadd.f32 %v1675, %v1724
  %v1729 = vadd.f32 %v1676, %v1725
  %s1730 = scalar_lea.vmem %s5, 20
  %v1731 = vld [vmem:[%s1730] sm:$0xf]
  %1733 = vset.pattern.permute.xlu0 0
  %1734 = vperm.xlu0 %1733, %v1731
  %v1735 = vpop.permute.xlu0 %1734
  %v1737 = vlaneseq
  %v1738 = vshrl.u32 %v1737, 7
  %v1739 = vsub.s32 1, %v1738
  %v1740 = vrot.slane %v1695, %v1739
  %v1741 = vlaneseq
  %v1742 = vshrl.u32 %v1741, 7
  %v1743 = vsub.s32 1, %v1742
  %v1744 = vrot.slane %v1696, %v1743
  %v1745 = vlaneseq
  %v1746 = vshrl.u32 %v1745, 7
  %v1747 = vsub.s32 1, %v1746
  %v1748 = vrot.slane %v1697, %v1747
  %v1749 = vlaneseq
  %v1750 = vshrl.u32 %v1749, 7
  %v1751 = vsub.s32 1, %v1750
  %v1752 = vrot.slane %v1698, %v1751
  %v1753 = vmul.f32 %v1735, %v1740
  %v1754 = vmul.f32 %v1735, %v1744
  %v1755 = vmul.f32 %v1735, %v1748
  %v1756 = vmul.f32 %v1735, %v1752
  %v1757 = vadd.f32 %v1726, %v1753
  %v1758 = vadd.f32 %v1727, %v1754
  %v1759 = vadd.f32 %v1728, %v1755
  %v1760 = vadd.f32 %v1729, %v1756
  %s1761 = scalar_lea.vmem %s5, 24
  %v1762 = vld [vmem:[%s1761] sm:$0xf]
  %1764 = vset.pattern.permute.xlu0 0
  %1765 = vperm.xlu0 %1764, %v1762
  %v1766 = vpop.permute.xlu0 %1765
  %v1768 = vlaneseq
  %v1769 = vshrl.u32 %v1768, 7
  %v1770 = vsub.s32 2, %v1769
  %v1771 = vrot.slane %v1695, %v1770
  %v1772 = vlaneseq
  %v1773 = vshrl.u32 %v1772, 7
  %v1774 = vsub.s32 2, %v1773
  %v1775 = vrot.slane %v1696, %v1774
  %v1776 = vlaneseq
  %v1777 = vshrl.u32 %v1776, 7
  %v1778 = vsub.s32 2, %v1777
  %v1779 = vrot.slane %v1697, %v1778
  %v1780 = vlaneseq
  %v1781 = vshrl.u32 %v1780, 7
  %v1782 = vsub.s32 2, %v1781
  %v1783 = vrot.slane %v1698, %v1782
  %v1784 = vmul.f32 %v1766, %v1771
  %v1785 = vmul.f32 %v1766, %v1775
  %v1786 = vmul.f32 %v1766, %v1779
  %v1787 = vmul.f32 %v1766, %v1783
  %v1788 = vadd.f32 %v1757, %v1784
  %v1789 = vadd.f32 %v1758, %v1785
  %v1790 = vadd.f32 %v1759, %v1786
  %v1791 = vadd.f32 %v1760, %v1787
  %s1792 = scalar_lea.vmem %s5, 28
  %v1793 = vld [vmem:[%s1792] sm:$0xf]
  %1795 = vset.pattern.permute.xlu0 0
  %1796 = vperm.xlu0 %1795, %v1793
  %v1797 = vpop.permute.xlu0 %1796
  %v1799 = vlaneseq
  %v1800 = vshrl.u32 %v1799, 7
  %v1801 = vsub.s32 3, %v1800
  %v1802 = vrot.slane %v1695, %v1801
  %v1803 = vlaneseq
  %v1804 = vshrl.u32 %v1803, 7
  %v1805 = vsub.s32 3, %v1804
  %v1806 = vrot.slane %v1696, %v1805
  %v1807 = vlaneseq
  %v1808 = vshrl.u32 %v1807, 7
  %v1809 = vsub.s32 3, %v1808
  %v1810 = vrot.slane %v1697, %v1809
  %v1811 = vlaneseq
  %v1812 = vshrl.u32 %v1811, 7
  %v1813 = vsub.s32 3, %v1812
  %v1814 = vrot.slane %v1698, %v1813
  %v1815 = vmul.f32 %v1797, %v1802
  %v1816 = vmul.f32 %v1797, %v1806
  %v1817 = vmul.f32 %v1797, %v1810
  %v1818 = vmul.f32 %v1797, %v1814
  %v1819 = vadd.f32 %v1788, %v1815
  %v1820 = vadd.f32 %v1789, %v1816
  %v1821 = vadd.f32 %v1790, %v1817
  %v1822 = vadd.f32 %v1791, %v1818
  %1823 = vrot.lane.b32.xlu0 %v1525, 15
  %v1824 = vpop.permute.xlu0 %1823
  %1825 = vrot.lane.b32.xlu0 %v1527, 15
  %v1826 = vpop.permute.xlu0 %1825
  %1829 = vrot.lane.b32.xlu0 %v1524, 15
  %v1830 = vpop.permute.xlu0 %1829
  %1831 = vrot.lane.b32.xlu0 %v1526, 15
  %v1832 = vpop.permute.xlu0 %1831
  %v1833 = vsel %vm360, %v1830, %v1824
  %v1834 = vsel %vm360, %v1832, %v1826
  %v1839 = vsel %vm360, %v1824, %v1830
  %v1840 = vsel %vm360, %v1826, %v1832
  %v1841 = vmul.f32 %v1839, %v375
  %v1842 = vmul.f32 %v1833, %v379
  %v1843 = vmul.f32 %v1840, %v375
  %v1844 = vmul.f32 %v1834, %v379
  %s1845 = scalar_lea.vmem %s5, 32
  %v1846 = vld [vmem:[%s1845] sm:$0xf]
  %1848 = vset.pattern.permute.xlu0 0
  %1849 = vperm.xlu0 %1848, %v1846
  %v1850 = vpop.permute.xlu0 %1849
  %v1852 = vlaneseq
  %v1853 = vshrl.u32 %v1852, 7
  %v1854 = vsub.s32 0, %v1853
  %v1855 = vrot.slane %v1841, %v1854
  %v1856 = vlaneseq
  %v1857 = vshrl.u32 %v1856, 7
  %v1858 = vsub.s32 0, %v1857
  %v1859 = vrot.slane %v1842, %v1858
  %v1860 = vlaneseq
  %v1861 = vshrl.u32 %v1860, 7
  %v1862 = vsub.s32 0, %v1861
  %v1863 = vrot.slane %v1843, %v1862
  %v1864 = vlaneseq
  %v1865 = vshrl.u32 %v1864, 7
  %v1866 = vsub.s32 0, %v1865
  %v1867 = vrot.slane %v1844, %v1866
  %v1868 = vmul.f32 %v1850, %v1855
  %v1869 = vmul.f32 %v1850, %v1859
  %v1870 = vmul.f32 %v1850, %v1863
  %v1871 = vmul.f32 %v1850, %v1867
  %v1872 = vadd.f32 %v1819, %v1868
  %v1873 = vadd.f32 %v1820, %v1869
  %v1874 = vadd.f32 %v1821, %v1870
  %v1875 = vadd.f32 %v1822, %v1871
  %s1876 = scalar_lea.vmem %s5, 36
  %v1877 = vld [vmem:[%s1876] sm:$0xf]
  %1879 = vset.pattern.permute.xlu0 0
  %1880 = vperm.xlu0 %1879, %v1877
  %v1881 = vpop.permute.xlu0 %1880
  %v1883 = vlaneseq
  %v1884 = vshrl.u32 %v1883, 7
  %v1885 = vsub.s32 1, %v1884
  %v1886 = vrot.slane %v1841, %v1885
  %v1887 = vlaneseq
  %v1888 = vshrl.u32 %v1887, 7
  %v1889 = vsub.s32 1, %v1888
  %v1890 = vrot.slane %v1842, %v1889
  %v1891 = vlaneseq
  %v1892 = vshrl.u32 %v1891, 7
  %v1893 = vsub.s32 1, %v1892
  %v1894 = vrot.slane %v1843, %v1893
  %v1895 = vlaneseq
  %v1896 = vshrl.u32 %v1895, 7
  %v1897 = vsub.s32 1, %v1896
  %v1898 = vrot.slane %v1844, %v1897
  %v1899 = vmul.f32 %v1881, %v1886
  %v1900 = vmul.f32 %v1881, %v1890
  %v1901 = vmul.f32 %v1881, %v1894
  %v1902 = vmul.f32 %v1881, %v1898
  %v1903 = vadd.f32 %v1872, %v1899
  %v1904 = vadd.f32 %v1873, %v1900
  %v1905 = vadd.f32 %v1874, %v1901
  %v1906 = vadd.f32 %v1875, %v1902
  %s1907 = scalar_lea.vmem %s5, 40
  %v1908 = vld [vmem:[%s1907] sm:$0xf]
  %1910 = vset.pattern.permute.xlu0 0
  %1911 = vperm.xlu0 %1910, %v1908
  %v1912 = vpop.permute.xlu0 %1911
  %v1914 = vlaneseq
  %v1915 = vshrl.u32 %v1914, 7
  %v1916 = vsub.s32 2, %v1915
  %v1917 = vrot.slane %v1841, %v1916
  %v1918 = vlaneseq
  %v1919 = vshrl.u32 %v1918, 7
  %v1920 = vsub.s32 2, %v1919
  %v1921 = vrot.slane %v1842, %v1920
  %v1922 = vlaneseq
  %v1923 = vshrl.u32 %v1922, 7
  %v1924 = vsub.s32 2, %v1923
  %v1925 = vrot.slane %v1843, %v1924
  %v1926 = vlaneseq
  %v1927 = vshrl.u32 %v1926, 7
  %v1928 = vsub.s32 2, %v1927
  %v1929 = vrot.slane %v1844, %v1928
  %v1930 = vmul.f32 %v1912, %v1917
  %v1931 = vmul.f32 %v1912, %v1921
  %v1932 = vmul.f32 %v1912, %v1925
  %v1933 = vmul.f32 %v1912, %v1929
  %v1934 = vadd.f32 %v1903, %v1930
  %v1935 = vadd.f32 %v1904, %v1931
  %v1936 = vadd.f32 %v1905, %v1932
  %v1937 = vadd.f32 %v1906, %v1933
  %s1938 = scalar_lea.vmem %s5, 44
  %v1939 = vld [vmem:[%s1938] sm:$0xf]
  %1941 = vset.pattern.permute.xlu0 0
  %1942 = vperm.xlu0 %1941, %v1939
  %v1943 = vpop.permute.xlu0 %1942
  %v1945 = vlaneseq
  %v1946 = vshrl.u32 %v1945, 7
  %v1947 = vsub.s32 3, %v1946
  %v1948 = vrot.slane %v1841, %v1947
  %v1949 = vlaneseq
  %v1950 = vshrl.u32 %v1949, 7
  %v1951 = vsub.s32 3, %v1950
  %v1952 = vrot.slane %v1842, %v1951
  %v1953 = vlaneseq
  %v1954 = vshrl.u32 %v1953, 7
  %v1955 = vsub.s32 3, %v1954
  %v1956 = vrot.slane %v1843, %v1955
  %v1957 = vlaneseq
  %v1958 = vshrl.u32 %v1957, 7
  %v1959 = vsub.s32 3, %v1958
  %v1960 = vrot.slane %v1844, %v1959
  %v1961 = vmul.f32 %v1943, %v1948
  %v1962 = vmul.f32 %v1943, %v1952
  %v1963 = vmul.f32 %v1943, %v1956
  %v1964 = vmul.f32 %v1943, %v1960
  %v1965 = vadd.f32 %v1934, %v1961
  %v1966 = vadd.f32 %v1935, %v1962
  %v1967 = vadd.f32 %v1936, %v1963
  %v1968 = vadd.f32 %v1937, %v1964
  %1969 = vrot.lane.b32.xlu0 %v1525, 1
  %v1970 = vpop.permute.xlu0 %1969
  %1971 = vrot.lane.b32.xlu0 %v1527, 1
  %v1972 = vpop.permute.xlu0 %1971
  %1975 = vrot.lane.b32.xlu0 %v1524, 1
  %v1976 = vpop.permute.xlu0 %1975
  %1977 = vrot.lane.b32.xlu0 %v1526, 1
  %v1978 = vpop.permute.xlu0 %1977
  %v1979 = vsel %vm520, %v1976, %v1970
  %v1980 = vsel %vm520, %v1978, %v1972
  %v1985 = vsel %vm520, %v1970, %v1976
  %v1986 = vsel %vm520, %v1972, %v1978
  %v1987 = vmul.f32 %v1985, %v535
  %v1988 = vmul.f32 %v1979, %v539
  %v1989 = vmul.f32 %v1986, %v535
  %v1990 = vmul.f32 %v1980, %v539
  %s1991 = scalar_lea.vmem %s5, 48
  %v1992 = vld [vmem:[%s1991] sm:$0xf]
  %1994 = vset.pattern.permute.xlu0 0
  %1995 = vperm.xlu0 %1994, %v1992
  %v1996 = vpop.permute.xlu0 %1995
  %v1998 = vlaneseq
  %v1999 = vshrl.u32 %v1998, 7
  %v2000 = vsub.s32 0, %v1999
  %v2001 = vrot.slane %v1987, %v2000
  %v2002 = vlaneseq
  %v2003 = vshrl.u32 %v2002, 7
  %v2004 = vsub.s32 0, %v2003
  %v2005 = vrot.slane %v1988, %v2004
  %v2006 = vlaneseq
  %v2007 = vshrl.u32 %v2006, 7
  %v2008 = vsub.s32 0, %v2007
  %v2009 = vrot.slane %v1989, %v2008
  %v2010 = vlaneseq
  %v2011 = vshrl.u32 %v2010, 7
  %v2012 = vsub.s32 0, %v2011
  %v2013 = vrot.slane %v1990, %v2012
  %v2014 = vmul.f32 %v1996, %v2001
  %v2015 = vmul.f32 %v1996, %v2005
  %v2016 = vmul.f32 %v1996, %v2009
  %v2017 = vmul.f32 %v1996, %v2013
  %v2018 = vadd.f32 %v1965, %v2014
  %v2019 = vadd.f32 %v1966, %v2015
  %v2020 = vadd.f32 %v1967, %v2016
  %v2021 = vadd.f32 %v1968, %v2017
  %s2022 = scalar_lea.vmem %s5, 52
  %v2023 = vld [vmem:[%s2022] sm:$0xf]
  %2025 = vset.pattern.permute.xlu0 0
  %2026 = vperm.xlu0 %2025, %v2023
  %v2027 = vpop.permute.xlu0 %2026
  %v2029 = vlaneseq
  %v2030 = vshrl.u32 %v2029, 7
  %v2031 = vsub.s32 1, %v2030
  %v2032 = vrot.slane %v1987, %v2031
  %v2033 = vlaneseq
  %v2034 = vshrl.u32 %v2033, 7
  %v2035 = vsub.s32 1, %v2034
  %v2036 = vrot.slane %v1988, %v2035
  %v2037 = vlaneseq
  %v2038 = vshrl.u32 %v2037, 7
  %v2039 = vsub.s32 1, %v2038
  %v2040 = vrot.slane %v1989, %v2039
  %v2041 = vlaneseq
  %v2042 = vshrl.u32 %v2041, 7
  %v2043 = vsub.s32 1, %v2042
  %v2044 = vrot.slane %v1990, %v2043
  %v2045 = vmul.f32 %v2027, %v2032
  %v2046 = vmul.f32 %v2027, %v2036
  %v2047 = vmul.f32 %v2027, %v2040
  %v2048 = vmul.f32 %v2027, %v2044
  %v2049 = vadd.f32 %v2018, %v2045
  %v2050 = vadd.f32 %v2019, %v2046
  %v2051 = vadd.f32 %v2020, %v2047
  %v2052 = vadd.f32 %v2021, %v2048
  %s2053 = scalar_lea.vmem %s5, 56
  %v2054 = vld [vmem:[%s2053] sm:$0xf]
  %2056 = vset.pattern.permute.xlu0 0
  %2057 = vperm.xlu0 %2056, %v2054
  %v2058 = vpop.permute.xlu0 %2057
  %v2060 = vlaneseq
  %v2061 = vshrl.u32 %v2060, 7
  %v2062 = vsub.s32 2, %v2061
  %v2063 = vrot.slane %v1987, %v2062
  %v2064 = vlaneseq
  %v2065 = vshrl.u32 %v2064, 7
  %v2066 = vsub.s32 2, %v2065
  %v2067 = vrot.slane %v1988, %v2066
  %v2068 = vlaneseq
  %v2069 = vshrl.u32 %v2068, 7
  %v2070 = vsub.s32 2, %v2069
  %v2071 = vrot.slane %v1989, %v2070
  %v2072 = vlaneseq
  %v2073 = vshrl.u32 %v2072, 7
  %v2074 = vsub.s32 2, %v2073
  %v2075 = vrot.slane %v1990, %v2074
  %v2076 = vmul.f32 %v2058, %v2063
  %v2077 = vmul.f32 %v2058, %v2067
  %v2078 = vmul.f32 %v2058, %v2071
  %v2079 = vmul.f32 %v2058, %v2075
  %v2080 = vadd.f32 %v2049, %v2076
  %v2081 = vadd.f32 %v2050, %v2077
  %v2082 = vadd.f32 %v2051, %v2078
  %v2083 = vadd.f32 %v2052, %v2079
  %s2084 = scalar_lea.vmem %s5, 60
  %v2085 = vld [vmem:[%s2084] sm:$0xf]
  %2087 = vset.pattern.permute.xlu0 0
  %2088 = vperm.xlu0 %2087, %v2085
  %v2089 = vpop.permute.xlu0 %2088
  %v2091 = vlaneseq
  %v2092 = vshrl.u32 %v2091, 7
  %v2093 = vsub.s32 3, %v2092
  %v2094 = vrot.slane %v1987, %v2093
  %v2095 = vlaneseq
  %v2096 = vshrl.u32 %v2095, 7
  %v2097 = vsub.s32 3, %v2096
  %v2098 = vrot.slane %v1988, %v2097
  %v2099 = vlaneseq
  %v2100 = vshrl.u32 %v2099, 7
  %v2101 = vsub.s32 3, %v2100
  %v2102 = vrot.slane %v1989, %v2101
  %v2103 = vlaneseq
  %v2104 = vshrl.u32 %v2103, 7
  %v2105 = vsub.s32 3, %v2104
  %v2106 = vrot.slane %v1990, %v2105
  %v2107 = vmul.f32 %v2089, %v2094
  %v2108 = vmul.f32 %v2089, %v2098
  %v2109 = vmul.f32 %v2089, %v2102
  %v2110 = vmul.f32 %v2089, %v2106
  %v2111 = vadd.f32 %v2080, %v2107
  %v2112 = vadd.f32 %v2081, %v2108
  %v2113 = vadd.f32 %v2082, %v2109
  %v2114 = vadd.f32 %v2083, %v2110
  %s2115 = scalar_lea.vmem %s5, 64
  %v2116 = vld [vmem:[%s2115] sm:$0xf]
  %2118 = vset.pattern.permute.xlu0 0
  %2119 = vperm.xlu0 %2118, %v2116
  %v2120 = vpop.permute.xlu0 %2119
  %v2122 = vlaneseq
  %v2123 = vshrl.u32 %v2122, 7
  %v2124 = vsub.s32 0, %v2123
  %v2125 = vrot.slane %v1524, %v2124
  %v2126 = vlaneseq
  %v2127 = vshrl.u32 %v2126, 7
  %v2128 = vsub.s32 0, %v2127
  %v2129 = vrot.slane %v1525, %v2128
  %v2130 = vlaneseq
  %v2131 = vshrl.u32 %v2130, 7
  %v2132 = vsub.s32 0, %v2131
  %v2133 = vrot.slane %v1526, %v2132
  %v2134 = vlaneseq
  %v2135 = vshrl.u32 %v2134, 7
  %v2136 = vsub.s32 0, %v2135
  %v2137 = vrot.slane %v1527, %v2136
  %v2138 = vmul.f32 %v2120, %v2125
  %v2139 = vmul.f32 %v2120, %v2129
  %v2140 = vmul.f32 %v2120, %v2133
  %v2141 = vmul.f32 %v2120, %v2137
  %v2142 = vadd.f32 %v2111, %v2138
  %v2143 = vadd.f32 %v2112, %v2139
  %v2144 = vadd.f32 %v2113, %v2140
  %v2145 = vadd.f32 %v2114, %v2141
  %s2146 = scalar_lea.vmem %s5, 68
  %v2147 = vld [vmem:[%s2146] sm:$0xf]
  %2149 = vset.pattern.permute.xlu0 0
  %2150 = vperm.xlu0 %2149, %v2147
  %v2151 = vpop.permute.xlu0 %2150
  %v2153 = vlaneseq
  %v2154 = vshrl.u32 %v2153, 7
  %v2155 = vsub.s32 1, %v2154
  %v2156 = vrot.slane %v1524, %v2155
  %v2157 = vlaneseq
  %v2158 = vshrl.u32 %v2157, 7
  %v2159 = vsub.s32 1, %v2158
  %v2160 = vrot.slane %v1525, %v2159
  %v2161 = vlaneseq
  %v2162 = vshrl.u32 %v2161, 7
  %v2163 = vsub.s32 1, %v2162
  %v2164 = vrot.slane %v1526, %v2163
  %v2165 = vlaneseq
  %v2166 = vshrl.u32 %v2165, 7
  %v2167 = vsub.s32 1, %v2166
  %v2168 = vrot.slane %v1527, %v2167
  %v2169 = vmul.f32 %v2151, %v2156
  %v2170 = vmul.f32 %v2151, %v2160
  %v2171 = vmul.f32 %v2151, %v2164
  %v2172 = vmul.f32 %v2151, %v2168
  %v2173 = vadd.f32 %v2142, %v2169
  %v2174 = vadd.f32 %v2143, %v2170
  %v2175 = vadd.f32 %v2144, %v2171
  %v2176 = vadd.f32 %v2145, %v2172
  %s2177 = scalar_lea.vmem %s5, 72
  %v2178 = vld [vmem:[%s2177] sm:$0xf]
  %2180 = vset.pattern.permute.xlu0 0
  %2181 = vperm.xlu0 %2180, %v2178
  %v2182 = vpop.permute.xlu0 %2181
  %v2184 = vlaneseq
  %v2185 = vshrl.u32 %v2184, 7
  %v2186 = vsub.s32 2, %v2185
  %v2187 = vrot.slane %v1524, %v2186
  %v2188 = vlaneseq
  %v2189 = vshrl.u32 %v2188, 7
  %v2190 = vsub.s32 2, %v2189
  %v2191 = vrot.slane %v1525, %v2190
  %v2192 = vlaneseq
  %v2193 = vshrl.u32 %v2192, 7
  %v2194 = vsub.s32 2, %v2193
  %v2195 = vrot.slane %v1526, %v2194
  %v2196 = vlaneseq
  %v2197 = vshrl.u32 %v2196, 7
  %v2198 = vsub.s32 2, %v2197
  %v2199 = vrot.slane %v1527, %v2198
  %v2200 = vmul.f32 %v2182, %v2187
  %v2201 = vmul.f32 %v2182, %v2191
  %v2202 = vmul.f32 %v2182, %v2195
  %v2203 = vmul.f32 %v2182, %v2199
  %v2204 = vadd.f32 %v2173, %v2200
  %v2205 = vadd.f32 %v2174, %v2201
  %v2206 = vadd.f32 %v2175, %v2202
  %v2207 = vadd.f32 %v2176, %v2203
  %s2208 = scalar_lea.vmem %s5, 76
  %v2209 = vld [vmem:[%s2208] sm:$0xf]
  %2211 = vset.pattern.permute.xlu0 0
  %2212 = vperm.xlu0 %2211, %v2209
  %v2213 = vpop.permute.xlu0 %2212
  %v2215 = vlaneseq
  %v2216 = vshrl.u32 %v2215, 7
  %v2217 = vsub.s32 3, %v2216
  %v2218 = vrot.slane %v1524, %v2217
  %v2219 = vlaneseq
  %v2220 = vshrl.u32 %v2219, 7
  %v2221 = vsub.s32 3, %v2220
  %v2222 = vrot.slane %v1525, %v2221
  %v2223 = vlaneseq
  %v2224 = vshrl.u32 %v2223, 7
  %v2225 = vsub.s32 3, %v2224
  %v2226 = vrot.slane %v1526, %v2225
  %v2227 = vlaneseq
  %v2228 = vshrl.u32 %v2227, 7
  %v2229 = vsub.s32 3, %v2228
  %v2230 = vrot.slane %v1527, %v2229
  %v2231 = vmul.f32 %v2213, %v2218
  %v2232 = vmul.f32 %v2213, %v2222
  %v2233 = vmul.f32 %v2213, %v2226
  %v2234 = vmul.f32 %v2213, %v2230
  %v2235 = vadd.f32 %v2204, %v2231
  %v2236 = vadd.f32 %v2205, %v2232
  %v2237 = vadd.f32 %v2206, %v2233
  %v2238 = vadd.f32 %v2207, %v2234
  %2239 = vrot.lane.b32.xlu0 %v1524, 127
  %v2240 = vpop.permute.xlu0 %2239
  %2241 = vrot.lane.b32.xlu0 %v1525, 127
  %v2242 = vpop.permute.xlu0 %2241
  %2243 = vrot.lane.b32.xlu0 %v1526, 127
  %v2244 = vpop.permute.xlu0 %2243
  %2245 = vrot.lane.b32.xlu0 %v1527, 127
  %v2246 = vpop.permute.xlu0 %2245
  %v2247 = vsel %vm882, %v2240, %v2242
  %v2248 = vsel %vm882, %v2244, %v2246
  %v2255 = vsel %vm882, %v2242, %v2240
  %v2256 = vsel %vm882, %v2246, %v2244
  %v2257 = vmul.f32 %v2247, %v899
  %v2258 = vmul.f32 %v2255, %v903
  %v2259 = vmul.f32 %v2248, %v899
  %v2260 = vmul.f32 %v2256, %v903
  %s2261 = scalar_lea.vmem %s5, 80
  %v2262 = vld [vmem:[%s2261] sm:$0xf]
  %2264 = vset.pattern.permute.xlu0 0
  %2265 = vperm.xlu0 %2264, %v2262
  %v2266 = vpop.permute.xlu0 %2265
  %v2268 = vlaneseq
  %v2269 = vshrl.u32 %v2268, 7
  %v2270 = vsub.s32 0, %v2269
  %v2271 = vrot.slane %v2257, %v2270
  %v2272 = vlaneseq
  %v2273 = vshrl.u32 %v2272, 7
  %v2274 = vsub.s32 0, %v2273
  %v2275 = vrot.slane %v2258, %v2274
  %v2276 = vlaneseq
  %v2277 = vshrl.u32 %v2276, 7
  %v2278 = vsub.s32 0, %v2277
  %v2279 = vrot.slane %v2259, %v2278
  %v2280 = vlaneseq
  %v2281 = vshrl.u32 %v2280, 7
  %v2282 = vsub.s32 0, %v2281
  %v2283 = vrot.slane %v2260, %v2282
  %v2284 = vmul.f32 %v2266, %v2271
  %v2285 = vmul.f32 %v2266, %v2275
  %v2286 = vmul.f32 %v2266, %v2279
  %v2287 = vmul.f32 %v2266, %v2283
  %v2288 = vadd.f32 %v2235, %v2284
  %v2289 = vadd.f32 %v2236, %v2285
  %v2290 = vadd.f32 %v2237, %v2286
  %v2291 = vadd.f32 %v2238, %v2287
  %s2292 = scalar_lea.vmem %s5, 84
  %v2293 = vld [vmem:[%s2292] sm:$0xf]
  %2295 = vset.pattern.permute.xlu0 0
  %2296 = vperm.xlu0 %2295, %v2293
  %v2297 = vpop.permute.xlu0 %2296
  %v2299 = vlaneseq
  %v2300 = vshrl.u32 %v2299, 7
  %v2301 = vsub.s32 1, %v2300
  %v2302 = vrot.slane %v2257, %v2301
  %v2303 = vlaneseq
  %v2304 = vshrl.u32 %v2303, 7
  %v2305 = vsub.s32 1, %v2304
  %v2306 = vrot.slane %v2258, %v2305
  %v2307 = vlaneseq
  %v2308 = vshrl.u32 %v2307, 7
  %v2309 = vsub.s32 1, %v2308
  %v2310 = vrot.slane %v2259, %v2309
  %v2311 = vlaneseq
  %v2312 = vshrl.u32 %v2311, 7
  %v2313 = vsub.s32 1, %v2312
  %v2314 = vrot.slane %v2260, %v2313
  %v2315 = vmul.f32 %v2297, %v2302
  %v2316 = vmul.f32 %v2297, %v2306
  %v2317 = vmul.f32 %v2297, %v2310
  %v2318 = vmul.f32 %v2297, %v2314
  %v2319 = vadd.f32 %v2288, %v2315
  %v2320 = vadd.f32 %v2289, %v2316
  %v2321 = vadd.f32 %v2290, %v2317
  %v2322 = vadd.f32 %v2291, %v2318
  %s2323 = scalar_lea.vmem %s5, 88
  %v2324 = vld [vmem:[%s2323] sm:$0xf]
  %2326 = vset.pattern.permute.xlu0 0
  %2327 = vperm.xlu0 %2326, %v2324
  %v2328 = vpop.permute.xlu0 %2327
  %v2330 = vlaneseq
  %v2331 = vshrl.u32 %v2330, 7
  %v2332 = vsub.s32 2, %v2331
  %v2333 = vrot.slane %v2257, %v2332
  %v2334 = vlaneseq
  %v2335 = vshrl.u32 %v2334, 7
  %v2336 = vsub.s32 2, %v2335
  %v2337 = vrot.slane %v2258, %v2336
  %v2338 = vlaneseq
  %v2339 = vshrl.u32 %v2338, 7
  %v2340 = vsub.s32 2, %v2339
  %v2341 = vrot.slane %v2259, %v2340
  %v2342 = vlaneseq
  %v2343 = vshrl.u32 %v2342, 7
  %v2344 = vsub.s32 2, %v2343
  %v2345 = vrot.slane %v2260, %v2344
  %v2346 = vmul.f32 %v2328, %v2333
  %v2347 = vmul.f32 %v2328, %v2337
  %v2348 = vmul.f32 %v2328, %v2341
  %v2349 = vmul.f32 %v2328, %v2345
  %v2350 = vadd.f32 %v2319, %v2346
  %v2351 = vadd.f32 %v2320, %v2347
  %v2352 = vadd.f32 %v2321, %v2348
  %v2353 = vadd.f32 %v2322, %v2349
  %s2354 = scalar_lea.vmem %s5, 92
  %v2355 = vld [vmem:[%s2354] sm:$0xf]
  %2357 = vset.pattern.permute.xlu0 0
  %2358 = vperm.xlu0 %2357, %v2355
  %v2359 = vpop.permute.xlu0 %2358
  %v2361 = vlaneseq
  %v2362 = vshrl.u32 %v2361, 7
  %v2363 = vsub.s32 3, %v2362
  %v2364 = vrot.slane %v2257, %v2363
  %v2365 = vlaneseq
  %v2366 = vshrl.u32 %v2365, 7
  %v2367 = vsub.s32 3, %v2366
  %v2368 = vrot.slane %v2258, %v2367
  %v2369 = vlaneseq
  %v2370 = vshrl.u32 %v2369, 7
  %v2371 = vsub.s32 3, %v2370
  %v2372 = vrot.slane %v2259, %v2371
  %v2373 = vlaneseq
  %v2374 = vshrl.u32 %v2373, 7
  %v2375 = vsub.s32 3, %v2374
  %v2376 = vrot.slane %v2260, %v2375
  %v2377 = vmul.f32 %v2359, %v2364
  %v2378 = vmul.f32 %v2359, %v2368
  %v2379 = vmul.f32 %v2359, %v2372
  %v2380 = vmul.f32 %v2359, %v2376
  %v2381 = vadd.f32 %v2350, %v2377
  %v2382 = vadd.f32 %v2351, %v2378
  %v2383 = vadd.f32 %v2352, %v2379
  %v2384 = vadd.f32 %v2353, %v2380
  %2385 = vrot.lane.b32.xlu0 %v1524, 113
  %v2386 = vpop.permute.xlu0 %2385
  %2387 = vrot.lane.b32.xlu0 %v1525, 113
  %v2388 = vpop.permute.xlu0 %2387
  %2389 = vrot.lane.b32.xlu0 %v1526, 113
  %v2390 = vpop.permute.xlu0 %2389
  %2391 = vrot.lane.b32.xlu0 %v1527, 113
  %v2392 = vpop.permute.xlu0 %2391
  %v2393 = vsel %vm1042, %v2386, %v2388
  %v2394 = vsel %vm1042, %v2390, %v2392
  %v2401 = vsel %vm1042, %v2388, %v2386
  %v2402 = vsel %vm1042, %v2392, %v2390
  %v2403 = vmul.f32 %v2393, %v1059
  %v2404 = vmul.f32 %v2401, %v1063
  %v2405 = vmul.f32 %v2394, %v1059
  %v2406 = vmul.f32 %v2402, %v1063
  %s2407 = scalar_lea.vmem %s5, 96
  %v2408 = vld [vmem:[%s2407] sm:$0xf]
  %2410 = vset.pattern.permute.xlu0 0
  %2411 = vperm.xlu0 %2410, %v2408
  %v2412 = vpop.permute.xlu0 %2411
  %v2414 = vlaneseq
  %v2415 = vshrl.u32 %v2414, 7
  %v2416 = vsub.s32 0, %v2415
  %v2417 = vrot.slane %v2403, %v2416
  %v2418 = vlaneseq
  %v2419 = vshrl.u32 %v2418, 7
  %v2420 = vsub.s32 0, %v2419
  %v2421 = vrot.slane %v2404, %v2420
  %v2422 = vlaneseq
  %v2423 = vshrl.u32 %v2422, 7
  %v2424 = vsub.s32 0, %v2423
  %v2425 = vrot.slane %v2405, %v2424
  %v2426 = vlaneseq
  %v2427 = vshrl.u32 %v2426, 7
  %v2428 = vsub.s32 0, %v2427
  %v2429 = vrot.slane %v2406, %v2428
  %v2430 = vmul.f32 %v2412, %v2417
  %v2431 = vmul.f32 %v2412, %v2421
  %v2432 = vmul.f32 %v2412, %v2425
  %v2433 = vmul.f32 %v2412, %v2429
  %v2434 = vadd.f32 %v2381, %v2430
  %v2435 = vadd.f32 %v2382, %v2431
  %v2436 = vadd.f32 %v2383, %v2432
  %v2437 = vadd.f32 %v2384, %v2433
  %s2438 = scalar_lea.vmem %s5, 100
  %v2439 = vld [vmem:[%s2438] sm:$0xf]
  %2441 = vset.pattern.permute.xlu0 0
  %2442 = vperm.xlu0 %2441, %v2439
  %v2443 = vpop.permute.xlu0 %2442
  %v2445 = vlaneseq
  %v2446 = vshrl.u32 %v2445, 7
  %v2447 = vsub.s32 1, %v2446
  %v2448 = vrot.slane %v2403, %v2447
  %v2449 = vlaneseq
  %v2450 = vshrl.u32 %v2449, 7
  %v2451 = vsub.s32 1, %v2450
  %v2452 = vrot.slane %v2404, %v2451
  %v2453 = vlaneseq
  %v2454 = vshrl.u32 %v2453, 7
  %v2455 = vsub.s32 1, %v2454
  %v2456 = vrot.slane %v2405, %v2455
  %v2457 = vlaneseq
  %v2458 = vshrl.u32 %v2457, 7
  %v2459 = vsub.s32 1, %v2458
  %v2460 = vrot.slane %v2406, %v2459
  %v2461 = vmul.f32 %v2443, %v2448
  %v2462 = vmul.f32 %v2443, %v2452
  %v2463 = vmul.f32 %v2443, %v2456
  %v2464 = vmul.f32 %v2443, %v2460
  %v2465 = vadd.f32 %v2434, %v2461
  %v2466 = vadd.f32 %v2435, %v2462
  %v2467 = vadd.f32 %v2436, %v2463
  %v2468 = vadd.f32 %v2437, %v2464
  %s2469 = scalar_lea.vmem %s5, 104
  %v2470 = vld [vmem:[%s2469] sm:$0xf]
  %2472 = vset.pattern.permute.xlu0 0
  %2473 = vperm.xlu0 %2472, %v2470
  %v2474 = vpop.permute.xlu0 %2473
  %v2476 = vlaneseq
  %v2477 = vshrl.u32 %v2476, 7
  %v2478 = vsub.s32 2, %v2477
  %v2479 = vrot.slane %v2403, %v2478
  %v2480 = vlaneseq
  %v2481 = vshrl.u32 %v2480, 7
  %v2482 = vsub.s32 2, %v2481
  %v2483 = vrot.slane %v2404, %v2482
  %v2484 = vlaneseq
  %v2485 = vshrl.u32 %v2484, 7
  %v2486 = vsub.s32 2, %v2485
  %v2487 = vrot.slane %v2405, %v2486
  %v2488 = vlaneseq
  %v2489 = vshrl.u32 %v2488, 7
  %v2490 = vsub.s32 2, %v2489
  %v2491 = vrot.slane %v2406, %v2490
  %v2492 = vmul.f32 %v2474, %v2479
  %v2493 = vmul.f32 %v2474, %v2483
  %v2494 = vmul.f32 %v2474, %v2487
  %v2495 = vmul.f32 %v2474, %v2491
  %v2496 = vadd.f32 %v2465, %v2492
  %v2497 = vadd.f32 %v2466, %v2493
  %v2498 = vadd.f32 %v2467, %v2494
  %v2499 = vadd.f32 %v2468, %v2495
  %s2500 = scalar_lea.vmem %s5, 108
  %v2501 = vld [vmem:[%s2500] sm:$0xf]
  %2503 = vset.pattern.permute.xlu0 0
  %2504 = vperm.xlu0 %2503, %v2501
  %v2505 = vpop.permute.xlu0 %2504
  %v2507 = vlaneseq
  %v2508 = vshrl.u32 %v2507, 7
  %v2509 = vsub.s32 3, %v2508
  %v2510 = vrot.slane %v2403, %v2509
  %v2511 = vlaneseq
  %v2512 = vshrl.u32 %v2511, 7
  %v2513 = vsub.s32 3, %v2512
  %v2514 = vrot.slane %v2404, %v2513
  %v2515 = vlaneseq
  %v2516 = vshrl.u32 %v2515, 7
  %v2517 = vsub.s32 3, %v2516
  %v2518 = vrot.slane %v2405, %v2517
  %v2519 = vlaneseq
  %v2520 = vshrl.u32 %v2519, 7
  %v2521 = vsub.s32 3, %v2520
  %v2522 = vrot.slane %v2406, %v2521
  %v2523 = vmul.f32 %v2505, %v2510
  %v2524 = vmul.f32 %v2505, %v2514
  %v2525 = vmul.f32 %v2505, %v2518
  %v2526 = vmul.f32 %v2505, %v2522
  %v2527 = vadd.f32 %v2496, %v2523
  %v2528 = vadd.f32 %v2497, %v2524
  %v2529 = vadd.f32 %v2498, %v2525
  %v2530 = vadd.f32 %v2499, %v2526
  %2531 = vrot.lane.b32.xlu0 %v1524, 112
  %v2532 = vpop.permute.xlu0 %2531
  %2533 = vrot.lane.b32.xlu0 %v1525, 112
  %v2534 = vpop.permute.xlu0 %2533
  %2535 = vrot.lane.b32.xlu0 %v1526, 112
  %v2536 = vpop.permute.xlu0 %2535
  %2537 = vrot.lane.b32.xlu0 %v1527, 112
  %v2538 = vpop.permute.xlu0 %2537
  %v2539 = vsel %vm1202, %v2532, %v2534
  %v2540 = vsel %vm1202, %v2536, %v2538
  %v2547 = vsel %vm1202, %v2534, %v2532
  %v2548 = vsel %vm1202, %v2538, %v2536
  %v2549 = vmul.f32 %v2539, %v1219
  %v2550 = vmul.f32 %v2547, %v1223
  %v2551 = vmul.f32 %v2540, %v1219
  %v2552 = vmul.f32 %v2548, %v1223
  %s2553 = scalar_lea.vmem %s5, 112
  %v2554 = vld [vmem:[%s2553] sm:$0xf]
  %2556 = vset.pattern.permute.xlu0 0
  %2557 = vperm.xlu0 %2556, %v2554
  %v2558 = vpop.permute.xlu0 %2557
  %v2560 = vlaneseq
  %v2561 = vshrl.u32 %v2560, 7
  %v2562 = vsub.s32 0, %v2561
  %v2563 = vrot.slane %v2549, %v2562
  %v2564 = vlaneseq
  %v2565 = vshrl.u32 %v2564, 7
  %v2566 = vsub.s32 0, %v2565
  %v2567 = vrot.slane %v2550, %v2566
  %v2568 = vlaneseq
  %v2569 = vshrl.u32 %v2568, 7
  %v2570 = vsub.s32 0, %v2569
  %v2571 = vrot.slane %v2551, %v2570
  %v2572 = vlaneseq
  %v2573 = vshrl.u32 %v2572, 7
  %v2574 = vsub.s32 0, %v2573
  %v2575 = vrot.slane %v2552, %v2574
  %v2576 = vmul.f32 %v2558, %v2563
  %v2577 = vmul.f32 %v2558, %v2567
  %v2578 = vmul.f32 %v2558, %v2571
  %v2579 = vmul.f32 %v2558, %v2575
  %v2580 = vadd.f32 %v2527, %v2576
  %v2581 = vadd.f32 %v2528, %v2577
  %v2582 = vadd.f32 %v2529, %v2578
  %v2583 = vadd.f32 %v2530, %v2579
  %s2584 = scalar_lea.vmem %s5, 116
  %v2585 = vld [vmem:[%s2584] sm:$0xf]
  %2587 = vset.pattern.permute.xlu0 0
  %2588 = vperm.xlu0 %2587, %v2585
  %v2589 = vpop.permute.xlu0 %2588
  %v2591 = vlaneseq
  %v2592 = vshrl.u32 %v2591, 7
  %v2593 = vsub.s32 1, %v2592
  %v2594 = vrot.slane %v2549, %v2593
  %v2595 = vlaneseq
  %v2596 = vshrl.u32 %v2595, 7
  %v2597 = vsub.s32 1, %v2596
  %v2598 = vrot.slane %v2550, %v2597
  %v2599 = vlaneseq
  %v2600 = vshrl.u32 %v2599, 7
  %v2601 = vsub.s32 1, %v2600
  %v2602 = vrot.slane %v2551, %v2601
  %v2603 = vlaneseq
  %v2604 = vshrl.u32 %v2603, 7
  %v2605 = vsub.s32 1, %v2604
  %v2606 = vrot.slane %v2552, %v2605
  %v2607 = vmul.f32 %v2589, %v2594
  %v2608 = vmul.f32 %v2589, %v2598
  %v2609 = vmul.f32 %v2589, %v2602
  %v2610 = vmul.f32 %v2589, %v2606
  %v2611 = vadd.f32 %v2580, %v2607
  %v2612 = vadd.f32 %v2581, %v2608
  %v2613 = vadd.f32 %v2582, %v2609
  %v2614 = vadd.f32 %v2583, %v2610
  %s2615 = scalar_lea.vmem %s5, 120
  %v2616 = vld [vmem:[%s2615] sm:$0xf]
  %2618 = vset.pattern.permute.xlu0 0
  %2619 = vperm.xlu0 %2618, %v2616
  %v2620 = vpop.permute.xlu0 %2619
  %v2622 = vlaneseq
  %v2623 = vshrl.u32 %v2622, 7
  %v2624 = vsub.s32 2, %v2623
  %v2625 = vrot.slane %v2549, %v2624
  %v2626 = vlaneseq
  %v2627 = vshrl.u32 %v2626, 7
  %v2628 = vsub.s32 2, %v2627
  %v2629 = vrot.slane %v2550, %v2628
  %v2630 = vlaneseq
  %v2631 = vshrl.u32 %v2630, 7
  %v2632 = vsub.s32 2, %v2631
  %v2633 = vrot.slane %v2551, %v2632
  %v2634 = vlaneseq
  %v2635 = vshrl.u32 %v2634, 7
  %v2636 = vsub.s32 2, %v2635
  %v2637 = vrot.slane %v2552, %v2636
  %v2638 = vmul.f32 %v2620, %v2625
  %v2639 = vmul.f32 %v2620, %v2629
  %v2640 = vmul.f32 %v2620, %v2633
  %v2641 = vmul.f32 %v2620, %v2637
  %v2642 = vadd.f32 %v2611, %v2638
  %v2643 = vadd.f32 %v2612, %v2639
  %v2644 = vadd.f32 %v2613, %v2640
  %v2645 = vadd.f32 %v2614, %v2641
  %s2646 = scalar_lea.vmem %s5, 124
  %v2647 = vld [vmem:[%s2646] sm:$0xf]
  %2649 = vset.pattern.permute.xlu0 0
  %2650 = vperm.xlu0 %2649, %v2647
  %v2651 = vpop.permute.xlu0 %2650
  %v2653 = vlaneseq
  %v2654 = vshrl.u32 %v2653, 7
  %v2655 = vsub.s32 3, %v2654
  %v2656 = vrot.slane %v2549, %v2655
  %v2657 = vlaneseq
  %v2658 = vshrl.u32 %v2657, 7
  %v2659 = vsub.s32 3, %v2658
  %v2660 = vrot.slane %v2550, %v2659
  %v2661 = vlaneseq
  %v2662 = vshrl.u32 %v2661, 7
  %v2663 = vsub.s32 3, %v2662
  %v2664 = vrot.slane %v2551, %v2663
  %v2665 = vlaneseq
  %v2666 = vshrl.u32 %v2665, 7
  %v2667 = vsub.s32 3, %v2666
  %v2668 = vrot.slane %v2552, %v2667
  %v2669 = vmul.f32 %v2651, %v2656
  %v2670 = vmul.f32 %v2651, %v2660
  %v2671 = vmul.f32 %v2651, %v2664
  %v2672 = vmul.f32 %v2651, %v2668
  %v2673 = vadd.f32 %v2642, %v2669
  %v2674 = vadd.f32 %v2643, %v2670
  %v2675 = vadd.f32 %v2644, %v2671
  %v2676 = vadd.f32 %v2645, %v2672
  %2677 = vrot.lane.b32.xlu0 %v1524, 111
  %v2678 = vpop.permute.xlu0 %2677
  %2679 = vrot.lane.b32.xlu0 %v1525, 111
  %v2680 = vpop.permute.xlu0 %2679
  %2681 = vrot.lane.b32.xlu0 %v1526, 111
  %v2682 = vpop.permute.xlu0 %2681
  %2683 = vrot.lane.b32.xlu0 %v1527, 111
  %v2684 = vpop.permute.xlu0 %2683
  %v2685 = vsel %vm1362, %v2678, %v2680
  %v2686 = vsel %vm1362, %v2682, %v2684
  %v2693 = vsel %vm1362, %v2680, %v2678
  %v2694 = vsel %vm1362, %v2684, %v2682
  %v2695 = vmul.f32 %v2685, %v1379
  %v2696 = vmul.f32 %v2693, %v1383
  %v2697 = vmul.f32 %v2686, %v1379
  %v2698 = vmul.f32 %v2694, %v1383
  %s2699 = scalar_lea.vmem %s5, 128
  %v2700 = vld [vmem:[%s2699] sm:$0xf]
  %2702 = vset.pattern.permute.xlu0 0
  %2703 = vperm.xlu0 %2702, %v2700
  %v2704 = vpop.permute.xlu0 %2703
  %v2706 = vlaneseq
  %v2707 = vshrl.u32 %v2706, 7
  %v2708 = vsub.s32 0, %v2707
  %v2709 = vrot.slane %v2695, %v2708
  %v2710 = vlaneseq
  %v2711 = vshrl.u32 %v2710, 7
  %v2712 = vsub.s32 0, %v2711
  %v2713 = vrot.slane %v2696, %v2712
  %v2714 = vlaneseq
  %v2715 = vshrl.u32 %v2714, 7
  %v2716 = vsub.s32 0, %v2715
  %v2717 = vrot.slane %v2697, %v2716
  %v2718 = vlaneseq
  %v2719 = vshrl.u32 %v2718, 7
  %v2720 = vsub.s32 0, %v2719
  %v2721 = vrot.slane %v2698, %v2720
  %v2722 = vmul.f32 %v2704, %v2709
  %v2723 = vmul.f32 %v2704, %v2713
  %v2724 = vmul.f32 %v2704, %v2717
  %v2725 = vmul.f32 %v2704, %v2721
  %v2726 = vadd.f32 %v2673, %v2722
  %v2727 = vadd.f32 %v2674, %v2723
  %v2728 = vadd.f32 %v2675, %v2724
  %v2729 = vadd.f32 %v2676, %v2725
  %s2730 = scalar_lea.vmem %s5, 132
  %v2731 = vld [vmem:[%s2730] sm:$0xf]
  %2733 = vset.pattern.permute.xlu0 0
  %2734 = vperm.xlu0 %2733, %v2731
  %v2735 = vpop.permute.xlu0 %2734
  %v2737 = vlaneseq
  %v2738 = vshrl.u32 %v2737, 7
  %v2739 = vsub.s32 1, %v2738
  %v2740 = vrot.slane %v2695, %v2739
  %v2741 = vlaneseq
  %v2742 = vshrl.u32 %v2741, 7
  %v2743 = vsub.s32 1, %v2742
  %v2744 = vrot.slane %v2696, %v2743
  %v2745 = vlaneseq
  %v2746 = vshrl.u32 %v2745, 7
  %v2747 = vsub.s32 1, %v2746
  %v2748 = vrot.slane %v2697, %v2747
  %v2749 = vlaneseq
  %v2750 = vshrl.u32 %v2749, 7
  %v2751 = vsub.s32 1, %v2750
  %v2752 = vrot.slane %v2698, %v2751
  %v2753 = vmul.f32 %v2735, %v2740
  %v2754 = vmul.f32 %v2735, %v2744
  %v2755 = vmul.f32 %v2735, %v2748
  %v2756 = vmul.f32 %v2735, %v2752
  %v2757 = vadd.f32 %v2726, %v2753
  %v2758 = vadd.f32 %v2727, %v2754
  %v2759 = vadd.f32 %v2728, %v2755
  %v2760 = vadd.f32 %v2729, %v2756
  %s2761 = scalar_lea.vmem %s5, 136
  %v2762 = vld [vmem:[%s2761] sm:$0xf]
  %2764 = vset.pattern.permute.xlu0 0
  %2765 = vperm.xlu0 %2764, %v2762
  %v2766 = vpop.permute.xlu0 %2765
  %v2768 = vlaneseq
  %v2769 = vshrl.u32 %v2768, 7
  %v2770 = vsub.s32 2, %v2769
  %v2771 = vrot.slane %v2695, %v2770
  %v2772 = vlaneseq
  %v2773 = vshrl.u32 %v2772, 7
  %v2774 = vsub.s32 2, %v2773
  %v2775 = vrot.slane %v2696, %v2774
  %v2776 = vlaneseq
  %v2777 = vshrl.u32 %v2776, 7
  %v2778 = vsub.s32 2, %v2777
  %v2779 = vrot.slane %v2697, %v2778
  %v2780 = vlaneseq
  %v2781 = vshrl.u32 %v2780, 7
  %v2782 = vsub.s32 2, %v2781
  %v2783 = vrot.slane %v2698, %v2782
  %v2784 = vmul.f32 %v2766, %v2771
  %v2785 = vmul.f32 %v2766, %v2775
  %v2786 = vmul.f32 %v2766, %v2779
  %v2787 = vmul.f32 %v2766, %v2783
  %v2788 = vadd.f32 %v2757, %v2784
  %v2789 = vadd.f32 %v2758, %v2785
  %v2790 = vadd.f32 %v2759, %v2786
  %v2791 = vadd.f32 %v2760, %v2787
  %s2792 = scalar_lea.vmem %s5, 140
  %v2793 = vld [vmem:[%s2792] sm:$0xf]
  %2795 = vset.pattern.permute.xlu0 0
  %2796 = vperm.xlu0 %2795, %v2793
  %v2797 = vpop.permute.xlu0 %2796
  %v2799 = vlaneseq
  %v2800 = vshrl.u32 %v2799, 7
  %v2801 = vsub.s32 3, %v2800
  %v2802 = vrot.slane %v2695, %v2801
  %v2803 = vlaneseq
  %v2804 = vshrl.u32 %v2803, 7
  %v2805 = vsub.s32 3, %v2804
  %v2806 = vrot.slane %v2696, %v2805
  %v2807 = vlaneseq
  %v2808 = vshrl.u32 %v2807, 7
  %v2809 = vsub.s32 3, %v2808
  %v2810 = vrot.slane %v2697, %v2809
  %v2811 = vlaneseq
  %v2812 = vshrl.u32 %v2811, 7
  %v2813 = vsub.s32 3, %v2812
  %v2814 = vrot.slane %v2698, %v2813
  %v2815 = vmul.f32 %v2797, %v2802
  %v2816 = vmul.f32 %v2797, %v2806
  %v2817 = vmul.f32 %v2797, %v2810
  %v2818 = vmul.f32 %v2797, %v2814
  %v2819 = vadd.f32 %v2788, %v2815
  %v2820 = vadd.f32 %v2789, %v2816
  %v2821 = vadd.f32 %v2790, %v2817
  %v2822 = vadd.f32 %v2791, %v2818
  %v2823 = vld [vmem:[%s6] sm:$0xf]
  %2825 = vset.pattern.permute.xlu0 0
  %2826 = vperm.xlu0 %2825, %v2823
  %v2827 = vpop.permute.xlu0 %2826
  %v2829 = vadd.f32 %v2819, %v2827
  %v2830 = vadd.f32 %v2820, %v2827
  %v2831 = vadd.f32 %v2821, %v2827
  %v2832 = vadd.f32 %v2822, %v2827
  %v2833 = vmax.f32 %v2829, 0.0
  %v2834 = vmax.f32 %v2830, 0.0
  %v2835 = vmax.f32 %v2831, 0.0
  %v2836 = vmax.f32 %v2832, 0.0
  %v2837 = vld [vmem:[%s1] sm:$0xff]
  %v2838 = vld [vmem:[%s1 + $0x8] sm:$0xff]
  %v2841 = vcombine.high %v2837, %v2837
  %v2842 = vcombine.high %v2838, %v2838
  %v2845 = vadd.f32 %v2833, %v2837
  %v2846 = vadd.f32 %v2834, %v2841
  %v2847 = vadd.f32 %v2835, %v2838
  %v2848 = vadd.f32 %v2836, %v2842
  %v2853 = vcombine.low %v2845, %v2846
  %v2854 = vcombine.low %v2847, %v2848
  %2857 = vst [vmem:[%s7] sm:$0xff] %v2853
  %2858 = vst [vmem:[%s7 + $0x8] sm:$0xff] %v2854
  // Predicated region
  $region30: #{fetch_block_forward.1} parent=0 // pred_check
    _
  $region31: #{fetch_block_forward.1} parent=0 // pred_check_branch
    %2860 = sbr.rel (0) target = $region33
  $region32: #{fetch_block_forward.1} parent=0 // pred_region
    _
  $region33: #{fetch_block_forward.1} parent=0 // pred_fallthru
    _
  // Predicated region
  $region34: #{fetch_block_forward.1} parent=0 // pred_check
    _
  $region35: #{fetch_block_forward.1} parent=0 // pred_check_branch
    %2862 = sbr.rel (0) target = $region37
  $region36: #{fetch_block_forward.1} parent=0 // pred_region
    _
  $region37: #{fetch_block_forward.1} parent=0 // pred_fallthru
    _

</llo_original>
